<compile_context>
chip_gen: v6e
topology: v6e:2x2x1
jax: 0.10.0
libtpu: 0.0.40
codegen_flags: <defaults>
</compile_context>

<pallas_src>
import math

import jax
import jax.numpy as jnp
import numpy as np
from jax import lax
from jax.experimental import pallas as pl
from jax.experimental.pallas import tpu as pltpu

_LOG_2PI = math.log(2.0 * math.pi)
# Leading parallel grid axis: sharded across TensorCores on megacore parts (v7x),
# a harmless serial split on single-core parts (v5e/v6e).
_NCORES = 2


# ----------------------------------------------------------------------------
# Kernel factory (K, T, lane tile, valid batch and steps/core baked in statically)
# ----------------------------------------------------------------------------
def _make_kernel(K, T, tb, b_valid, steps_per_core):
    inv_t = 1.0 / float(T)

    def kernel(planes_ref, tgt_ref, p_ref, sums_ref, cfin_ref, call_ref):
        c = pl.program_id(0)          # core split (parallel)
        j = pl.program_id(1)          # batch blocks per core (arbitrary)

        # Zero this core's resident output accumulators on its first step.
        @pl.when(j == 0)
        def _init():
            sums_ref[...] = jnp.zeros_like(sums_ref)
            cfin_ref[...] = jnp.zeros_like(cfin_ref)
            call_ref[...] = jnp.zeros_like(call_ref)

        # Valid-lane mask (batch zero-padded to _NCORES * steps_per_core * tb lanes).
        blk = c * steps_per_core + j
        lane = lax.broadcasted_iota(jnp.int32, (1, tb), 1)
        valid = (blk * tb + lane) < b_valid                       # [1, tb] bool

        # Static per-plane ref views (zero runtime cost).
        txp = planes_ref.at[0]        # [T, K, tb] trajectory x
        typ = planes_ref.at[1]        # [T, K, tb] trajectory y
        c00p = planes_ref.at[2]       # cov[...,0,0]
        c10p = planes_ref.at[3]       # cov[...,1,0]
        c11p = planes_ref.at[4]       # cov[...,1,1]

        def dist_nll(t):
            """Per-timestep [K, tb] displacement norm and Gaussian NLL."""
            tx = txp[t]
            ty = typ[t]
            g = tgt_ref[t]                                        # [2, tb]
            gx = g[0:1, :]
            gy = g[1:2, :]
            dx = tx - gx
            dy = ty - gy
            dist = jnp.sqrt(dx * dx + dy * dy)
            # Closed-form 2x2 Cholesky of (cov + 0.2*I): rsqrt + single log.
            a = c00p[t] + 0.2
            d = c11p[t] + 0.2
            inv_l00 = lax.rsqrt(a)
            l10 = c10p[t] * inv_l00
            s = jnp.maximum(d - l10 * l10, 1e-12)  # guard vs. ill-conditioned cov
            inv_l11 = lax.rsqrt(s)
            z0 = -dx * inv_l00                     # (target - traj_x) = -dx
            z1 = (-dy - l10 * z0) * inv_l11
            nll = 0.5 * (z0 * z0 + z1 * z1) + 0.5 * jnp.log(a * s) + _LOG_2PI
            return dist, nll

        # T-loop over [K, tb] slices: no [K, T, tb] intermediates.
        def step_t(t, carry):
            ade_acc, nll_acc = carry
            dist, nll = dist_nll(t)
            return ade_acc + dist, nll_acc + nll

        zero_ktb = jnp.zeros((K, tb), jnp.float32)
        ade_sum, nll_sum = lax.fori_loop(
            0, T, step_t, (zero_ktb, zero_ktb),
            unroll=(True if T <= 16 else 1))
        fde, nll_final = dist_nll(T - 1)           # final step (one recompute)
        ade = ade_sum * inv_t

        # Softmax over modes (sublane axis) + brier.
        p = p_ref[...]                                            # [K, tb]
        pmax = jnp.max(p, axis=0, keepdims=True)
        pexp = jnp.exp(p - pmax)
        psm = pexp / jnp.sum(pexp, axis=0, keepdims=True)
        brier = fde + (1.0 - psm) ** 2

        # Per-lane min over modes; lane reduction is deferred (lane-wide accumulators).
        mn_fde = jnp.min(fde, axis=0, keepdims=True)              # [1, tb]
        mn_ade = jnp.min(ade, axis=0, keepdims=True)
        mn_brier = jnp.min(brier, axis=0, keepdims=True)
        miss = jnp.where(mn_fde > 2.0, 1.0, 0.0)  # all_k(FDE>2) <=> min_k FDE > 2
        upd = jnp.concatenate([mn_fde, mn_ade, miss, mn_brier], axis=0)  # [4, tb]
        sums_ref[...] += jnp.where(valid, upd, 0.0)

        # Stable descending-probability rank of each mode (vectorized; matches
        # argsort(-p) with ties broken by original index).
        pk = p[:, None, :]                                        # [K, 1, tb]
        pj = p[None, :, :]                                        # [1, K, tb]
        kk = lax.broadcasted_iota(jnp.int32, (K, K, tb), 0)
        jj = lax.broadcasted_iota(jnp.int32, (K, K, tb), 1)
        before = (pj > pk) | ((pj == pk) & (jj < kk))
        rank = jnp.sum(jnp.where(before, 1.0, 0.0), axis=1)       # [K, tb]

        # Regroup the [K, tb] NLL summaries by rank (replaces wrapper sort+gather).
        nllf = jnp.where(valid, nll_final, 0.0)
        nlls = jnp.where(valid, nll_sum, 0.0)
        rows_f = []
        rows_a = []
        for i in range(K):
            sel = rank == i
            rows_f.append(jnp.sum(jnp.where(sel, nllf, 0.0), axis=0, keepdims=True))
            rows_a.append(jnp.sum(jnp.where(sel, nlls, 0.0), axis=0, keepdims=True))
        cfin_ref[...] += jnp.concatenate(rows_f, axis=0)          # [K, tb]
        call_ref[...] += jnp.concatenate(rows_a, axis=0)          # [K, tb]

    return kernel


def _pick_tb(B, T):
    """Largest lane tile (multiple of 128, <=1024) whose double-buffered input
    blocks stay within a conservative VMEM budget (fits v7x's 64 MiB VMEM)."""
    kpad = 8  # K=6 mode rows pad to a full sublane tile in VMEM
    per_lane = (5 * T * kpad + T * kpad + kpad) * 4   # input-block bytes per lane
    tb = 128
    for cand in (256, 512, 1024):
        if 2 * per_lane * cand <= (24 << 20):
            tb = cand
    b_ceil = ((max(B, 1) + 127) // 128) * 128
    return min(tb, b_ceil), per_lane


# ----------------------------------------------------------------------------
# Wrapper: thin layout plumbing (fusable into the pallas_call) + tiny final
# lane/core reductions.  No sort, no big gathers.
# ----------------------------------------------------------------------------
@jax.jit
def metrics_pallas(trajectories, trajectory_cov, target, probabilities):
    """trajectories: [B, 6, T, D>=2], trajectory_cov: [B, 6, T, D>=2, D>=2],
       target: [B, T, D>=2], probabilities: [B, 6]."""
    B, K, T = trajectories.shape[0], trajectories.shape[1], trajectories.shape[2]
    f32 = jnp.float32

    tb, per_lane = _pick_tb(B, T)
    nblk = -(-B // tb)                   # batch blocks needed
    spc = -(-nblk // _NCORES)            # batch blocks per core
    bp = _NCORES * spc * tb              # padded batch (lanes)

    tx = trajectories[..., 0]
    ty = trajectories[..., 1]
    c00 = trajectory_cov[..., 0, 0]
    c10 = trajectory_cov[..., 1, 0]
    c11 = trajectory_cov[..., 1, 1]
    planes = jnp.transpose(jnp.stack([tx, ty, c00, c10, c11], axis=0),
                           (0, 3, 2, 1)).astype(f32)              # [5, T, K, B]
    planes = jnp.pad(planes, ((0, 0), (0, 0), (0, 0), (0, bp - B)))
    tgt = jnp.transpose(target[..., :2], (1, 2, 0)).astype(f32)   # [T, 2, B]
    tgt = jnp.pad(tgt, ((0, 0), (0, 0), (0, bp - B)))
    probs = jnp.transpose(probabilities, (1, 0)).astype(f32)      # [K, B]
    probs = jnp.pad(probs, ((0, 0), (0, bp - B)))

    vmem_limit = int(min(max(2 * per_lane * tb + (16 << 20), 32 << 20), 56 << 20))

    kernel = _make_kernel(K, T, tb, B, spc)
    raw_sums, raw_fin, raw_all = pl.pallas_call(
        kernel,
        out_shape=(
            jax.ShapeDtypeStruct((_NCORES, 4, tb), f32),   # minFDE/minADE/miss/brier
            jax.ShapeDtypeStruct((_NCORES, K, tb), f32),   # per-rank FGNLL partials
            jax.ShapeDtypeStruct((_NCORES, K, tb), f32),   # per-rank AGNLL partials
        ),
        grid=(_NCORES, spc),
        in_specs=[
            pl.BlockSpec((5, T, K, tb), lambda c, j: (0, 0, 0, c * spc + j)),
            pl.BlockSpec((T, 2, tb), lambda c, j: (0, 0, c * spc + j)),
            pl.BlockSpec((K, tb), lambda c, j: (0, c * spc + j)),
        ],
        out_specs=(
            pl.BlockSpec((None, 4, tb), lambda c, j: (c, 0, 0)),
            pl.BlockSpec((None, K, tb), lambda c, j: (c, 0, 0)),
            pl.BlockSpec((None, K, tb), lambda c, j: (c, 0, 0)),
        ),
        compiler_params=pltpu.CompilerParams(
            dimension_semantics=("parallel", "arbitrary"),
            vmem_limit_bytes=vmem_limit,
            allow_input_fusion=[True, True, True],
        ),
    )(planes, tgt, probs)

    # Tiny final reductions (lanes + cores), done once here.  The min over rank
    # columns is applied only AFTER summing the per-core partials.
    tot = jnp.sum(raw_sums, axis=(0, 2))     # [4]
    colf = jnp.sum(raw_fin, axis=(0, 2))     # [K] per-rank final-step NLL sums
    cola = jnp.sum(raw_all, axis=(0, 2))     # [K] per-rank all-step NLL sums

    inv_b = 1.0 / B
    min_fde = tot[0] * inv_b
    min_ade = tot[1] * inv_b
    miss_rate = tot[2] * inv_b
    brier_min_fde = tot[3] * inv_b
    # GNLLLoss(reduction='mean') element counts: final step -> B*2, all steps -> B*T.
    min_fgnll = jnp.min(colf) / (B * 2.0)
    min_agnll = jnp.min(cola) / (B * T)
    return min_fde, min_ade, miss_rate, brier_min_fde, min_fgnll, min_agnll


# ----------------------------------------------------------------------------
# Pure-JAX reference (mirrors the PyTorch forward, including the sort).
# ----------------------------------------------------------------------------
def metrics_ref(trajectories, trajectory_cov, target, probabilities):
    B, K, T = trajectories.shape[0], trajectories.shape[1], trajectories.shape[2]
    idx = jnp.argsort(-probabilities, axis=-1)
    p_scaled = jax.nn.softmax(probabilities, axis=-1)
    prob = jnp.take_along_axis(p_scaled, idx, axis=-1)
    traj = jnp.take_along_axis(trajectories[..., :2], idx[:, :, None, None], axis=1)
    cov = jnp.take_along_axis(trajectory_cov[..., :2, :2],
                              idx[:, :, None, None, None], axis=1)
    tgt = target[..., :2]

    diff = traj - tgt[:, None]
    dist = jnp.linalg.norm(diff, axis=-1)
    FDE = dist[..., -1]
    ADE = dist.mean(-1)
    brier = FDE + (1.0 - prob) ** 2

    a = cov[..., 0, 0] + 0.2
    c = cov[..., 1, 0]
    d = cov[..., 1, 1] + 0.2
    l00 = jnp.sqrt(a); l10 = c / l00; l11 = jnp.sqrt(d - l10 ** 2)
    ex = tgt[:, None, :, 0] - traj[..., 0]
    ey = tgt[:, None, :, 1] - traj[..., 1]
    z0 = ex / l00
    z1 = (ey - l10 * z0) / l11
    nll = 0.5 * (z0 ** 2 + z1 ** 2) + jnp.log(l00) + jnp.log(l11) + math.log(2 * math.pi)

    FGNLL = nll[..., -1].sum(0) / B / 2.0
    AGNLL = nll.sum((0, 2)) / B / T

    minFDE = jnp.min(FDE, -1).mean()
    minADE = jnp.min(ADE, -1).mean()
    brier_minFDE = jnp.min(brier, -1).mean()
    minFGNLL = jnp.min(FGNLL)
    minAGNLL = jnp.min(AGNLL)
    miss_rate = jnp.sum(jnp.all(FDE > 2.0, -1)) / B
    return (minFDE, minADE, miss_rate, brier_minFDE, minFGNLL, minAGNLL)


if __name__ == "__main__":
    B, K, T, D = 2, 6, 8, 2
    key = jax.random.PRNGKey(0)
    k1, k2, k3, k4 = jax.random.split(key, 4)

    trajectories = jax.random.normal(k1, (B, K, T, D), dtype=jnp.float32) * 2.0
    target = jax.random.normal(k2, (B, T, D), dtype=jnp.float32) * 2.0
    r = jax.random.normal(k3, (B, K, T, D, D), dtype=jnp.float32) * 0.5
    trajectory_cov = jnp.matmul(r, jnp.swapaxes(r, -1, -2))   # PSD; +0.2*I makes it PD
    probabilities = jax.random.normal(k4, (B, K), dtype=jnp.float32)

    out = jax.block_until_ready(
        metrics_pallas(trajectories, trajectory_cov, target, probabilities))
    ref = jax.block_until_ready(
        metrics_ref(trajectories, trajectory_cov, target, probabilities))

    np.testing.assert_allclose(np.array(out), np.array(ref), rtol=2e-3, atol=2e-3)
    print("KERNEL_OK")
</pallas_src>

<mosaic_0001>
module attributes {stable_mosaic.version = 11 : i64} {
  func.func @kernel(%arg0: i32, %arg1: i32, %arg2: memref<5x8x6x128xf32, #tpu.memory_space<vmem>>, %arg3: memref<8x2x128xf32, #tpu.memory_space<vmem>>, %arg4: memref<6x128xf32, #tpu.memory_space<vmem>>, %arg5: memref<1x4x128xf32, #tpu.memory_space<vmem>>, %arg6: memref<1x6x128xf32, #tpu.memory_space<vmem>>, %arg7: memref<1x6x128xf32, #tpu.memory_space<vmem>>) attributes {dimension_semantics = [#tpu.dimension_semantics<parallel>, #tpu.dimension_semantics<arbitrary>], iteration_bounds = array<i64: 2, 1>, scalar_prefetch = 0 : i64, scratch_operands = 0 : i64, tpu.core_type = #tpu.core_type<tc>, window_params = [{transform_indices = @transform_0, window_bounds = array<i64: 5, 8, 6, 128>}, {transform_indices = @transform_1, window_bounds = array<i64: 8, 2, 128>}, {transform_indices = @transform_2, window_bounds = array<i64: 6, 128>}, {transform_indices = @transform_3, window_bounds = array<i64: 1, 4, 128>}, {transform_indices = @transform_4, window_bounds = array<i64: 1, 6, 128>}, {transform_indices = @transform_5, window_bounds = array<i64: 1, 6, 128>}]} {
    %c0_i32 = arith.constant 0 : i32
    %0 = arith.cmpi eq, %arg1, %c0_i32 : i32
    %1 = arith.extui %0 : i1 to i32
    %c0_i32_0 = arith.constant 0 : i32
    %2 = arith.cmpi ne, %1, %c0_i32_0 : i32
    scf.if %2 {
      %cst_399 = arith.constant 0.000000e+00 : f32
      %780 = vector.broadcast %cst_399 : f32 to vector<4x128xf32>
      %c0_400 = arith.constant 0 : index
      %c0_401 = arith.constant 0 : index
      %c0_402 = arith.constant 0 : index
      %781 = vector.load %arg5[%c0_400, %c0_401, %c0_402] : memref<1x4x128xf32, #tpu.memory_space<vmem>>, vector<1x4x128xf32>
      %782 = vector.shape_cast %781 : vector<1x4x128xf32> to vector<4x128xf32>
      %783 = vector.shape_cast %780 : vector<4x128xf32> to vector<1x4x128xf32>
      tpu.vector_store %arg5[%c0_400, %c0_401, %c0_402], %783 {strides = array<i32>} : memref<1x4x128xf32, #tpu.memory_space<vmem>>, vector<1x4x128xf32>,
      %cst_403 = arith.constant 0.000000e+00 : f32
      %784 = vector.broadcast %cst_403 : f32 to vector<6x128xf32>
      %c0_404 = arith.constant 0 : index
      %c0_405 = arith.constant 0 : index
      %c0_406 = arith.constant 0 : index
      %785 = vector.load %arg6[%c0_404, %c0_405, %c0_406] : memref<1x6x128xf32, #tpu.memory_space<vmem>>, vector<1x6x128xf32>
      %786 = vector.shape_cast %785 : vector<1x6x128xf32> to vector<6x128xf32>
      %787 = vector.shape_cast %784 : vector<6x128xf32> to vector<1x6x128xf32>
      tpu.vector_store %arg6[%c0_404, %c0_405, %c0_406], %787 {strides = array<i32>} : memref<1x6x128xf32, #tpu.memory_space<vmem>>, vector<1x6x128xf32>,
      %cst_407 = arith.constant 0.000000e+00 : f32
      %788 = vector.broadcast %cst_407 : f32 to vector<6x128xf32>
      %c0_408 = arith.constant 0 : index
      %c0_409 = arith.constant 0 : index
      %c0_410 = arith.constant 0 : index
      %789 = vector.load %arg7[%c0_408, %c0_409, %c0_410] : memref<1x6x128xf32, #tpu.memory_space<vmem>>, vector<1x6x128xf32>
      %790 = vector.shape_cast %789 : vector<1x6x128xf32> to vector<6x128xf32>
      %791 = vector.shape_cast %788 : vector<6x128xf32> to vector<1x6x128xf32>
      tpu.vector_store %arg7[%c0_408, %c0_409, %c0_410], %791 {strides = array<i32>} : memref<1x6x128xf32, #tpu.memory_space<vmem>>, vector<1x6x128xf32>,
    } else {
    }
    %c1_i32 = arith.constant 1 : i32
    %3 = arith.muli %arg0, %c1_i32 : i32
    %4 = arith.addi %3, %arg1 : i32
    %5 = tpu.iota {dimensions = array<i32: 1>} : vector<1x128xi32>
    %c128_i32 = arith.constant 128 : i32
    %6 = arith.muli %4, %c128_i32 : i32
    %7 = vector.broadcast %6 : i32 to vector<1x128xi32>
    %8 = arith.addi %7, %5 : vector<1x128xi32>
    %c2_i32 = arith.constant 2 : i32
    %9 = vector.broadcast %c2_i32 : i32 to vector<1x128xi32>
    %10 = arith.cmpi slt, %8, %9 : vector<1x128xi32>
    %cst = arith.constant 0.000000e+00 : f32
    %11 = vector.broadcast %cst : f32 to vector<6x128xf32>
    %c0_i32_1 = arith.constant 0 : i32
    %c1_i32_2 = arith.constant 1 : i32
    %c2_i32_3 = arith.constant 2 : i32
    %c4_i32 = arith.constant 4 : i32
    %c3_i32 = arith.constant 3 : i32
    %c0_i32_4 = arith.constant 0 : i32
    %c0_i32_5 = arith.constant 0 : i32
    %c0_i32_6 = arith.constant 0 : i32
    %c0_i32_7 = arith.constant 0 : i32
    %12 = tpu.memref_slice %arg2[%c0_i32_1, %c0_i32_5, %c0_i32_6, %c0_i32_7] : memref<5x8x6x128xf32, #tpu.memory_space<vmem>> -> memref<1x8x6x128xf32, #tpu.memory_space<vmem>>
    %13 = tpu.memref_squeeze %12 : memref<1x8x6x128xf32, #tpu.memory_space<vmem>> -> memref<8x6x128xf32, #tpu.memory_space<vmem>>
    %14 = arith.index_cast %c0_i32_4 : i32 to index
    %c0 = arith.constant 0 : index
    %c0_8 = arith.constant 0 : index
    %15 = vector.load %13[%14, %c0, %c0_8] : memref<8x6x128xf32, #tpu.memory_space<vmem>>, vector<1x6x128xf32>
    %16 = vector.shape_cast %15 : vector<1x6x128xf32> to vector<6x128xf32>
    %c0_i32_9 = arith.constant 0 : i32
    %c0_i32_10 = arith.constant 0 : i32
    %c0_i32_11 = arith.constant 0 : i32
    %17 = tpu.memref_slice %arg2[%c1_i32_2, %c0_i32_9, %c0_i32_10, %c0_i32_11] : memref<5x8x6x128xf32, #tpu.memory_space<vmem>> -> memref<1x8x6x128xf32, #tpu.memory_space<vmem>>
    %18 = tpu.memref_squeeze %17 : memref<1x8x6x128xf32, #tpu.memory_space<vmem>> -> memref<8x6x128xf32, #tpu.memory_space<vmem>>
    %19 = arith.index_cast %c0_i32_4 : i32 to index
    %c0_12 = arith.constant 0 : index
    %c0_13 = arith.constant 0 : index
    %20 = vector.load %18[%19, %c0_12, %c0_13] : memref<8x6x128xf32, #tpu.memory_space<vmem>>, vector<1x6x128xf32>
    %21 = vector.shape_cast %20 : vector<1x6x128xf32> to vector<6x128xf32>
    %22 = arith.index_cast %c0_i32_4 : i32 to index
    %c0_14 = arith.constant 0 : index
    %c0_15 = arith.constant 0 : index
    %23 = vector.load %arg3[%22, %c0_14, %c0_15] : memref<8x2x128xf32, #tpu.memory_space<vmem>>, vector<1x2x128xf32>
    %24 = vector.shape_cast %23 : vector<1x2x128xf32> to vector<2x128xf32>
    %25 = vector.extract_strided_slice %24 {offsets = [0, 0], sizes = [1, 128], strides = [1, 1]} : vector<2x128xf32> to vector<1x128xf32>
    %26 = vector.extract_strided_slice %24 {offsets = [1, 0], sizes = [1, 128], strides = [1, 1]} : vector<2x128xf32> to vector<1x128xf32>
    %27 = vector.broadcast %25 : vector<1x128xf32> to vector<6x128xf32>
    %28 = arith.subf %16, %27 : vector<6x128xf32>
    %29 = vector.broadcast %26 : vector<1x128xf32> to vector<6x128xf32>
    %30 = arith.subf %21, %29 : vector<6x128xf32>
    %31 = arith.mulf %28, %28 : vector<6x128xf32>
    %32 = arith.mulf %30, %30 : vector<6x128xf32>
    %33 = arith.addf %31, %32 : vector<6x128xf32>
    %34 = math.sqrt %33 : vector<6x128xf32>
    %c0_i32_16 = arith.constant 0 : i32
    %c0_i32_17 = arith.constant 0 : i32
    %c0_i32_18 = arith.constant 0 : i32
    %35 = tpu.memref_slice %arg2[%c2_i32_3, %c0_i32_16, %c0_i32_17, %c0_i32_18] : memref<5x8x6x128xf32, #tpu.memory_space<vmem>> -> memref<1x8x6x128xf32, #tpu.memory_space<vmem>>
    %36 = tpu.memref_squeeze %35 : memref<1x8x6x128xf32, #tpu.memory_space<vmem>> -> memref<8x6x128xf32, #tpu.memory_space<vmem>>
    %37 = arith.index_cast %c0_i32_4 : i32 to index
    %c0_19 = arith.constant 0 : index
    %c0_20 = arith.constant 0 : index
    %38 = vector.load %36[%37, %c0_19, %c0_20] : memref<8x6x128xf32, #tpu.memory_space<vmem>>, vector<1x6x128xf32>
    %39 = vector.shape_cast %38 : vector<1x6x128xf32> to vector<6x128xf32>
    %cst_21 = arith.constant 2.000000e-01 : f32
    %40 = vector.broadcast %cst_21 : f32 to vector<6x128xf32>
    %41 = arith.addf %39, %40 : vector<6x128xf32>
    %c0_i32_22 = arith.constant 0 : i32
    %c0_i32_23 = arith.constant 0 : i32
    %c0_i32_24 = arith.constant 0 : i32
    %42 = tpu.memref_slice %arg2[%c4_i32, %c0_i32_22, %c0_i32_23, %c0_i32_24] : memref<5x8x6x128xf32, #tpu.memory_space<vmem>> -> memref<1x8x6x128xf32, #tpu.memory_space<vmem>>
    %43 = tpu.memref_squeeze %42 : memref<1x8x6x128xf32, #tpu.memory_space<vmem>> -> memref<8x6x128xf32, #tpu.memory_space<vmem>>
    %44 = arith.index_cast %c0_i32_4 : i32 to index
    %c0_25 = arith.constant 0 : index
    %c0_26 = arith.constant 0 : index
    %45 = vector.load %43[%44, %c0_25, %c0_26] : memref<8x6x128xf32, #tpu.memory_space<vmem>>, vector<1x6x128xf32>
    %46 = vector.shape_cast %45 : vector<1x6x128xf32> to vector<6x128xf32>
    %cst_27 = arith.constant 2.000000e-01 : f32
    %47 = vector.broadcast %cst_27 : f32 to vector<6x128xf32>
    %48 = arith.addf %46, %47 : vector<6x128xf32>
    %49 = math.rsqrt %41 : vector<6x128xf32>
    %c0_i32_28 = arith.constant 0 : i32
    %c0_i32_29 = arith.constant 0 : i32
    %c0_i32_30 = arith.constant 0 : i32
    %50 = tpu.memref_slice %arg2[%c3_i32, %c0_i32_28, %c0_i32_29, %c0_i32_30] : memref<5x8x6x128xf32, #tpu.memory_space<vmem>> -> memref<1x8x6x128xf32, #tpu.memory_space<vmem>>
    %51 = tpu.memref_squeeze %50 : memref<1x8x6x128xf32, #tpu.memory_space<vmem>> -> memref<8x6x128xf32, #tpu.memory_space<vmem>>
    %52 = arith.index_cast %c0_i32_4 : i32 to index
    %c0_31 = arith.constant 0 : index
    %c0_32 = arith.constant 0 : index
    %53 = vector.load %51[%52, %c0_31, %c0_32] : memref<8x6x128xf32, #tpu.memory_space<vmem>>, vector<1x6x128xf32>
    %54 = vector.shape_cast %53 : vector<1x6x128xf32> to vector<6x128xf32>
    %55 = arith.mulf %54, %49 : vector<6x128xf32>
    %56 = arith.mulf %55, %55 : vector<6x128xf32>
    %57 = arith.subf %48, %56 : vector<6x128xf32>
    %cst_33 = arith.constant 9.99999996E-13 : f32
    %58 = vector.broadcast %cst_33 : f32 to vector<6x128xf32>
    %59 = arith.maximumf %57, %58 : vector<6x128xf32>
    %60 = math.rsqrt %59 : vector<6x128xf32>
    %cst_34 = arith.constant 0.000000e+00 : f32
    %61 = vector.broadcast %cst_34 : f32 to vector<6x128xf32>
    %62 = arith.subf %61, %28 : vector<6x128xf32>
    %63 = arith.mulf %62, %49 : vector<6x128xf32>
    %cst_35 = arith.constant 0.000000e+00 : f32
    %64 = vector.broadcast %cst_35 : f32 to vector<6x128xf32>
    %65 = arith.subf %64, %30 : vector<6x128xf32>
    %66 = arith.mulf %55, %63 : vector<6x128xf32>
    %67 = arith.subf %65, %66 : vector<6x128xf32>
    %68 = arith.mulf %67, %60 : vector<6x128xf32>
    %69 = arith.mulf %63, %63 : vector<6x128xf32>
    %70 = arith.mulf %68, %68 : vector<6x128xf32>
    %71 = arith.addf %69, %70 : vector<6x128xf32>
    %cst_36 = arith.constant 5.000000e-01 : f32
    %72 = vector.broadcast %cst_36 : f32 to vector<6x128xf32>
    %73 = arith.mulf %72, %71 : vector<6x128xf32>
    %74 = arith.mulf %41, %59 : vector<6x128xf32>
    %75 = math.log %74 : vector<6x128xf32>
    %cst_37 = arith.constant 5.000000e-01 : f32
    %76 = vector.broadcast %cst_37 : f32 to vector<6x128xf32>
    %77 = arith.mulf %76, %75 : vector<6x128xf32>
    %78 = arith.addf %73, %77 : vector<6x128xf32>
    %cst_38 = arith.constant 1.83787704 : f32
    %79 = vector.broadcast %cst_38 : f32 to vector<6x128xf32>
    %80 = arith.addf %78, %79 : vector<6x128xf32>
    %81 = arith.addf %11, %34 : vector<6x128xf32>
    %82 = arith.addf %11, %80 : vector<6x128xf32>
    %c1_i32_39 = arith.constant 1 : i32
    %c0_i32_40 = arith.constant 0 : i32
    %c0_i32_41 = arith.constant 0 : i32
    %c0_i32_42 = arith.constant 0 : i32
    %83 = tpu.memref_slice %arg2[%c0_i32_1, %c0_i32_40, %c0_i32_41, %c0_i32_42] : memref<5x8x6x128xf32, #tpu.memory_space<vmem>> -> memref<1x8x6x128xf32, #tpu.memory_space<vmem>>
    %84 = tpu.memref_squeeze %83 : memref<1x8x6x128xf32, #tpu.memory_space<vmem>> -> memref<8x6x128xf32, #tpu.memory_space<vmem>>
    %85 = arith.index_cast %c1_i32_39 : i32 to index
    %c0_43 = arith.constant 0 : index
    %c0_44 = arith.constant 0 : index
    %86 = vector.load %84[%85, %c0_43, %c0_44] : memref<8x6x128xf32, #tpu.memory_space<vmem>>, vector<1x6x128xf32>
    %87 = vector.shape_cast %86 : vector<1x6x128xf32> to vector<6x128xf32>
    %c0_i32_45 = arith.constant 0 : i32
    %c0_i32_46 = arith.constant 0 : i32
    %c0_i32_47 = arith.constant 0 : i32
    %88 = tpu.memref_slice %arg2[%c1_i32_2, %c0_i32_45, %c0_i32_46, %c0_i32_47] : memref<5x8x6x128xf32, #tpu.memory_space<vmem>> -> memref<1x8x6x128xf32, #tpu.memory_space<vmem>>
    %89 = tpu.memref_squeeze %88 : memref<1x8x6x128xf32, #tpu.memory_space<vmem>> -> memref<8x6x128xf32, #tpu.memory_space<vmem>>
    %90 = arith.index_cast %c1_i32_39 : i32 to index
    %c0_48 = arith.constant 0 : index
    %c0_49 = arith.constant 0 : index
    %91 = vector.load %89[%90, %c0_48, %c0_49] : memref<8x6x128xf32, #tpu.memory_space<vmem>>, vector<1x6x128xf32>
    %92 = vector.shape_cast %91 : vector<1x6x128xf32> to vector<6x128xf32>
    %93 = arith.index_cast %c1_i32_39 : i32 to index
    %c0_50 = arith.constant 0 : index
    %c0_51 = arith.constant 0 : index
    %94 = vector.load %arg3[%93, %c0_50, %c0_51] : memref<8x2x128xf32, #tpu.memory_space<vmem>>, vector<1x2x128xf32>
    %95 = vector.shape_cast %94 : vector<1x2x128xf32> to vector<2x128xf32>
    %96 = vector.extract_strided_slice %95 {offsets = [0, 0], sizes = [1, 128], strides = [1, 1]} : vector<2x128xf32> to vector<1x128xf32>
    %97 = vector.extract_strided_slice %95 {offsets = [1, 0], sizes = [1, 128], strides = [1, 1]} : vector<2x128xf32> to vector<1x128xf32>
    %98 = vector.broadcast %96 : vector<1x128xf32> to vector<6x128xf32>
    %99 = arith.subf %87, %98 : vector<6x128xf32>
    %100 = vector.broadcast %97 : vector<1x128xf32> to vector<6x128xf32>
    %101 = arith.subf %92, %100 : vector<6x128xf32>
    %102 = arith.mulf %99, %99 : vector<6x128xf32>
    %103 = arith.mulf %101, %101 : vector<6x128xf32>
    %104 = arith.addf %102, %103 : vector<6x128xf32>
    %105 = math.sqrt %104 : vector<6x128xf32>
    %c0_i32_52 = arith.constant 0 : i32
    %c0_i32_53 = arith.constant 0 : i32
    %c0_i32_54 = arith.constant 0 : i32
    %106 = tpu.memref_slice %arg2[%c2_i32_3, %c0_i32_52, %c0_i32_53, %c0_i32_54] : memref<5x8x6x128xf32, #tpu.memory_space<vmem>> -> memref<1x8x6x128xf32, #tpu.memory_space<vmem>>
    %107 = tpu.memref_squeeze %106 : memref<1x8x6x128xf32, #tpu.memory_space<vmem>> -> memref<8x6x128xf32, #tpu.memory_space<vmem>>
    %108 = arith.index_cast %c1_i32_39 : i32 to index
    %c0_55 = arith.constant 0 : index
    %c0_56 = arith.constant 0 : index
    %109 = vector.load %107[%108, %c0_55, %c0_56] : memref<8x6x128xf32, #tpu.memory_space<vmem>>, vector<1x6x128xf32>
    %110 = vector.shape_cast %109 : vector<1x6x128xf32> to vector<6x128xf32>
    %cst_57 = arith.constant 2.000000e-01 : f32
    %111 = vector.broadcast %cst_57 : f32 to vector<6x128xf32>
    %112 = arith.addf %110, %111 : vector<6x128xf32>
    %c0_i32_58 = arith.constant 0 : i32
    %c0_i32_59 = arith.constant 0 : i32
    %c0_i32_60 = arith.constant 0 : i32
    %113 = tpu.memref_slice %arg2[%c4_i32, %c0_i32_58, %c0_i32_59, %c0_i32_60] : memref<5x8x6x128xf32, #tpu.memory_space<vmem>> -> memref<1x8x6x128xf32, #tpu.memory_space<vmem>>
    %114 = tpu.memref_squeeze %113 : memref<1x8x6x128xf32, #tpu.memory_space<vmem>> -> memref<8x6x128xf32, #tpu.memory_space<vmem>>
    %115 = arith.index_cast %c1_i32_39 : i32 to index
    %c0_61 = arith.constant 0 : index
    %c0_62 = arith.constant 0 : index
    %116 = vector.load %114[%115, %c0_61, %c0_62] : memref<8x6x128xf32, #tpu.memory_space<vmem>>, vector<1x6x128xf32>
    %117 = vector.shape_cast %116 : vector<1x6x128xf32> to vector<6x128xf32>
    %cst_63 = arith.constant 2.000000e-01 : f32
    %118 = vector.broadcast %cst_63 : f32 to vector<6x128xf32>
    %119 = arith.addf %117, %118 : vector<6x128xf32>
    %120 = math.rsqrt %112 : vector<6x128xf32>
    %c0_i32_64 = arith.constant 0 : i32
    %c0_i32_65 = arith.constant 0 : i32
    %c0_i32_66 = arith.constant 0 : i32
    %121 = tpu.memref_slice %arg2[%c3_i32, %c0_i32_64, %c0_i32_65, %c0_i32_66] : memref<5x8x6x128xf32, #tpu.memory_space<vmem>> -> memref<1x8x6x128xf32, #tpu.memory_space<vmem>>
    %122 = tpu.memref_squeeze %121 : memref<1x8x6x128xf32, #tpu.memory_space<vmem>> -> memref<8x6x128xf32, #tpu.memory_space<vmem>>
    %123 = arith.index_cast %c1_i32_39 : i32 to index
    %c0_67 = arith.constant 0 : index
    %c0_68 = arith.constant 0 : index
    %124 = vector.load %122[%123, %c0_67, %c0_68] : memref<8x6x128xf32, #tpu.memory_space<vmem>>, vector<1x6x128xf32>
    %125 = vector.shape_cast %124 : vector<1x6x128xf32> to vector<6x128xf32>
    %126 = arith.mulf %125, %120 : vector<6x128xf32>
    %127 = arith.mulf %126, %126 : vector<6x128xf32>
    %128 = arith.subf %119, %127 : vector<6x128xf32>
    %cst_69 = arith.constant 9.99999996E-13 : f32
    %129 = vector.broadcast %cst_69 : f32 to vector<6x128xf32>
    %130 = arith.maximumf %128, %129 : vector<6x128xf32>
    %131 = math.rsqrt %130 : vector<6x128xf32>
    %cst_70 = arith.constant 0.000000e+00 : f32
    %132 = vector.broadcast %cst_70 : f32 to vector<6x128xf32>
    %133 = arith.subf %132, %99 : vector<6x128xf32>
    %134 = arith.mulf %133, %120 : vector<6x128xf32>
    %cst_71 = arith.constant 0.000000e+00 : f32
    %135 = vector.broadcast %cst_71 : f32 to vector<6x128xf32>
    %136 = arith.subf %135, %101 : vector<6x128xf32>
    %137 = arith.mulf %126, %134 : vector<6x128xf32>
    %138 = arith.subf %136, %137 : vector<6x128xf32>
    %139 = arith.mulf %138, %131 : vector<6x128xf32>
    %140 = arith.mulf %134, %134 : vector<6x128xf32>
    %141 = arith.mulf %139, %139 : vector<6x128xf32>
    %142 = arith.addf %140, %141 : vector<6x128xf32>
    %cst_72 = arith.constant 5.000000e-01 : f32
    %143 = vector.broadcast %cst_72 : f32 to vector<6x128xf32>
    %144 = arith.mulf %143, %142 : vector<6x128xf32>
    %145 = arith.mulf %112, %130 : vector<6x128xf32>
    %146 = math.log %145 : vector<6x128xf32>
    %cst_73 = arith.constant 5.000000e-01 : f32
    %147 = vector.broadcast %cst_73 : f32 to vector<6x128xf32>
    %148 = arith.mulf %147, %146 : vector<6x128xf32>
    %149 = arith.addf %144, %148 : vector<6x128xf32>
    %cst_74 = arith.constant 1.83787704 : f32
    %150 = vector.broadcast %cst_74 : f32 to vector<6x128xf32>
    %151 = arith.addf %149, %150 : vector<6x128xf32>
    %152 = arith.addf %81, %105 : vector<6x128xf32>
    %153 = arith.addf %82, %151 : vector<6x128xf32>
    %c2_i32_75 = arith.constant 2 : i32
    %c0_i32_76 = arith.constant 0 : i32
    %c0_i32_77 = arith.constant 0 : i32
    %c0_i32_78 = arith.constant 0 : i32
    %154 = tpu.memref_slice %arg2[%c0_i32_1, %c0_i32_76, %c0_i32_77, %c0_i32_78] : memref<5x8x6x128xf32, #tpu.memory_space<vmem>> -> memref<1x8x6x128xf32, #tpu.memory_space<vmem>>
    %155 = tpu.memref_squeeze %154 : memref<1x8x6x128xf32, #tpu.memory_space<vmem>> -> memref<8x6x128xf32, #tpu.memory_space<vmem>>
    %156 = arith.index_cast %c2_i32_75 : i32 to index
    %c0_79 = arith.constant 0 : index
    %c0_80 = arith.constant 0 : index
    %157 = vector.load %155[%156, %c0_79, %c0_80] : memref<8x6x128xf32, #tpu.memory_space<vmem>>, vector<1x6x128xf32>
    %158 = vector.shape_cast %157 : vector<1x6x128xf32> to vector<6x128xf32>
    %c0_i32_81 = arith.constant 0 : i32
    %c0_i32_82 = arith.constant 0 : i32
    %c0_i32_83 = arith.constant 0 : i32
    %159 = tpu.memref_slice %arg2[%c1_i32_2, %c0_i32_81, %c0_i32_82, %c0_i32_83] : memref<5x8x6x128xf32, #tpu.memory_space<vmem>> -> memref<1x8x6x128xf32, #tpu.memory_space<vmem>>
    %160 = tpu.memref_squeeze %159 : memref<1x8x6x128xf32, #tpu.memory_space<vmem>> -> memref<8x6x128xf32, #tpu.memory_space<vmem>>
    %161 = arith.index_cast %c2_i32_75 : i32 to index
    %c0_84 = arith.constant 0 : index
    %c0_85 = arith.constant 0 : index
    %162 = vector.load %160[%161, %c0_84, %c0_85] : memref<8x6x128xf32, #tpu.memory_space<vmem>>, vector<1x6x128xf32>
    %163 = vector.shape_cast %162 : vector<1x6x128xf32> to vector<6x128xf32>
    %164 = arith.index_cast %c2_i32_75 : i32 to index
    %c0_86 = arith.constant 0 : index
    %c0_87 = arith.constant 0 : index
    %165 = vector.load %arg3[%164, %c0_86, %c0_87] : memref<8x2x128xf32, #tpu.memory_space<vmem>>, vector<1x2x128xf32>
    %166 = vector.shape_cast %165 : vector<1x2x128xf32> to vector<2x128xf32>
    %167 = vector.extract_strided_slice %166 {offsets = [0, 0], sizes = [1, 128], strides = [1, 1]} : vector<2x128xf32> to vector<1x128xf32>
    %168 = vector.extract_strided_slice %166 {offsets = [1, 0], sizes = [1, 128], strides = [1, 1]} : vector<2x128xf32> to vector<1x128xf32>
    %169 = vector.broadcast %167 : vector<1x128xf32> to vector<6x128xf32>
    %170 = arith.subf %158, %169 : vector<6x128xf32>
    %171 = vector.broadcast %168 : vector<1x128xf32> to vector<6x128xf32>
    %172 = arith.subf %163, %171 : vector<6x128xf32>
    %173 = arith.mulf %170, %170 : vector<6x128xf32>
    %174 = arith.mulf %172, %172 : vector<6x128xf32>
    %175 = arith.addf %173, %174 : vector<6x128xf32>
    %176 = math.sqrt %175 : vector<6x128xf32>
    %c0_i32_88 = arith.constant 0 : i32
    %c0_i32_89 = arith.constant 0 : i32
    %c0_i32_90 = arith.constant 0 : i32
    %177 = tpu.memref_slice %arg2[%c2_i32_3, %c0_i32_88, %c0_i32_89, %c0_i32_90] : memref<5x8x6x128xf32, #tpu.memory_space<vmem>> -> memref<1x8x6x128xf32, #tpu.memory_space<vmem>>
    %178 = tpu.memref_squeeze %177 : memref<1x8x6x128xf32, #tpu.memory_space<vmem>> -> memref<8x6x128xf32, #tpu.memory_space<vmem>>
    %179 = arith.index_cast %c2_i32_75 : i32 to index
    %c0_91 = arith.constant 0 : index
    %c0_92 = arith.constant 0 : index
    %180 = vector.load %178[%179, %c0_91, %c0_92] : memref<8x6x128xf32, #tpu.memory_space<vmem>>, vector<1x6x128xf32>
    %181 = vector.shape_cast %180 : vector<1x6x128xf32> to vector<6x128xf32>
    %cst_93 = arith.constant 2.000000e-01 : f32
    %182 = vector.broadcast %cst_93 : f32 to vector<6x128xf32>
    %183 = arith.addf %181, %182 : vector<6x128xf32>
    %c0_i32_94 = arith.constant 0 : i32
    %c0_i32_95 = arith.constant 0 : i32
    %c0_i32_96 = arith.constant 0 : i32
    %184 = tpu.memref_slice %arg2[%c4_i32, %c0_i32_94, %c0_i32_95, %c0_i32_96] : memref<5x8x6x128xf32, #tpu.memory_space<vmem>> -> memref<1x8x6x128xf32, #tpu.memory_space<vmem>>
    %185 = tpu.memref_squeeze %184 : memref<1x8x6x128xf32, #tpu.memory_space<vmem>> -> memref<8x6x128xf32, #tpu.memory_space<vmem>>
    %186 = arith.index_cast %c2_i32_75 : i32 to index
    %c0_97 = arith.constant 0 : index
    %c0_98 = arith.constant 0 : index
    %187 = vector.load %185[%186, %c0_97, %c0_98] : memref<8x6x128xf32, #tpu.memory_space<vmem>>, vector<1x6x128xf32>
    %188 = vector.shape_cast %187 : vector<1x6x128xf32> to vector<6x128xf32>
    %cst_99 = arith.constant 2.000000e-01 : f32
    %189 = vector.broadcast %cst_99 : f32 to vector<6x128xf32>
    %190 = arith.addf %188, %189 : vector<6x128xf32>
    %191 = math.rsqrt %183 : vector<6x128xf32>
    %c0_i32_100 = arith.constant 0 : i32
    %c0_i32_101 = arith.constant 0 : i32
    %c0_i32_102 = arith.constant 0 : i32
    %192 = tpu.memref_slice %arg2[%c3_i32, %c0_i32_100, %c0_i32_101, %c0_i32_102] : memref<5x8x6x128xf32, #tpu.memory_space<vmem>> -> memref<1x8x6x128xf32, #tpu.memory_space<vmem>>
    %193 = tpu.memref_squeeze %192 : memref<1x8x6x128xf32, #tpu.memory_space<vmem>> -> memref<8x6x128xf32, #tpu.memory_space<vmem>>
    %194 = arith.index_cast %c2_i32_75 : i32 to index
    %c0_103 = arith.constant 0 : index
    %c0_104 = arith.constant 0 : index
    %195 = vector.load %193[%194, %c0_103, %c0_104] : memref<8x6x128xf32, #tpu.memory_space<vmem>>, vector<1x6x128xf32>
    %196 = vector.shape_cast %195 : vector<1x6x128xf32> to vector<6x128xf32>
    %197 = arith.mulf %196, %191 : vector<6x128xf32>
    %198 = arith.mulf %197, %197 : vector<6x128xf32>
    %199 = arith.subf %190, %198 : vector<6x128xf32>
    %cst_105 = arith.constant 9.99999996E-13 : f32
    %200 = vector.broadcast %cst_105 : f32 to vector<6x128xf32>
    %201 = arith.maximumf %199, %200 : vector<6x128xf32>
    %202 = math.rsqrt %201 : vector<6x128xf32>
    %cst_106 = arith.constant 0.000000e+00 : f32
    %203 = vector.broadcast %cst_106 : f32 to vector<6x128xf32>
    %204 = arith.subf %203, %170 : vector<6x128xf32>
    %205 = arith.mulf %204, %191 : vector<6x128xf32>
    %cst_107 = arith.constant 0.000000e+00 : f32
    %206 = vector.broadcast %cst_107 : f32 to vector<6x128xf32>
    %207 = arith.subf %206, %172 : vector<6x128xf32>
    %208 = arith.mulf %197, %205 : vector<6x128xf32>
    %209 = arith.subf %207, %208 : vector<6x128xf32>
    %210 = arith.mulf %209, %202 : vector<6x128xf32>
    %211 = arith.mulf %205, %205 : vector<6x128xf32>
    %212 = arith.mulf %210, %210 : vector<6x128xf32>
    %213 = arith.addf %211, %212 : vector<6x128xf32>
    %cst_108 = arith.constant 5.000000e-01 : f32
    %214 = vector.broadcast %cst_108 : f32 to vector<6x128xf32>
    %215 = arith.mulf %214, %213 : vector<6x128xf32>
    %216 = arith.mulf %183, %201 : vector<6x128xf32>
    %217 = math.log %216 : vector<6x128xf32>
    %cst_109 = arith.constant 5.000000e-01 : f32
    %218 = vector.broadcast %cst_109 : f32 to vector<6x128xf32>
    %219 = arith.mulf %218, %217 : vector<6x128xf32>
    %220 = arith.addf %215, %219 : vector<6x128xf32>
    %cst_110 = arith.constant 1.83787704 : f32
    %221 = vector.broadcast %cst_110 : f32 to vector<6x128xf32>
    %222 = arith.addf %220, %221 : vector<6x128xf32>
    %223 = arith.addf %152, %176 : vector<6x128xf32>
    %224 = arith.addf %153, %222 : vector<6x128xf32>
    %c3_i32_111 = arith.constant 3 : i32
    %c0_i32_112 = arith.constant 0 : i32
    %c0_i32_113 = arith.constant 0 : i32
    %c0_i32_114 = arith.constant 0 : i32
    %225 = tpu.memref_slice %arg2[%c0_i32_1, %c0_i32_112, %c0_i32_113, %c0_i32_114] : memref<5x8x6x128xf32, #tpu.memory_space<vmem>> -> memref<1x8x6x128xf32, #tpu.memory_space<vmem>>
    %226 = tpu.memref_squeeze %225 : memref<1x8x6x128xf32, #tpu.memory_space<vmem>> -> memref<8x6x128xf32, #tpu.memory_space<vmem>>
    %227 = arith.index_cast %c3_i32_111 : i32 to index
    %c0_115 = arith.constant 0 : index
    %c0_116 = arith.constant 0 : index
    %228 = vector.load %226[%227, %c0_115, %c0_116] : memref<8x6x128xf32, #tpu.memory_space<vmem>>, vector<1x6x128xf32>
    %229 = vector.shape_cast %228 : vector<1x6x128xf32> to vector<6x128xf32>
    %c0_i32_117 = arith.constant 0 : i32
    %c0_i32_118 = arith.constant 0 : i32
    %c0_i32_119 = arith.constant 0 : i32
    %230 = tpu.memref_slice %arg2[%c1_i32_2, %c0_i32_117, %c0_i32_118, %c0_i32_119] : memref<5x8x6x128xf32, #tpu.memory_space<vmem>> -> memref<1x8x6x128xf32, #tpu.memory_space<vmem>>
    %231 = tpu.memref_squeeze %230 : memref<1x8x6x128xf32, #tpu.memory_space<vmem>> -> memref<8x6x128xf32, #tpu.memory_space<vmem>>
    %232 = arith.index_cast %c3_i32_111 : i32 to index
    %c0_120 = arith.constant 0 : index
    %c0_121 = arith.constant 0 : index
    %233 = vector.load %231[%232, %c0_120, %c0_121] : memref<8x6x128xf32, #tpu.memory_space<vmem>>, vector<1x6x128xf32>
    %234 = vector.shape_cast %233 : vector<1x6x128xf32> to vector<6x128xf32>
    %235 = arith.index_cast %c3_i32_111 : i32 to index
    %c0_122 = arith.constant 0 : index
    %c0_123 = arith.constant 0 : index
    %236 = vector.load %arg3[%235, %c0_122, %c0_123] : memref<8x2x128xf32, #tpu.memory_space<vmem>>, vector<1x2x128xf32>
    %237 = vector.shape_cast %236 : vector<1x2x128xf32> to vector<2x128xf32>
    %238 = vector.extract_strided_slice %237 {offsets = [0, 0], sizes = [1, 128], strides = [1, 1]} : vector<2x128xf32> to vector<1x128xf32>
    %239 = vector.extract_strided_slice %237 {offsets = [1, 0], sizes = [1, 128], strides = [1, 1]} : vector<2x128xf32> to vector<1x128xf32>
    %240 = vector.broadcast %238 : vector<1x128xf32> to vector<6x128xf32>
    %241 = arith.subf %229, %240 : vector<6x128xf32>
    %242 = vector.broadcast %239 : vector<1x128xf32> to vector<6x128xf32>
    %243 = arith.subf %234, %242 : vector<6x128xf32>
    %244 = arith.mulf %241, %241 : vector<6x128xf32>
    %245 = arith.mulf %243, %243 : vector<6x128xf32>
    %246 = arith.addf %244, %245 : vector<6x128xf32>
    %247 = math.sqrt %246 : vector<6x128xf32>
    %c0_i32_124 = arith.constant 0 : i32
    %c0_i32_125 = arith.constant 0 : i32
    %c0_i32_126 = arith.constant 0 : i32
    %248 = tpu.memref_slice %arg2[%c2_i32_3, %c0_i32_124, %c0_i32_125, %c0_i32_126] : memref<5x8x6x128xf32, #tpu.memory_space<vmem>> -> memref<1x8x6x128xf32, #tpu.memory_space<vmem>>
    %249 = tpu.memref_squeeze %248 : memref<1x8x6x128xf32, #tpu.memory_space<vmem>> -> memref<8x6x128xf32, #tpu.memory_space<vmem>>
    %250 = arith.index_cast %c3_i32_111 : i32 to index
    %c0_127 = arith.constant 0 : index
    %c0_128 = arith.constant 0 : index
    %251 = vector.load %249[%250, %c0_127, %c0_128] : memref<8x6x128xf32, #tpu.memory_space<vmem>>, vector<1x6x128xf32>
    %252 = vector.shape_cast %251 : vector<1x6x128xf32> to vector<6x128xf32>
    %cst_129 = arith.constant 2.000000e-01 : f32
    %253 = vector.broadcast %cst_129 : f32 to vector<6x128xf32>
    %254 = arith.addf %252, %253 : vector<6x128xf32>
    %c0_i32_130 = arith.constant 0 : i32
    %c0_i32_131 = arith.constant 0 : i32
    %c0_i32_132 = arith.constant 0 : i32
    %255 = tpu.memref_slice %arg2[%c4_i32, %c0_i32_130, %c0_i32_131, %c0_i32_132] : memref<5x8x6x128xf32, #tpu.memory_space<vmem>> -> memref<1x8x6x128xf32, #tpu.memory_space<vmem>>
    %256 = tpu.memref_squeeze %255 : memref<1x8x6x128xf32, #tpu.memory_space<vmem>> -> memref<8x6x128xf32, #tpu.memory_space<vmem>>
    %257 = arith.index_cast %c3_i32_111 : i32 to index
    %c0_133 = arith.constant 0 : index
    %c0_134 = arith.constant 0 : index
    %258 = vector.load %256[%257, %c0_133, %c0_134] : memref<8x6x128xf32, #tpu.memory_space<vmem>>, vector<1x6x128xf32>
    %259 = vector.shape_cast %258 : vector<1x6x128xf32> to vector<6x128xf32>
    %cst_135 = arith.constant 2.000000e-01 : f32
    %260 = vector.broadcast %cst_135 : f32 to vector<6x128xf32>
    %261 = arith.addf %259, %260 : vector<6x128xf32>
    %262 = math.rsqrt %254 : vector<6x128xf32>
    %c0_i32_136 = arith.constant 0 : i32
    %c0_i32_137 = arith.constant 0 : i32
    %c0_i32_138 = arith.constant 0 : i32
    %263 = tpu.memref_slice %arg2[%c3_i32, %c0_i32_136, %c0_i32_137, %c0_i32_138] : memref<5x8x6x128xf32, #tpu.memory_space<vmem>> -> memref<1x8x6x128xf32, #tpu.memory_space<vmem>>
    %264 = tpu.memref_squeeze %263 : memref<1x8x6x128xf32, #tpu.memory_space<vmem>> -> memref<8x6x128xf32, #tpu.memory_space<vmem>>
    %265 = arith.index_cast %c3_i32_111 : i32 to index
    %c0_139 = arith.constant 0 : index
    %c0_140 = arith.constant 0 : index
    %266 = vector.load %264[%265, %c0_139, %c0_140] : memref<8x6x128xf32, #tpu.memory_space<vmem>>, vector<1x6x128xf32>
    %267 = vector.shape_cast %266 : vector<1x6x128xf32> to vector<6x128xf32>
    %268 = arith.mulf %267, %262 : vector<6x128xf32>
    %269 = arith.mulf %268, %268 : vector<6x128xf32>
    %270 = arith.subf %261, %269 : vector<6x128xf32>
    %cst_141 = arith.constant 9.99999996E-13 : f32
    %271 = vector.broadcast %cst_141 : f32 to vector<6x128xf32>
    %272 = arith.maximumf %270, %271 : vector<6x128xf32>
    %273 = math.rsqrt %272 : vector<6x128xf32>
    %cst_142 = arith.constant 0.000000e+00 : f32
    %274 = vector.broadcast %cst_142 : f32 to vector<6x128xf32>
    %275 = arith.subf %274, %241 : vector<6x128xf32>
    %276 = arith.mulf %275, %262 : vector<6x128xf32>
    %cst_143 = arith.constant 0.000000e+00 : f32
    %277 = vector.broadcast %cst_143 : f32 to vector<6x128xf32>
    %278 = arith.subf %277, %243 : vector<6x128xf32>
    %279 = arith.mulf %268, %276 : vector<6x128xf32>
    %280 = arith.subf %278, %279 : vector<6x128xf32>
    %281 = arith.mulf %280, %273 : vector<6x128xf32>
    %282 = arith.mulf %276, %276 : vector<6x128xf32>
    %283 = arith.mulf %281, %281 : vector<6x128xf32>
    %284 = arith.addf %282, %283 : vector<6x128xf32>
    %cst_144 = arith.constant 5.000000e-01 : f32
    %285 = vector.broadcast %cst_144 : f32 to vector<6x128xf32>
    %286 = arith.mulf %285, %284 : vector<6x128xf32>
    %287 = arith.mulf %254, %272 : vector<6x128xf32>
    %288 = math.log %287 : vector<6x128xf32>
    %cst_145 = arith.constant 5.000000e-01 : f32
    %289 = vector.broadcast %cst_145 : f32 to vector<6x128xf32>
    %290 = arith.mulf %289, %288 : vector<6x128xf32>
    %291 = arith.addf %286, %290 : vector<6x128xf32>
    %cst_146 = arith.constant 1.83787704 : f32
    %292 = vector.broadcast %cst_146 : f32 to vector<6x128xf32>
    %293 = arith.addf %291, %292 : vector<6x128xf32>
    %294 = arith.addf %223, %247 : vector<6x128xf32>
    %295 = arith.addf %224, %293 : vector<6x128xf32>
    %c4_i32_147 = arith.constant 4 : i32
    %c0_i32_148 = arith.constant 0 : i32
    %c0_i32_149 = arith.constant 0 : i32
    %c0_i32_150 = arith.constant 0 : i32
    %296 = tpu.memref_slice %arg2[%c0_i32_1, %c0_i32_148, %c0_i32_149, %c0_i32_150] : memref<5x8x6x128xf32, #tpu.memory_space<vmem>> -> memref<1x8x6x128xf32, #tpu.memory_space<vmem>>
    %297 = tpu.memref_squeeze %296 : memref<1x8x6x128xf32, #tpu.memory_space<vmem>> -> memref<8x6x128xf32, #tpu.memory_space<vmem>>
    %298 = arith.index_cast %c4_i32_147 : i32 to index
    %c0_151 = arith.constant 0 : index
    %c0_152 = arith.constant 0 : index
    %299 = vector.load %297[%298, %c0_151, %c0_152] : memref<8x6x128xf32, #tpu.memory_space<vmem>>, vector<1x6x128xf32>
    %300 = vector.shape_cast %299 : vector<1x6x128xf32> to vector<6x128xf32>
    %c0_i32_153 = arith.constant 0 : i32
    %c0_i32_154 = arith.constant 0 : i32
    %c0_i32_155 = arith.constant 0 : i32
    %301 = tpu.memref_slice %arg2[%c1_i32_2, %c0_i32_153, %c0_i32_154, %c0_i32_155] : memref<5x8x6x128xf32, #tpu.memory_space<vmem>> -> memref<1x8x6x128xf32, #tpu.memory_space<vmem>>
    %302 = tpu.memref_squeeze %301 : memref<1x8x6x128xf32, #tpu.memory_space<vmem>> -> memref<8x6x128xf32, #tpu.memory_space<vmem>>
    %303 = arith.index_cast %c4_i32_147 : i32 to index
    %c0_156 = arith.constant 0 : index
    %c0_157 = arith.constant 0 : index
    %304 = vector.load %302[%303, %c0_156, %c0_157] : memref<8x6x128xf32, #tpu.memory_space<vmem>>, vector<1x6x128xf32>
    %305 = vector.shape_cast %304 : vector<1x6x128xf32> to vector<6x128xf32>
    %306 = arith.index_cast %c4_i32_147 : i32 to index
    %c0_158 = arith.constant 0 : index
    %c0_159 = arith.constant 0 : index
    %307 = vector.load %arg3[%306, %c0_158, %c0_159] : memref<8x2x128xf32, #tpu.memory_space<vmem>>, vector<1x2x128xf32>
    %308 = vector.shape_cast %307 : vector<1x2x128xf32> to vector<2x128xf32>
    %309 = vector.extract_strided_slice %308 {offsets = [0, 0], sizes = [1, 128], strides = [1, 1]} : vector<2x128xf32> to vector<1x128xf32>
    %310 = vector.extract_strided_slice %308 {offsets = [1, 0], sizes = [1, 128], strides = [1, 1]} : vector<2x128xf32> to vector<1x128xf32>
    %311 = vector.broadcast %309 : vector<1x128xf32> to vector<6x128xf32>
    %312 = arith.subf %300, %311 : vector<6x128xf32>
    %313 = vector.broadcast %310 : vector<1x128xf32> to vector<6x128xf32>
    %314 = arith.subf %305, %313 : vector<6x128xf32>
    %315 = arith.mulf %312, %312 : vector<6x128xf32>
    %316 = arith.mulf %314, %314 : vector<6x128xf32>
    %317 = arith.addf %315, %316 : vector<6x128xf32>
    %318 = math.sqrt %317 : vector<6x128xf32>
    %c0_i32_160 = arith.constant 0 : i32
    %c0_i32_161 = arith.constant 0 : i32
    %c0_i32_162 = arith.constant 0 : i32
    %319 = tpu.memref_slice %arg2[%c2_i32_3, %c0_i32_160, %c0_i32_161, %c0_i32_162] : memref<5x8x6x128xf32, #tpu.memory_space<vmem>> -> memref<1x8x6x128xf32, #tpu.memory_space<vmem>>
    %320 = tpu.memref_squeeze %319 : memref<1x8x6x128xf32, #tpu.memory_space<vmem>> -> memref<8x6x128xf32, #tpu.memory_space<vmem>>
    %321 = arith.index_cast %c4_i32_147 : i32 to index
    %c0_163 = arith.constant 0 : index
    %c0_164 = arith.constant 0 : index
    %322 = vector.load %320[%321, %c0_163, %c0_164] : memref<8x6x128xf32, #tpu.memory_space<vmem>>, vector<1x6x128xf32>
    %323 = vector.shape_cast %322 : vector<1x6x128xf32> to vector<6x128xf32>
    %cst_165 = arith.constant 2.000000e-01 : f32
    %324 = vector.broadcast %cst_165 : f32 to vector<6x128xf32>
    %325 = arith.addf %323, %324 : vector<6x128xf32>
    %c0_i32_166 = arith.constant 0 : i32
    %c0_i32_167 = arith.constant 0 : i32
    %c0_i32_168 = arith.constant 0 : i32
    %326 = tpu.memref_slice %arg2[%c4_i32, %c0_i32_166, %c0_i32_167, %c0_i32_168] : memref<5x8x6x128xf32, #tpu.memory_space<vmem>> -> memref<1x8x6x128xf32, #tpu.memory_space<vmem>>
    %327 = tpu.memref_squeeze %326 : memref<1x8x6x128xf32, #tpu.memory_space<vmem>> -> memref<8x6x128xf32, #tpu.memory_space<vmem>>
    %328 = arith.index_cast %c4_i32_147 : i32 to index
    %c0_169 = arith.constant 0 : index
    %c0_170 = arith.constant 0 : index
    %329 = vector.load %327[%328, %c0_169, %c0_170] : memref<8x6x128xf32, #tpu.memory_space<vmem>>, vector<1x6x128xf32>
    %330 = vector.shape_cast %329 : vector<1x6x128xf32> to vector<6x128xf32>
    %cst_171 = arith.constant 2.000000e-01 : f32
    %331 = vector.broadcast %cst_171 : f32 to vector<6x128xf32>
    %332 = arith.addf %330, %331 : vector<6x128xf32>
    %333 = math.rsqrt %325 : vector<6x128xf32>
    %c0_i32_172 = arith.constant 0 : i32
    %c0_i32_173 = arith.constant 0 : i32
    %c0_i32_174 = arith.constant 0 : i32
    %334 = tpu.memref_slice %arg2[%c3_i32, %c0_i32_172, %c0_i32_173, %c0_i32_174] : memref<5x8x6x128xf32, #tpu.memory_space<vmem>> -> memref<1x8x6x128xf32, #tpu.memory_space<vmem>>
    %335 = tpu.memref_squeeze %334 : memref<1x8x6x128xf32, #tpu.memory_space<vmem>> -> memref<8x6x128xf32, #tpu.memory_space<vmem>>
    %336 = arith.index_cast %c4_i32_147 : i32 to index
    %c0_175 = arith.constant 0 : index
    %c0_176 = arith.constant 0 : index
    %337 = vector.load %335[%336, %c0_175, %c0_176] : memref<8x6x128xf32, #tpu.memory_space<vmem>>, vector<1x6x128xf32>
    %338 = vector.shape_cast %337 : vector<1x6x128xf32> to vector<6x128xf32>
    %339 = arith.mulf %338, %333 : vector<6x128xf32>
    %340 = arith.mulf %339, %339 : vector<6x128xf32>
    %341 = arith.subf %332, %340 : vector<6x128xf32>
    %cst_177 = arith.constant 9.99999996E-13 : f32
    %342 = vector.broadcast %cst_177 : f32 to vector<6x128xf32>
    %343 = arith.maximumf %341, %342 : vector<6x128xf32>
    %344 = math.rsqrt %343 : vector<6x128xf32>
    %cst_178 = arith.constant 0.000000e+00 : f32
    %345 = vector.broadcast %cst_178 : f32 to vector<6x128xf32>
    %346 = arith.subf %345, %312 : vector<6x128xf32>
    %347 = arith.mulf %346, %333 : vector<6x128xf32>
    %cst_179 = arith.constant 0.000000e+00 : f32
    %348 = vector.broadcast %cst_179 : f32 to vector<6x128xf32>
    %349 = arith.subf %348, %314 : vector<6x128xf32>
    %350 = arith.mulf %339, %347 : vector<6x128xf32>
    %351 = arith.subf %349, %350 : vector<6x128xf32>
    %352 = arith.mulf %351, %344 : vector<6x128xf32>
    %353 = arith.mulf %347, %347 : vector<6x128xf32>
    %354 = arith.mulf %352, %352 : vector<6x128xf32>
    %355 = arith.addf %353, %354 : vector<6x128xf32>
    %cst_180 = arith.constant 5.000000e-01 : f32
    %356 = vector.broadcast %cst_180 : f32 to vector<6x128xf32>
    %357 = arith.mulf %356, %355 : vector<6x128xf32>
    %358 = arith.mulf %325, %343 : vector<6x128xf32>
    %359 = math.log %358 : vector<6x128xf32>
    %cst_181 = arith.constant 5.000000e-01 : f32
    %360 = vector.broadcast %cst_181 : f32 to vector<6x128xf32>
    %361 = arith.mulf %360, %359 : vector<6x128xf32>
    %362 = arith.addf %357, %361 : vector<6x128xf32>
    %cst_182 = arith.constant 1.83787704 : f32
    %363 = vector.broadcast %cst_182 : f32 to vector<6x128xf32>
    %364 = arith.addf %362, %363 : vector<6x128xf32>
    %365 = arith.addf %294, %318 : vector<6x128xf32>
    %366 = arith.addf %295, %364 : vector<6x128xf32>
    %c5_i32 = arith.constant 5 : i32
    %c0_i32_183 = arith.constant 0 : i32
    %c0_i32_184 = arith.constant 0 : i32
    %c0_i32_185 = arith.constant 0 : i32
    %367 = tpu.memref_slice %arg2[%c0_i32_1, %c0_i32_183, %c0_i32_184, %c0_i32_185] : memref<5x8x6x128xf32, #tpu.memory_space<vmem>> -> memref<1x8x6x128xf32, #tpu.memory_space<vmem>>
    %368 = tpu.memref_squeeze %367 : memref<1x8x6x128xf32, #tpu.memory_space<vmem>> -> memref<8x6x128xf32, #tpu.memory_space<vmem>>
    %369 = arith.index_cast %c5_i32 : i32 to index
    %c0_186 = arith.constant 0 : index
    %c0_187 = arith.constant 0 : index
    %370 = vector.load %368[%369, %c0_186, %c0_187] : memref<8x6x128xf32, #tpu.memory_space<vmem>>, vector<1x6x128xf32>
    %371 = vector.shape_cast %370 : vector<1x6x128xf32> to vector<6x128xf32>
    %c0_i32_188 = arith.constant 0 : i32
    %c0_i32_189 = arith.constant 0 : i32
    %c0_i32_190 = arith.constant 0 : i32
    %372 = tpu.memref_slice %arg2[%c1_i32_2, %c0_i32_188, %c0_i32_189, %c0_i32_190] : memref<5x8x6x128xf32, #tpu.memory_space<vmem>> -> memref<1x8x6x128xf32, #tpu.memory_space<vmem>>
    %373 = tpu.memref_squeeze %372 : memref<1x8x6x128xf32, #tpu.memory_space<vmem>> -> memref<8x6x128xf32, #tpu.memory_space<vmem>>
    %374 = arith.index_cast %c5_i32 : i32 to index
    %c0_191 = arith.constant 0 : index
    %c0_192 = arith.constant 0 : index
    %375 = vector.load %373[%374, %c0_191, %c0_192] : memref<8x6x128xf32, #tpu.memory_space<vmem>>, vector<1x6x128xf32>
    %376 = vector.shape_cast %375 : vector<1x6x128xf32> to vector<6x128xf32>
    %377 = arith.index_cast %c5_i32 : i32 to index
    %c0_193 = arith.constant 0 : index
    %c0_194 = arith.constant 0 : index
    %378 = vector.load %arg3[%377, %c0_193, %c0_194] : memref<8x2x128xf32, #tpu.memory_space<vmem>>, vector<1x2x128xf32>
    %379 = vector.shape_cast %378 : vector<1x2x128xf32> to vector<2x128xf32>
    %380 = vector.extract_strided_slice %379 {offsets = [0, 0], sizes = [1, 128], strides = [1, 1]} : vector<2x128xf32> to vector<1x128xf32>
    %381 = vector.extract_strided_slice %379 {offsets = [1, 0], sizes = [1, 128], strides = [1, 1]} : vector<2x128xf32> to vector<1x128xf32>
    %382 = vector.broadcast %380 : vector<1x128xf32> to vector<6x128xf32>
    %383 = arith.subf %371, %382 : vector<6x128xf32>
    %384 = vector.broadcast %381 : vector<1x128xf32> to vector<6x128xf32>
    %385 = arith.subf %376, %384 : vector<6x128xf32>
    %386 = arith.mulf %383, %383 : vector<6x128xf32>
    %387 = arith.mulf %385, %385 : vector<6x128xf32>
    %388 = arith.addf %386, %387 : vector<6x128xf32>
    %389 = math.sqrt %388 : vector<6x128xf32>
    %c0_i32_195 = arith.constant 0 : i32
    %c0_i32_196 = arith.constant 0 : i32
    %c0_i32_197 = arith.constant 0 : i32
    %390 = tpu.memref_slice %arg2[%c2_i32_3, %c0_i32_195, %c0_i32_196, %c0_i32_197] : memref<5x8x6x128xf32, #tpu.memory_space<vmem>> -> memref<1x8x6x128xf32, #tpu.memory_space<vmem>>
    %391 = tpu.memref_squeeze %390 : memref<1x8x6x128xf32, #tpu.memory_space<vmem>> -> memref<8x6x128xf32, #tpu.memory_space<vmem>>
    %392 = arith.index_cast %c5_i32 : i32 to index
    %c0_198 = arith.constant 0 : index
    %c0_199 = arith.constant 0 : index
    %393 = vector.load %391[%392, %c0_198, %c0_199] : memref<8x6x128xf32, #tpu.memory_space<vmem>>, vector<1x6x128xf32>
    %394 = vector.shape_cast %393 : vector<1x6x128xf32> to vector<6x128xf32>
    %cst_200 = arith.constant 2.000000e-01 : f32
    %395 = vector.broadcast %cst_200 : f32 to vector<6x128xf32>
    %396 = arith.addf %394, %395 : vector<6x128xf32>
    %c0_i32_201 = arith.constant 0 : i32
    %c0_i32_202 = arith.constant 0 : i32
    %c0_i32_203 = arith.constant 0 : i32
    %397 = tpu.memref_slice %arg2[%c4_i32, %c0_i32_201, %c0_i32_202, %c0_i32_203] : memref<5x8x6x128xf32, #tpu.memory_space<vmem>> -> memref<1x8x6x128xf32, #tpu.memory_space<vmem>>
    %398 = tpu.memref_squeeze %397 : memref<1x8x6x128xf32, #tpu.memory_space<vmem>> -> memref<8x6x128xf32, #tpu.memory_space<vmem>>
    %399 = arith.index_cast %c5_i32 : i32 to index
    %c0_204 = arith.constant 0 : index
    %c0_205 = arith.constant 0 : index
    %400 = vector.load %398[%399, %c0_204, %c0_205] : memref<8x6x128xf32, #tpu.memory_space<vmem>>, vector<1x6x128xf32>
    %401 = vector.shape_cast %400 : vector<1x6x128xf32> to vector<6x128xf32>
    %cst_206 = arith.constant 2.000000e-01 : f32
    %402 = vector.broadcast %cst_206 : f32 to vector<6x128xf32>
    %403 = arith.addf %401, %402 : vector<6x128xf32>
    %404 = math.rsqrt %396 : vector<6x128xf32>
    %c0_i32_207 = arith.constant 0 : i32
    %c0_i32_208 = arith.constant 0 : i32
    %c0_i32_209 = arith.constant 0 : i32
    %405 = tpu.memref_slice %arg2[%c3_i32, %c0_i32_207, %c0_i32_208, %c0_i32_209] : memref<5x8x6x128xf32, #tpu.memory_space<vmem>> -> memref<1x8x6x128xf32, #tpu.memory_space<vmem>>
    %406 = tpu.memref_squeeze %405 : memref<1x8x6x128xf32, #tpu.memory_space<vmem>> -> memref<8x6x128xf32, #tpu.memory_space<vmem>>
    %407 = arith.index_cast %c5_i32 : i32 to index
    %c0_210 = arith.constant 0 : index
    %c0_211 = arith.constant 0 : index
    %408 = vector.load %406[%407, %c0_210, %c0_211] : memref<8x6x128xf32, #tpu.memory_space<vmem>>, vector<1x6x128xf32>
    %409 = vector.shape_cast %408 : vector<1x6x128xf32> to vector<6x128xf32>
    %410 = arith.mulf %409, %404 : vector<6x128xf32>
    %411 = arith.mulf %410, %410 : vector<6x128xf32>
    %412 = arith.subf %403, %411 : vector<6x128xf32>
    %cst_212 = arith.constant 9.99999996E-13 : f32
    %413 = vector.broadcast %cst_212 : f32 to vector<6x128xf32>
    %414 = arith.maximumf %412, %413 : vector<6x128xf32>
    %415 = math.rsqrt %414 : vector<6x128xf32>
    %cst_213 = arith.constant 0.000000e+00 : f32
    %416 = vector.broadcast %cst_213 : f32 to vector<6x128xf32>
    %417 = arith.subf %416, %383 : vector<6x128xf32>
    %418 = arith.mulf %417, %404 : vector<6x128xf32>
    %cst_214 = arith.constant 0.000000e+00 : f32
    %419 = vector.broadcast %cst_214 : f32 to vector<6x128xf32>
    %420 = arith.subf %419, %385 : vector<6x128xf32>
    %421 = arith.mulf %410, %418 : vector<6x128xf32>
    %422 = arith.subf %420, %421 : vector<6x128xf32>
    %423 = arith.mulf %422, %415 : vector<6x128xf32>
    %424 = arith.mulf %418, %418 : vector<6x128xf32>
    %425 = arith.mulf %423, %423 : vector<6x128xf32>
    %426 = arith.addf %424, %425 : vector<6x128xf32>
    %cst_215 = arith.constant 5.000000e-01 : f32
    %427 = vector.broadcast %cst_215 : f32 to vector<6x128xf32>
    %428 = arith.mulf %427, %426 : vector<6x128xf32>
    %429 = arith.mulf %396, %414 : vector<6x128xf32>
    %430 = math.log %429 : vector<6x128xf32>
    %cst_216 = arith.constant 5.000000e-01 : f32
    %431 = vector.broadcast %cst_216 : f32 to vector<6x128xf32>
    %432 = arith.mulf %431, %430 : vector<6x128xf32>
    %433 = arith.addf %428, %432 : vector<6x128xf32>
    %cst_217 = arith.constant 1.83787704 : f32
    %434 = vector.broadcast %cst_217 : f32 to vector<6x128xf32>
    %435 = arith.addf %433, %434 : vector<6x128xf32>
    %436 = arith.addf %365, %389 : vector<6x128xf32>
    %437 = arith.addf %366, %435 : vector<6x128xf32>
    %c6_i32 = arith.constant 6 : i32
    %c0_i32_218 = arith.constant 0 : i32
    %c0_i32_219 = arith.constant 0 : i32
    %c0_i32_220 = arith.constant 0 : i32
    %438 = tpu.memref_slice %arg2[%c0_i32_1, %c0_i32_218, %c0_i32_219, %c0_i32_220] : memref<5x8x6x128xf32, #tpu.memory_space<vmem>> -> memref<1x8x6x128xf32, #tpu.memory_space<vmem>>
    %439 = tpu.memref_squeeze %438 : memref<1x8x6x128xf32, #tpu.memory_space<vmem>> -> memref<8x6x128xf32, #tpu.memory_space<vmem>>
    %440 = arith.index_cast %c6_i32 : i32 to index
    %c0_221 = arith.constant 0 : index
    %c0_222 = arith.constant 0 : index
    %441 = vector.load %439[%440, %c0_221, %c0_222] : memref<8x6x128xf32, #tpu.memory_space<vmem>>, vector<1x6x128xf32>
    %442 = vector.shape_cast %441 : vector<1x6x128xf32> to vector<6x128xf32>
    %c0_i32_223 = arith.constant 0 : i32
    %c0_i32_224 = arith.constant 0 : i32
    %c0_i32_225 = arith.constant 0 : i32
    %443 = tpu.memref_slice %arg2[%c1_i32_2, %c0_i32_223, %c0_i32_224, %c0_i32_225] : memref<5x8x6x128xf32, #tpu.memory_space<vmem>> -> memref<1x8x6x128xf32, #tpu.memory_space<vmem>>
    %444 = tpu.memref_squeeze %443 : memref<1x8x6x128xf32, #tpu.memory_space<vmem>> -> memref<8x6x128xf32, #tpu.memory_space<vmem>>
    %445 = arith.index_cast %c6_i32 : i32 to index
    %c0_226 = arith.constant 0 : index
    %c0_227 = arith.constant 0 : index
    %446 = vector.load %444[%445, %c0_226, %c0_227] : memref<8x6x128xf32, #tpu.memory_space<vmem>>, vector<1x6x128xf32>
    %447 = vector.shape_cast %446 : vector<1x6x128xf32> to vector<6x128xf32>
    %448 = arith.index_cast %c6_i32 : i32 to index
    %c0_228 = arith.constant 0 : index
    %c0_229 = arith.constant 0 : index
    %449 = vector.load %arg3[%448, %c0_228, %c0_229] : memref<8x2x128xf32, #tpu.memory_space<vmem>>, vector<1x2x128xf32>
    %450 = vector.shape_cast %449 : vector<1x2x128xf32> to vector<2x128xf32>
    %451 = vector.extract_strided_slice %450 {offsets = [0, 0], sizes = [1, 128], strides = [1, 1]} : vector<2x128xf32> to vector<1x128xf32>
    %452 = vector.extract_strided_slice %450 {offsets = [1, 0], sizes = [1, 128], strides = [1, 1]} : vector<2x128xf32> to vector<1x128xf32>
    %453 = vector.broadcast %451 : vector<1x128xf32> to vector<6x128xf32>
    %454 = arith.subf %442, %453 : vector<6x128xf32>
    %455 = vector.broadcast %452 : vector<1x128xf32> to vector<6x128xf32>
    %456 = arith.subf %447, %455 : vector<6x128xf32>
    %457 = arith.mulf %454, %454 : vector<6x128xf32>
    %458 = arith.mulf %456, %456 : vector<6x128xf32>
    %459 = arith.addf %457, %458 : vector<6x128xf32>
    %460 = math.sqrt %459 : vector<6x128xf32>
    %c0_i32_230 = arith.constant 0 : i32
    %c0_i32_231 = arith.constant 0 : i32
    %c0_i32_232 = arith.constant 0 : i32
    %461 = tpu.memref_slice %arg2[%c2_i32_3, %c0_i32_230, %c0_i32_231, %c0_i32_232] : memref<5x8x6x128xf32, #tpu.memory_space<vmem>> -> memref<1x8x6x128xf32, #tpu.memory_space<vmem>>
    %462 = tpu.memref_squeeze %461 : memref<1x8x6x128xf32, #tpu.memory_space<vmem>> -> memref<8x6x128xf32, #tpu.memory_space<vmem>>
    %463 = arith.index_cast %c6_i32 : i32 to index
    %c0_233 = arith.constant 0 : index
    %c0_234 = arith.constant 0 : index
    %464 = vector.load %462[%463, %c0_233, %c0_234] : memref<8x6x128xf32, #tpu.memory_space<vmem>>, vector<1x6x128xf32>
    %465 = vector.shape_cast %464 : vector<1x6x128xf32> to vector<6x128xf32>
    %cst_235 = arith.constant 2.000000e-01 : f32
    %466 = vector.broadcast %cst_235 : f32 to vector<6x128xf32>
    %467 = arith.addf %465, %466 : vector<6x128xf32>
    %c0_i32_236 = arith.constant 0 : i32
    %c0_i32_237 = arith.constant 0 : i32
    %c0_i32_238 = arith.constant 0 : i32
    %468 = tpu.memref_slice %arg2[%c4_i32, %c0_i32_236, %c0_i32_237, %c0_i32_238] : memref<5x8x6x128xf32, #tpu.memory_space<vmem>> -> memref<1x8x6x128xf32, #tpu.memory_space<vmem>>
    %469 = tpu.memref_squeeze %468 : memref<1x8x6x128xf32, #tpu.memory_space<vmem>> -> memref<8x6x128xf32, #tpu.memory_space<vmem>>
    %470 = arith.index_cast %c6_i32 : i32 to index
    %c0_239 = arith.constant 0 : index
    %c0_240 = arith.constant 0 : index
    %471 = vector.load %469[%470, %c0_239, %c0_240] : memref<8x6x128xf32, #tpu.memory_space<vmem>>, vector<1x6x128xf32>
    %472 = vector.shape_cast %471 : vector<1x6x128xf32> to vector<6x128xf32>
    %cst_241 = arith.constant 2.000000e-01 : f32
    %473 = vector.broadcast %cst_241 : f32 to vector<6x128xf32>
    %474 = arith.addf %472, %473 : vector<6x128xf32>
    %475 = math.rsqrt %467 : vector<6x128xf32>
    %c0_i32_242 = arith.constant 0 : i32
    %c0_i32_243 = arith.constant 0 : i32
    %c0_i32_244 = arith.constant 0 : i32
    %476 = tpu.memref_slice %arg2[%c3_i32, %c0_i32_242, %c0_i32_243, %c0_i32_244] : memref<5x8x6x128xf32, #tpu.memory_space<vmem>> -> memref<1x8x6x128xf32, #tpu.memory_space<vmem>>
    %477 = tpu.memref_squeeze %476 : memref<1x8x6x128xf32, #tpu.memory_space<vmem>> -> memref<8x6x128xf32, #tpu.memory_space<vmem>>
    %478 = arith.index_cast %c6_i32 : i32 to index
    %c0_245 = arith.constant 0 : index
    %c0_246 = arith.constant 0 : index
    %479 = vector.load %477[%478, %c0_245, %c0_246] : memref<8x6x128xf32, #tpu.memory_space<vmem>>, vector<1x6x128xf32>
    %480 = vector.shape_cast %479 : vector<1x6x128xf32> to vector<6x128xf32>
    %481 = arith.mulf %480, %475 : vector<6x128xf32>
    %482 = arith.mulf %481, %481 : vector<6x128xf32>
    %483 = arith.subf %474, %482 : vector<6x128xf32>
    %cst_247 = arith.constant 9.99999996E-13 : f32
    %484 = vector.broadcast %cst_247 : f32 to vector<6x128xf32>
    %485 = arith.maximumf %483, %484 : vector<6x128xf32>
    %486 = math.rsqrt %485 : vector<6x128xf32>
    %cst_248 = arith.constant 0.000000e+00 : f32
    %487 = vector.broadcast %cst_248 : f32 to vector<6x128xf32>
    %488 = arith.subf %487, %454 : vector<6x128xf32>
    %489 = arith.mulf %488, %475 : vector<6x128xf32>
    %cst_249 = arith.constant 0.000000e+00 : f32
    %490 = vector.broadcast %cst_249 : f32 to vector<6x128xf32>
    %491 = arith.subf %490, %456 : vector<6x128xf32>
    %492 = arith.mulf %481, %489 : vector<6x128xf32>
    %493 = arith.subf %491, %492 : vector<6x128xf32>
    %494 = arith.mulf %493, %486 : vector<6x128xf32>
    %495 = arith.mulf %489, %489 : vector<6x128xf32>
    %496 = arith.mulf %494, %494 : vector<6x128xf32>
    %497 = arith.addf %495, %496 : vector<6x128xf32>
    %cst_250 = arith.constant 5.000000e-01 : f32
    %498 = vector.broadcast %cst_250 : f32 to vector<6x128xf32>
    %499 = arith.mulf %498, %497 : vector<6x128xf32>
    %500 = arith.mulf %467, %485 : vector<6x128xf32>
    %501 = math.log %500 : vector<6x128xf32>
    %cst_251 = arith.constant 5.000000e-01 : f32
    %502 = vector.broadcast %cst_251 : f32 to vector<6x128xf32>
    %503 = arith.mulf %502, %501 : vector<6x128xf32>
    %504 = arith.addf %499, %503 : vector<6x128xf32>
    %cst_252 = arith.constant 1.83787704 : f32
    %505 = vector.broadcast %cst_252 : f32 to vector<6x128xf32>
    %506 = arith.addf %504, %505 : vector<6x128xf32>
    %507 = arith.addf %436, %460 : vector<6x128xf32>
    %508 = arith.addf %437, %506 : vector<6x128xf32>
    %c7_i32 = arith.constant 7 : i32
    %c0_i32_253 = arith.constant 0 : i32
    %c0_i32_254 = arith.constant 0 : i32
    %c0_i32_255 = arith.constant 0 : i32
    %509 = tpu.memref_slice %arg2[%c0_i32_1, %c0_i32_253, %c0_i32_254, %c0_i32_255] : memref<5x8x6x128xf32, #tpu.memory_space<vmem>> -> memref<1x8x6x128xf32, #tpu.memory_space<vmem>>
    %510 = tpu.memref_squeeze %509 : memref<1x8x6x128xf32, #tpu.memory_space<vmem>> -> memref<8x6x128xf32, #tpu.memory_space<vmem>>
    %511 = arith.index_cast %c7_i32 : i32 to index
    %c0_256 = arith.constant 0 : index
    %c0_257 = arith.constant 0 : index
    %512 = vector.load %510[%511, %c0_256, %c0_257] : memref<8x6x128xf32, #tpu.memory_space<vmem>>, vector<1x6x128xf32>
    %513 = vector.shape_cast %512 : vector<1x6x128xf32> to vector<6x128xf32>
    %c0_i32_258 = arith.constant 0 : i32
    %c0_i32_259 = arith.constant 0 : i32
    %c0_i32_260 = arith.constant 0 : i32
    %514 = tpu.memref_slice %arg2[%c1_i32_2, %c0_i32_258, %c0_i32_259, %c0_i32_260] : memref<5x8x6x128xf32, #tpu.memory_space<vmem>> -> memref<1x8x6x128xf32, #tpu.memory_space<vmem>>
    %515 = tpu.memref_squeeze %514 : memref<1x8x6x128xf32, #tpu.memory_space<vmem>> -> memref<8x6x128xf32, #tpu.memory_space<vmem>>
    %516 = arith.index_cast %c7_i32 : i32 to index
    %c0_261 = arith.constant 0 : index
    %c0_262 = arith.constant 0 : index
    %517 = vector.load %515[%516, %c0_261, %c0_262] : memref<8x6x128xf32, #tpu.memory_space<vmem>>, vector<1x6x128xf32>
    %518 = vector.shape_cast %517 : vector<1x6x128xf32> to vector<6x128xf32>
    %519 = arith.index_cast %c7_i32 : i32 to index
    %c0_263 = arith.constant 0 : index
    %c0_264 = arith.constant 0 : index
    %520 = vector.load %arg3[%519, %c0_263, %c0_264] : memref<8x2x128xf32, #tpu.memory_space<vmem>>, vector<1x2x128xf32>
    %521 = vector.shape_cast %520 : vector<1x2x128xf32> to vector<2x128xf32>
    %522 = vector.extract_strided_slice %521 {offsets = [0, 0], sizes = [1, 128], strides = [1, 1]} : vector<2x128xf32> to vector<1x128xf32>
    %523 = vector.extract_strided_slice %521 {offsets = [1, 0], sizes = [1, 128], strides = [1, 1]} : vector<2x128xf32> to vector<1x128xf32>
    %524 = vector.broadcast %522 : vector<1x128xf32> to vector<6x128xf32>
    %525 = arith.subf %513, %524 : vector<6x128xf32>
    %526 = vector.broadcast %523 : vector<1x128xf32> to vector<6x128xf32>
    %527 = arith.subf %518, %526 : vector<6x128xf32>
    %528 = arith.mulf %525, %525 : vector<6x128xf32>
    %529 = arith.mulf %527, %527 : vector<6x128xf32>
    %530 = arith.addf %528, %529 : vector<6x128xf32>
    %531 = math.sqrt %530 : vector<6x128xf32>
    %c0_i32_265 = arith.constant 0 : i32
    %c0_i32_266 = arith.constant 0 : i32
    %c0_i32_267 = arith.constant 0 : i32
    %532 = tpu.memref_slice %arg2[%c2_i32_3, %c0_i32_265, %c0_i32_266, %c0_i32_267] : memref<5x8x6x128xf32, #tpu.memory_space<vmem>> -> memref<1x8x6x128xf32, #tpu.memory_space<vmem>>
    %533 = tpu.memref_squeeze %532 : memref<1x8x6x128xf32, #tpu.memory_space<vmem>> -> memref<8x6x128xf32, #tpu.memory_space<vmem>>
    %534 = arith.index_cast %c7_i32 : i32 to index
    %c0_268 = arith.constant 0 : index
    %c0_269 = arith.constant 0 : index
    %535 = vector.load %533[%534, %c0_268, %c0_269] : memref<8x6x128xf32, #tpu.memory_space<vmem>>, vector<1x6x128xf32>
    %536 = vector.shape_cast %535 : vector<1x6x128xf32> to vector<6x128xf32>
    %cst_270 = arith.constant 2.000000e-01 : f32
    %537 = vector.broadcast %cst_270 : f32 to vector<6x128xf32>
    %538 = arith.addf %536, %537 : vector<6x128xf32>
    %c0_i32_271 = arith.constant 0 : i32
    %c0_i32_272 = arith.constant 0 : i32
    %c0_i32_273 = arith.constant 0 : i32
    %539 = tpu.memref_slice %arg2[%c4_i32, %c0_i32_271, %c0_i32_272, %c0_i32_273] : memref<5x8x6x128xf32, #tpu.memory_space<vmem>> -> memref<1x8x6x128xf32, #tpu.memory_space<vmem>>
    %540 = tpu.memref_squeeze %539 : memref<1x8x6x128xf32, #tpu.memory_space<vmem>> -> memref<8x6x128xf32, #tpu.memory_space<vmem>>
    %541 = arith.index_cast %c7_i32 : i32 to index
    %c0_274 = arith.constant 0 : index
    %c0_275 = arith.constant 0 : index
    %542 = vector.load %540[%541, %c0_274, %c0_275] : memref<8x6x128xf32, #tpu.memory_space<vmem>>, vector<1x6x128xf32>
    %543 = vector.shape_cast %542 : vector<1x6x128xf32> to vector<6x128xf32>
    %cst_276 = arith.constant 2.000000e-01 : f32
    %544 = vector.broadcast %cst_276 : f32 to vector<6x128xf32>
    %545 = arith.addf %543, %544 : vector<6x128xf32>
    %546 = math.rsqrt %538 : vector<6x128xf32>
    %c0_i32_277 = arith.constant 0 : i32
    %c0_i32_278 = arith.constant 0 : i32
    %c0_i32_279 = arith.constant 0 : i32
    %547 = tpu.memref_slice %arg2[%c3_i32, %c0_i32_277, %c0_i32_278, %c0_i32_279] : memref<5x8x6x128xf32, #tpu.memory_space<vmem>> -> memref<1x8x6x128xf32, #tpu.memory_space<vmem>>
    %548 = tpu.memref_squeeze %547 : memref<1x8x6x128xf32, #tpu.memory_space<vmem>> -> memref<8x6x128xf32, #tpu.memory_space<vmem>>
    %549 = arith.index_cast %c7_i32 : i32 to index
    %c0_280 = arith.constant 0 : index
    %c0_281 = arith.constant 0 : index
    %550 = vector.load %548[%549, %c0_280, %c0_281] : memref<8x6x128xf32, #tpu.memory_space<vmem>>, vector<1x6x128xf32>
    %551 = vector.shape_cast %550 : vector<1x6x128xf32> to vector<6x128xf32>
    %552 = arith.mulf %551, %546 : vector<6x128xf32>
    %553 = arith.mulf %552, %552 : vector<6x128xf32>
    %554 = arith.subf %545, %553 : vector<6x128xf32>
    %cst_282 = arith.constant 9.99999996E-13 : f32
    %555 = vector.broadcast %cst_282 : f32 to vector<6x128xf32>
    %556 = arith.maximumf %554, %555 : vector<6x128xf32>
    %557 = math.rsqrt %556 : vector<6x128xf32>
    %cst_283 = arith.constant 0.000000e+00 : f32
    %558 = vector.broadcast %cst_283 : f32 to vector<6x128xf32>
    %559 = arith.subf %558, %525 : vector<6x128xf32>
    %560 = arith.mulf %559, %546 : vector<6x128xf32>
    %cst_284 = arith.constant 0.000000e+00 : f32
    %561 = vector.broadcast %cst_284 : f32 to vector<6x128xf32>
    %562 = arith.subf %561, %527 : vector<6x128xf32>
    %563 = arith.mulf %552, %560 : vector<6x128xf32>
    %564 = arith.subf %562, %563 : vector<6x128xf32>
    %565 = arith.mulf %564, %557 : vector<6x128xf32>
    %566 = arith.mulf %560, %560 : vector<6x128xf32>
    %567 = arith.mulf %565, %565 : vector<6x128xf32>
    %568 = arith.addf %566, %567 : vector<6x128xf32>
    %cst_285 = arith.constant 5.000000e-01 : f32
    %569 = vector.broadcast %cst_285 : f32 to vector<6x128xf32>
    %570 = arith.mulf %569, %568 : vector<6x128xf32>
    %571 = arith.mulf %538, %556 : vector<6x128xf32>
    %572 = math.log %571 : vector<6x128xf32>
    %cst_286 = arith.constant 5.000000e-01 : f32
    %573 = vector.broadcast %cst_286 : f32 to vector<6x128xf32>
    %574 = arith.mulf %573, %572 : vector<6x128xf32>
    %575 = arith.addf %570, %574 : vector<6x128xf32>
    %cst_287 = arith.constant 1.83787704 : f32
    %576 = vector.broadcast %cst_287 : f32 to vector<6x128xf32>
    %577 = arith.addf %575, %576 : vector<6x128xf32>
    %578 = arith.addf %507, %531 : vector<6x128xf32>
    %579 = arith.addf %508, %577 : vector<6x128xf32>
    %c8_i32 = arith.constant 8 : i32
    %c0_i32_288 = arith.constant 0 : i32
    %c0_i32_289 = arith.constant 0 : i32
    %c0_i32_290 = arith.constant 0 : i32
    %c0_i32_291 = arith.constant 0 : i32
    %580 = tpu.memref_slice %arg2[%c0_i32_288, %c0_i32_289, %c0_i32_290, %c0_i32_291] : memref<5x8x6x128xf32, #tpu.memory_space<vmem>> -> memref<1x8x6x128xf32, #tpu.memory_space<vmem>>
    %581 = tpu.memref_squeeze %580 : memref<1x8x6x128xf32, #tpu.memory_space<vmem>> -> memref<8x6x128xf32, #tpu.memory_space<vmem>>
    %c7 = arith.constant 7 : index
    %c0_292 = arith.constant 0 : index
    %c0_293 = arith.constant 0 : index
    %582 = vector.load %581[%c7, %c0_292, %c0_293] : memref<8x6x128xf32, #tpu.memory_space<vmem>>, vector<1x6x128xf32>
    %583 = vector.shape_cast %582 : vector<1x6x128xf32> to vector<6x128xf32>
    %c1_i32_294 = arith.constant 1 : i32
    %c0_i32_295 = arith.constant 0 : i32
    %c0_i32_296 = arith.constant 0 : i32
    %c0_i32_297 = arith.constant 0 : i32
    %584 = tpu.memref_slice %arg2[%c1_i32_294, %c0_i32_295, %c0_i32_296, %c0_i32_297] : memref<5x8x6x128xf32, #tpu.memory_space<vmem>> -> memref<1x8x6x128xf32, #tpu.memory_space<vmem>>
    %585 = tpu.memref_squeeze %584 : memref<1x8x6x128xf32, #tpu.memory_space<vmem>> -> memref<8x6x128xf32, #tpu.memory_space<vmem>>
    %c7_298 = arith.constant 7 : index
    %c0_299 = arith.constant 0 : index
    %c0_300 = arith.constant 0 : index
    %586 = vector.load %585[%c7_298, %c0_299, %c0_300] : memref<8x6x128xf32, #tpu.memory_space<vmem>>, vector<1x6x128xf32>
    %587 = vector.shape_cast %586 : vector<1x6x128xf32> to vector<6x128xf32>
    %c7_301 = arith.constant 7 : index
    %c0_302 = arith.constant 0 : index
    %c0_303 = arith.constant 0 : index
    %588 = vector.load %arg3[%c7_301, %c0_302, %c0_303] : memref<8x2x128xf32, #tpu.memory_space<vmem>>, vector<1x2x128xf32>
    %589 = vector.shape_cast %588 : vector<1x2x128xf32> to vector<2x128xf32>
    %590 = vector.extract_strided_slice %589 {offsets = [0, 0], sizes = [1, 128], strides = [1, 1]} : vector<2x128xf32> to vector<1x128xf32>
    %591 = vector.extract_strided_slice %589 {offsets = [1, 0], sizes = [1, 128], strides = [1, 1]} : vector<2x128xf32> to vector<1x128xf32>
    %592 = vector.broadcast %590 : vector<1x128xf32> to vector<6x128xf32>
    %593 = arith.subf %583, %592 : vector<6x128xf32>
    %594 = vector.broadcast %591 : vector<1x128xf32> to vector<6x128xf32>
    %595 = arith.subf %587, %594 : vector<6x128xf32>
    %596 = arith.mulf %593, %593 : vector<6x128xf32>
    %597 = arith.mulf %595, %595 : vector<6x128xf32>
    %598 = arith.addf %596, %597 : vector<6x128xf32>
    %599 = math.sqrt %598 : vector<6x128xf32>
    %c2_i32_304 = arith.constant 2 : i32
    %c0_i32_305 = arith.constant 0 : i32
    %c0_i32_306 = arith.constant 0 : i32
    %c0_i32_307 = arith.constant 0 : i32
    %600 = tpu.memref_slice %arg2[%c2_i32_304, %c0_i32_305, %c0_i32_306, %c0_i32_307] : memref<5x8x6x128xf32, #tpu.memory_space<vmem>> -> memref<1x8x6x128xf32, #tpu.memory_space<vmem>>
    %601 = tpu.memref_squeeze %600 : memref<1x8x6x128xf32, #tpu.memory_space<vmem>> -> memref<8x6x128xf32, #tpu.memory_space<vmem>>
    %c7_308 = arith.constant 7 : index
    %c0_309 = arith.constant 0 : index
    %c0_310 = arith.constant 0 : index
    %602 = vector.load %601[%c7_308, %c0_309, %c0_310] : memref<8x6x128xf32, #tpu.memory_space<vmem>>, vector<1x6x128xf32>
    %603 = vector.shape_cast %602 : vector<1x6x128xf32> to vector<6x128xf32>
    %cst_311 = arith.constant 2.000000e-01 : f32
    %604 = vector.broadcast %cst_311 : f32 to vector<6x128xf32>
    %605 = arith.addf %603, %604 : vector<6x128xf32>
    %c4_i32_312 = arith.constant 4 : i32
    %c0_i32_313 = arith.constant 0 : i32
    %c0_i32_314 = arith.constant 0 : i32
    %c0_i32_315 = arith.constant 0 : i32
    %606 = tpu.memref_slice %arg2[%c4_i32_312, %c0_i32_313, %c0_i32_314, %c0_i32_315] : memref<5x8x6x128xf32, #tpu.memory_space<vmem>> -> memref<1x8x6x128xf32, #tpu.memory_space<vmem>>
    %607 = tpu.memref_squeeze %606 : memref<1x8x6x128xf32, #tpu.memory_space<vmem>> -> memref<8x6x128xf32, #tpu.memory_space<vmem>>
    %c7_316 = arith.constant 7 : index
    %c0_317 = arith.constant 0 : index
    %c0_318 = arith.constant 0 : index
    %608 = vector.load %607[%c7_316, %c0_317, %c0_318] : memref<8x6x128xf32, #tpu.memory_space<vmem>>, vector<1x6x128xf32>
    %609 = vector.shape_cast %608 : vector<1x6x128xf32> to vector<6x128xf32>
    %cst_319 = arith.constant 2.000000e-01 : f32
    %610 = vector.broadcast %cst_319 : f32 to vector<6x128xf32>
    %611 = arith.addf %609, %610 : vector<6x128xf32>
    %612 = math.rsqrt %605 : vector<6x128xf32>
    %c3_i32_320 = arith.constant 3 : i32
    %c0_i32_321 = arith.constant 0 : i32
    %c0_i32_322 = arith.constant 0 : i32
    %c0_i32_323 = arith.constant 0 : i32
    %613 = tpu.memref_slice %arg2[%c3_i32_320, %c0_i32_321, %c0_i32_322, %c0_i32_323] : memref<5x8x6x128xf32, #tpu.memory_space<vmem>> -> memref<1x8x6x128xf32, #tpu.memory_space<vmem>>
    %614 = tpu.memref_squeeze %613 : memref<1x8x6x128xf32, #tpu.memory_space<vmem>> -> memref<8x6x128xf32, #tpu.memory_space<vmem>>
    %c7_324 = arith.constant 7 : index
    %c0_325 = arith.constant 0 : index
    %c0_326 = arith.constant 0 : index
    %615 = vector.load %614[%c7_324, %c0_325, %c0_326] : memref<8x6x128xf32, #tpu.memory_space<vmem>>, vector<1x6x128xf32>
    %616 = vector.shape_cast %615 : vector<1x6x128xf32> to vector<6x128xf32>
    %617 = arith.mulf %616, %612 : vector<6x128xf32>
    %618 = arith.mulf %617, %617 : vector<6x128xf32>
    %619 = arith.subf %611, %618 : vector<6x128xf32>
    %cst_327 = arith.constant 9.99999996E-13 : f32
    %620 = vector.broadcast %cst_327 : f32 to vector<6x128xf32>
    %621 = arith.maximumf %619, %620 : vector<6x128xf32>
    %622 = math.rsqrt %621 : vector<6x128xf32>
    %cst_328 = arith.constant 0.000000e+00 : f32
    %623 = vector.broadcast %cst_328 : f32 to vector<6x128xf32>
    %624 = arith.subf %623, %593 : vector<6x128xf32>
    %625 = arith.mulf %624, %612 : vector<6x128xf32>
    %cst_329 = arith.constant 0.000000e+00 : f32
    %626 = vector.broadcast %cst_329 : f32 to vector<6x128xf32>
    %627 = arith.subf %626, %595 : vector<6x128xf32>
    %628 = arith.mulf %617, %625 : vector<6x128xf32>
    %629 = arith.subf %627, %628 : vector<6x128xf32>
    %630 = arith.mulf %629, %622 : vector<6x128xf32>
    %631 = arith.mulf %625, %625 : vector<6x128xf32>
    %632 = arith.mulf %630, %630 : vector<6x128xf32>
    %633 = arith.addf %631, %632 : vector<6x128xf32>
    %cst_330 = arith.constant 5.000000e-01 : f32
    %634 = vector.broadcast %cst_330 : f32 to vector<6x128xf32>
    %635 = arith.mulf %634, %633 : vector<6x128xf32>
    %636 = arith.mulf %605, %621 : vector<6x128xf32>
    %637 = math.log %636 : vector<6x128xf32>
    %cst_331 = arith.constant 5.000000e-01 : f32
    %638 = vector.broadcast %cst_331 : f32 to vector<6x128xf32>
    %639 = arith.mulf %638, %637 : vector<6x128xf32>
    %640 = arith.addf %635, %639 : vector<6x128xf32>
    %cst_332 = arith.constant 1.83787704 : f32
    %641 = vector.broadcast %cst_332 : f32 to vector<6x128xf32>
    %642 = arith.addf %640, %641 : vector<6x128xf32>
    %cst_333 = arith.constant 1.250000e-01 : f32
    %643 = vector.broadcast %cst_333 : f32 to vector<6x128xf32>
    %644 = arith.mulf %578, %643 : vector<6x128xf32>
    %c0_334 = arith.constant 0 : index
    %c0_335 = arith.constant 0 : index
    %645 = vector.load %arg4[%c0_334, %c0_335] : memref<6x128xf32, #tpu.memory_space<vmem>>, vector<6x128xf32>
    %cst_336 = arith.constant dense<0xFF800000> : vector<128xf32>
    %646 = vector.multi_reduction <maximumf>, %645, %cst_336 [0] : vector<6x128xf32> to vector<128xf32>
    %647 = vector.shape_cast %646 : vector<128xf32> to vector<1x128xf32>
    %648 = vector.broadcast %647 : vector<1x128xf32> to vector<6x128xf32>
    %649 = arith.subf %645, %648 : vector<6x128xf32>
    %650 = math.exp %649 : vector<6x128xf32>
    %cst_337 = arith.constant dense<0.000000e+00> : vector<128xf32>
    %651 = vector.multi_reduction <add>, %650, %cst_337 [0] : vector<6x128xf32> to vector<128xf32>
    %652 = vector.shape_cast %651 : vector<128xf32> to vector<1x128xf32>
    %653 = vector.broadcast %652 : vector<1x128xf32> to vector<6x128xf32>
    %654 = arith.divf %650, %653 : vector<6x128xf32>
    %cst_338 = arith.constant 1.000000e+00 : f32
    %655 = vector.broadcast %cst_338 : f32 to vector<6x128xf32>
    %656 = arith.subf %655, %654 : vector<6x128xf32>
    %657 = arith.mulf %656, %656 : vector<6x128xf32>
    %658 = arith.addf %599, %657 : vector<6x128xf32>
    %cst_339 = arith.constant dense<0x7F800000> : vector<128xf32>
    %659 = vector.multi_reduction <minimumf>, %599, %cst_339 [0] : vector<6x128xf32> to vector<128xf32>
    %660 = vector.shape_cast %659 : vector<128xf32> to vector<1x128xf32>
    %cst_340 = arith.constant dense<0x7F800000> : vector<128xf32>
    %661 = vector.multi_reduction <minimumf>, %644, %cst_340 [0] : vector<6x128xf32> to vector<128xf32>
    %662 = vector.shape_cast %661 : vector<128xf32> to vector<1x128xf32>
    %cst_341 = arith.constant dense<0x7F800000> : vector<128xf32>
    %663 = vector.multi_reduction <minimumf>, %658, %cst_341 [0] : vector<6x128xf32> to vector<128xf32>
    %664 = vector.shape_cast %663 : vector<128xf32> to vector<1x128xf32>
    %cst_342 = arith.constant 2.000000e+00 : f32
    %665 = vector.broadcast %cst_342 : f32 to vector<1x128xf32>
    %666 = arith.cmpf ogt, %660, %665 : vector<1x128xf32>
    %cst_343 = arith.constant 1.000000e+00 : f32
    %cst_344 = arith.constant 0.000000e+00 : f32
    %667 = vector.broadcast %cst_343 : f32 to vector<1x128xf32>
    %668 = vector.broadcast %cst_344 : f32 to vector<1x128xf32>
    %669 = arith.select %666, %667, %668 : vector<1x128xi1>, vector<1x128xf32>
    %670 = tpu.concatenate %660, %662, %669, %664 in 0 : vector<1x128xf32>, vector<1x128xf32>, vector<1x128xf32>, vector<1x128xf32> -> vector<4x128xf32>
    %c0_345 = arith.constant 0 : index
    %c0_346 = arith.constant 0 : index
    %c0_347 = arith.constant 0 : index
    %671 = vector.load %arg5[%c0_345, %c0_346, %c0_347] : memref<1x4x128xf32, #tpu.memory_space<vmem>>, vector<1x4x128xf32>
    %672 = vector.shape_cast %671 : vector<1x4x128xf32> to vector<4x128xf32>
    %cst_348 = arith.constant 0.000000e+00 : f32
    %673 = vector.shape_cast %10 : vector<1x128xi1> to vector<1x128xi1>
    %674 = vector.broadcast %673 : vector<1x128xi1> to vector<4x128xi1>
    %675 = vector.broadcast %cst_348 : f32 to vector<4x128xf32>
    %676 = arith.select %674, %670, %675 : vector<4x128xi1>, vector<4x128xf32>
    %677 = arith.addf %672, %676 : vector<4x128xf32>
    %c0_349 = arith.constant 0 : index
    %c0_350 = arith.constant 0 : index
    %c0_351 = arith.constant 0 : index
    %678 = vector.load %arg5[%c0_349, %c0_350, %c0_351] : memref<1x4x128xf32, #tpu.memory_space<vmem>>, vector<1x4x128xf32>
    %679 = vector.shape_cast %678 : vector<1x4x128xf32> to vector<4x128xf32>
    %680 = vector.shape_cast %677 : vector<4x128xf32> to vector<1x4x128xf32>
    tpu.vector_store %arg5[%c0_349, %c0_350, %c0_351], %680 {strides = array<i32>} : memref<1x4x128xf32, #tpu.memory_space<vmem>>, vector<1x4x128xf32>,
    %681 = vector.shape_cast %645 : vector<6x128xf32> to vector<6x1x128xf32>
    %682 = vector.shape_cast %645 : vector<6x128xf32> to vector<1x6x128xf32>
    %683 = tpu.iota {dimensions = array<i32: 0>} : vector<6x6x128xi32>
    %684 = tpu.iota {dimensions = array<i32: 1>} : vector<6x6x128xi32>
    %685 = vector.broadcast %682 : vector<1x6x128xf32> to vector<6x6x128xf32>
    %686 = vector.broadcast %681 : vector<6x1x128xf32> to vector<6x6x128xf32>
    %687 = arith.cmpf ogt, %685, %686 : vector<6x6x128xf32>
    %688 = vector.broadcast %682 : vector<1x6x128xf32> to vector<6x6x128xf32>
    %689 = vector.broadcast %681 : vector<6x1x128xf32> to vector<6x6x128xf32>
    %690 = arith.cmpf oeq, %688, %689 : vector<6x6x128xf32>
    %691 = arith.cmpi slt, %684, %683 : vector<6x6x128xi32>
    %692 = arith.andi %690, %691 : vector<6x6x128xi1>
    %693 = arith.ori %687, %692 : vector<6x6x128xi1>
    %cst_352 = arith.constant 1.000000e+00 : f32
    %cst_353 = arith.constant 0.000000e+00 : f32
    %694 = vector.broadcast %cst_352 : f32 to vector<6x6x128xf32>
    %695 = vector.broadcast %cst_353 : f32 to vector<6x6x128xf32>
    %696 = arith.select %693, %694, %695 : vector<6x6x128xi1>, vector<6x6x128xf32>
    %cst_354 = arith.constant dense<0.000000e+00> : vector<6x128xf32>
    %697 = vector.multi_reduction <add>, %696, %cst_354 [1] : vector<6x6x128xf32> to vector<6x128xf32>
    %cst_355 = arith.constant 0.000000e+00 : f32
    %698 = vector.shape_cast %10 : vector<1x128xi1> to vector<1x128xi1>
    %699 = vector.broadcast %698 : vector<1x128xi1> to vector<6x128xi1>
    %700 = vector.broadcast %cst_355 : f32 to vector<6x128xf32>
    %701 = arith.select %699, %642, %700 : vector<6x128xi1>, vector<6x128xf32>
    %cst_356 = arith.constant 0.000000e+00 : f32
    %702 = vector.shape_cast %10 : vector<1x128xi1> to vector<1x128xi1>
    %703 = vector.broadcast %702 : vector<1x128xi1> to vector<6x128xi1>
    %704 = vector.broadcast %cst_356 : f32 to vector<6x128xf32>
    %705 = arith.select %703, %579, %704 : vector<6x128xi1>, vector<6x128xf32>
    %cst_357 = arith.constant 0.000000e+00 : f32
    %706 = vector.broadcast %cst_357 : f32 to vector<6x128xf32>
    %707 = arith.cmpf oeq, %697, %706 : vector<6x128xf32>
    %cst_358 = arith.constant 0.000000e+00 : f32
    %708 = vector.broadcast %cst_358 : f32 to vector<6x128xf32>
    %709 = arith.select %707, %701, %708 : vector<6x128xi1>, vector<6x128xf32>
    %cst_359 = arith.constant dense<0.000000e+00> : vector<128xf32>
    %710 = vector.multi_reduction <add>, %709, %cst_359 [0] : vector<6x128xf32> to vector<128xf32>
    %711 = vector.shape_cast %710 : vector<128xf32> to vector<1x128xf32>
    %cst_360 = arith.constant 0.000000e+00 : f32
    %712 = vector.broadcast %cst_360 : f32 to vector<6x128xf32>
    %713 = arith.select %707, %705, %712 : vector<6x128xi1>, vector<6x128xf32>
    %cst_361 = arith.constant dense<0.000000e+00> : vector<128xf32>
    %714 = vector.multi_reduction <add>, %713, %cst_361 [0] : vector<6x128xf32> to vector<128xf32>
    %715 = vector.shape_cast %714 : vector<128xf32> to vector<1x128xf32>
    %cst_362 = arith.constant 1.000000e+00 : f32
    %716 = vector.broadcast %cst_362 : f32 to vector<6x128xf32>
    %717 = arith.cmpf oeq, %697, %716 : vector<6x128xf32>
    %cst_363 = arith.constant 0.000000e+00 : f32
    %718 = vector.broadcast %cst_363 : f32 to vector<6x128xf32>
    %719 = arith.select %717, %701, %718 : vector<6x128xi1>, vector<6x128xf32>
    %cst_364 = arith.constant dense<0.000000e+00> : vector<128xf32>
    %720 = vector.multi_reduction <add>, %719, %cst_364 [0] : vector<6x128xf32> to vector<128xf32>
    %721 = vector.shape_cast %720 : vector<128xf32> to vector<1x128xf32>
    %cst_365 = arith.constant 0.000000e+00 : f32
    %722 = vector.broadcast %cst_365 : f32 to vector<6x128xf32>
    %723 = arith.select %717, %705, %722 : vector<6x128xi1>, vector<6x128xf32>
    %cst_366 = arith.constant dense<0.000000e+00> : vector<128xf32>
    %724 = vector.multi_reduction <add>, %723, %cst_366 [0] : vector<6x128xf32> to vector<128xf32>
    %725 = vector.shape_cast %724 : vector<128xf32> to vector<1x128xf32>
    %cst_367 = arith.constant 2.000000e+00 : f32
    %726 = vector.broadcast %cst_367 : f32 to vector<6x128xf32>
    %727 = arith.cmpf oeq, %697, %726 : vector<6x128xf32>
    %cst_368 = arith.constant 0.000000e+00 : f32
    %728 = vector.broadcast %cst_368 : f32 to vector<6x128xf32>
    %729 = arith.select %727, %701, %728 : vector<6x128xi1>, vector<6x128xf32>
    %cst_369 = arith.constant dense<0.000000e+00> : vector<128xf32>
    %730 = vector.multi_reduction <add>, %729, %cst_369 [0] : vector<6x128xf32> to vector<128xf32>
    %731 = vector.shape_cast %730 : vector<128xf32> to vector<1x128xf32>
    %cst_370 = arith.constant 0.000000e+00 : f32
    %732 = vector.broadcast %cst_370 : f32 to vector<6x128xf32>
    %733 = arith.select %727, %705, %732 : vector<6x128xi1>, vector<6x128xf32>
    %cst_371 = arith.constant dense<0.000000e+00> : vector<128xf32>
    %734 = vector.multi_reduction <add>, %733, %cst_371 [0] : vector<6x128xf32> to vector<128xf32>
    %735 = vector.shape_cast %734 : vector<128xf32> to vector<1x128xf32>
    %cst_372 = arith.constant 3.000000e+00 : f32
    %736 = vector.broadcast %cst_372 : f32 to vector<6x128xf32>
    %737 = arith.cmpf oeq, %697, %736 : vector<6x128xf32>
    %cst_373 = arith.constant 0.000000e+00 : f32
    %738 = vector.broadcast %cst_373 : f32 to vector<6x128xf32>
    %739 = arith.select %737, %701, %738 : vector<6x128xi1>, vector<6x128xf32>
    %cst_374 = arith.constant dense<0.000000e+00> : vector<128xf32>
    %740 = vector.multi_reduction <add>, %739, %cst_374 [0] : vector<6x128xf32> to vector<128xf32>
    %741 = vector.shape_cast %740 : vector<128xf32> to vector<1x128xf32>
    %cst_375 = arith.constant 0.000000e+00 : f32
    %742 = vector.broadcast %cst_375 : f32 to vector<6x128xf32>
    %743 = arith.select %737, %705, %742 : vector<6x128xi1>, vector<6x128xf32>
    %cst_376 = arith.constant dense<0.000000e+00> : vector<128xf32>
    %744 = vector.multi_reduction <add>, %743, %cst_376 [0] : vector<6x128xf32> to vector<128xf32>
    %745 = vector.shape_cast %744 : vector<128xf32> to vector<1x128xf32>
    %cst_377 = arith.constant 4.000000e+00 : f32
    %746 = vector.broadcast %cst_377 : f32 to vector<6x128xf32>
    %747 = arith.cmpf oeq, %697, %746 : vector<6x128xf32>
    %cst_378 = arith.constant 0.000000e+00 : f32
    %748 = vector.broadcast %cst_378 : f32 to vector<6x128xf32>
    %749 = arith.select %747, %701, %748 : vector<6x128xi1>, vector<6x128xf32>
    %cst_379 = arith.constant dense<0.000000e+00> : vector<128xf32>
    %750 = vector.multi_reduction <add>, %749, %cst_379 [0] : vector<6x128xf32> to vector<128xf32>
    %751 = vector.shape_cast %750 : vector<128xf32> to vector<1x128xf32>
    %cst_380 = arith.constant 0.000000e+00 : f32
    %752 = vector.broadcast %cst_380 : f32 to vector<6x128xf32>
    %753 = arith.select %747, %705, %752 : vector<6x128xi1>, vector<6x128xf32>
    %cst_381 = arith.constant dense<0.000000e+00> : vector<128xf32>
    %754 = vector.multi_reduction <add>, %753, %cst_381 [0] : vector<6x128xf32> to vector<128xf32>
    %755 = vector.shape_cast %754 : vector<128xf32> to vector<1x128xf32>
    %cst_382 = arith.constant 5.000000e+00 : f32
    %756 = vector.broadcast %cst_382 : f32 to vector<6x128xf32>
    %757 = arith.cmpf oeq, %697, %756 : vector<6x128xf32>
    %cst_383 = arith.constant 0.000000e+00 : f32
    %758 = vector.broadcast %cst_383 : f32 to vector<6x128xf32>
    %759 = arith.select %757, %701, %758 : vector<6x128xi1>, vector<6x128xf32>
    %cst_384 = arith.constant dense<0.000000e+00> : vector<128xf32>
    %760 = vector.multi_reduction <add>, %759, %cst_384 [0] : vector<6x128xf32> to vector<128xf32>
    %761 = vector.shape_cast %760 : vector<128xf32> to vector<1x128xf32>
    %cst_385 = arith.constant 0.000000e+00 : f32
    %762 = vector.broadcast %cst_385 : f32 to vector<6x128xf32>
    %763 = arith.select %757, %705, %762 : vector<6x128xi1>, vector<6x128xf32>
    %cst_386 = arith.constant dense<0.000000e+00> : vector<128xf32>
    %764 = vector.multi_reduction <add>, %763, %cst_386 [0] : vector<6x128xf32> to vector<128xf32>
    %765 = vector.shape_cast %764 : vector<128xf32> to vector<1x128xf32>
    %c0_387 = arith.constant 0 : index
    %c0_388 = arith.constant 0 : index
    %c0_389 = arith.constant 0 : index
    %766 = vector.load %arg6[%c0_387, %c0_388, %c0_389] : memref<1x6x128xf32, #tpu.memory_space<vmem>>, vector<1x6x128xf32>
    %767 = vector.shape_cast %766 : vector<1x6x128xf32> to vector<6x128xf32>
    %768 = tpu.concatenate %711, %721, %731, %741, %751, %761 in 0 : vector<1x128xf32>, vector<1x128xf32>, vector<1x128xf32>, vector<1x128xf32>, vector<1x128xf32>, vector<1x128xf32> -> vector<6x128xf32>
    %769 = arith.addf %767, %768 : vector<6x128xf32>
    %c0_390 = arith.constant 0 : index
    %c0_391 = arith.constant 0 : index
    %c0_392 = arith.constant 0 : index
    %770 = vector.load %arg6[%c0_390, %c0_391, %c0_392] : memref<1x6x128xf32, #tpu.memory_space<vmem>>, vector<1x6x128xf32>
    %771 = vector.shape_cast %770 : vector<1x6x128xf32> to vector<6x128xf32>
    %772 = vector.shape_cast %769 : vector<6x128xf32> to vector<1x6x128xf32>
    tpu.vector_store %arg6[%c0_390, %c0_391, %c0_392], %772 {strides = array<i32>} : memref<1x6x128xf32, #tpu.memory_space<vmem>>, vector<1x6x128xf32>,
    %c0_393 = arith.constant 0 : index
    %c0_394 = arith.constant 0 : index
    %c0_395 = arith.constant 0 : index
    %773 = vector.load %arg7[%c0_393, %c0_394, %c0_395] : memref<1x6x128xf32, #tpu.memory_space<vmem>>, vector<1x6x128xf32>
    %774 = vector.shape_cast %773 : vector<1x6x128xf32> to vector<6x128xf32>
    %775 = tpu.concatenate %715, %725, %735, %745, %755, %765 in 0 : vector<1x128xf32>, vector<1x128xf32>, vector<1x128xf32>, vector<1x128xf32>, vector<1x128xf32>, vector<1x128xf32> -> vector<6x128xf32>
    %776 = arith.addf %774, %775 : vector<6x128xf32>
    %c0_396 = arith.constant 0 : index
    %c0_397 = arith.constant 0 : index
    %c0_398 = arith.constant 0 : index
    %777 = vector.load %arg7[%c0_396, %c0_397, %c0_398] : memref<1x6x128xf32, #tpu.memory_space<vmem>>, vector<1x6x128xf32>
    %778 = vector.shape_cast %777 : vector<1x6x128xf32> to vector<6x128xf32>
    %779 = vector.shape_cast %776 : vector<6x128xf32> to vector<1x6x128xf32>
    tpu.vector_store %arg7[%c0_396, %c0_397, %c0_398], %779 {strides = array<i32>} : memref<1x6x128xf32, #tpu.memory_space<vmem>>, vector<1x6x128xf32>,
    return
  }
  func.func @transform_0(%arg0: i32, %arg1: i32) -> (i32, i32, i32, i32) {
    %c1_i32 = arith.constant 1 : i32
    %0 = arith.muli %arg0, %c1_i32 : i32
    %1 = arith.addi %0, %arg1 : i32
    %c0_i32 = arith.constant 0 : i32
    %c0_i32_0 = arith.constant 0 : i32
    %c0_i32_1 = arith.constant 0 : i32
    %c0_i32_2 = arith.constant 0 : i32
    return %c0_i32, %c0_i32_0, %c0_i32_1, %1 : i32, i32, i32, i32
  }
  func.func @transform_1(%arg0: i32, %arg1: i32) -> (i32, i32, i32) {
    %c1_i32 = arith.constant 1 : i32
    %0 = arith.muli %arg0, %c1_i32 : i32
    %1 = arith.addi %0, %arg1 : i32
    %c0_i32 = arith.constant 0 : i32
    %c0_i32_0 = arith.constant 0 : i32
    %c0_i32_1 = arith.constant 0 : i32
    return %c0_i32, %c0_i32_0, %1 : i32, i32, i32
  }
  func.func @transform_2(%arg0: i32, %arg1: i32) -> (i32, i32) {
    %c1_i32 = arith.constant 1 : i32
    %0 = arith.muli %arg0, %c1_i32 : i32
    %1 = arith.addi %0, %arg1 : i32
    %c0_i32 = arith.constant 0 : i32
    %c0_i32_0 = arith.constant 0 : i32
    return %c0_i32, %1 : i32, i32
  }
  func.func @transform_3(%arg0: i32, %arg1: i32) -> (i32, i32, i32) {
    %c0_i32 = arith.constant 0 : i32
    %c0_i32_0 = arith.constant 0 : i32
    %c0_i32_1 = arith.constant 0 : i32
    return %arg0, %c0_i32, %c0_i32_0 : i32, i32, i32
  }
  func.func @transform_4(%arg0: i32, %arg1: i32) -> (i32, i32, i32) {
    %c0_i32 = arith.constant 0 : i32
    %c0_i32_0 = arith.constant 0 : i32
    %c0_i32_1 = arith.constant 0 : i32
    return %arg0, %c0_i32, %c0_i32_0 : i32, i32, i32
  }
  func.func @transform_5(%arg0: i32, %arg1: i32) -> (i32, i32, i32) {
    %c0_i32 = arith.constant 0 : i32
    %c0_i32_0 = arith.constant 0 : i32
    %c0_i32_1 = arith.constant 0 : i32
    return %arg0, %c0_i32, %c0_i32_0 : i32, i32, i32
  }
}

</mosaic_0001>

<llo_original>
// kernel: metrics_pallas.2
$region0: #{metrics_pallas.2}
  #allocation0 [shape = 'u32[]', space=smem, size = 0x4, offset = 0x4, fixed_abs, tag = 'smem constant byte address 0x4 - core index']
  #allocation1 [shape = 'u32[144,128]{1,0:T(1,128)}', space=vmem, size = 0x12000, scoped, tag = 'internal scratch']
  #allocation2 [shape = 'u32[2048]{0}', space=vmem, size = 0x2000, scoped, tag = 'scoped memory for metrics_pallas.2']
  #allocation3 [shape = 'u32[2048]{0}', space=vmem, size = 0x2000, scoped, tag = 'scoped memory for metrics_pallas.2']
  #allocation4 [shape = 'u32[2048]{0}', space=vmem, size = 0x2000, scoped, tag = 'scoped memory for metrics_pallas.2']
  #allocation5 [shape = 'u32[2048]{0}', space=vmem, size = 0x2000, scoped, tag = 'scoped memory for metrics_pallas.2']
  #allocation6 [shape = 'u32[2048]{0}', space=vmem, size = 0x2000, scoped, tag = 'scoped memory for metrics_pallas.2']
  #allocation7 [shape = 'u32[2048]{0}', space=vmem, size = 0x2000, scoped, tag = 'scoped memory for metrics_pallas.2']
  #allocation8 [shape = 'u32[2048]{0}', space=vmem, size = 0x2000, scoped, tag = 'scoped memory for metrics_pallas.2']
  #allocation9 [shape = 'u32[2048]{0}', space=vmem, size = 0x2000, scoped, tag = 'scoped memory for metrics_pallas.2']
  #allocation10 [shape = 'u32[2048]{0}', space=vmem, size = 0x2000, scoped, tag = 'scoped memory for metrics_pallas.2']
  #allocation11 [shape = 'u32[2048]{0}', space=vmem, size = 0x2000, scoped, tag = 'scoped memory for metrics_pallas.2']
  #allocation12 [shape = 'u32[2048]{0}', space=vmem, size = 0x2000, scoped, tag = 'scoped memory for metrics_pallas.2']
  #allocation13 [shape = 'u32[2048]{0}', space=vmem, size = 0x2000, scoped, tag = 'scoped memory for metrics_pallas.2']
  #allocation14 [shape = 'u32[2048]{0}', space=vmem, size = 0x2000, scoped, tag = 'scoped memory for metrics_pallas.2']
  #allocation15 [shape = 'u32[2048]{0}', space=vmem, size = 0x2000, scoped, tag = 'scoped memory for metrics_pallas.2']
  #allocation16 [shape = 'u32[2048]{0}', space=vmem, size = 0x2000, scoped, tag = 'scoped memory for metrics_pallas.2']
  %s0 = inlined_call_operand.vmem [shape: f32[5,8,6,2], index: 0, kind: input, shape index: {}]
  %s1 = inlined_call_operand.<no memory space> [shape: f32[], index: 1, kind: input, shape index: {}]
  %s2 = inlined_call_operand.vmem [shape: f32[8,2,2], index: 2, kind: input, shape index: {}]
  %s3 = inlined_call_operand.vmem [shape: f32[6,2], index: 3, kind: input, shape index: {}]
  %s4 = inlined_call_operand.vmem [shape: f32[2,4,128], index: 4, kind: output, shape index: {0}]
  %s5 = inlined_call_operand.vmem [shape: f32[2,6,128], index: 5, kind: output, shape index: {1}]
  %s6 = inlined_call_operand.vmem [shape: f32[2,6,128], index: 6, kind: output, shape index: {2}]
  %7 = xla_tuple %s4, %s5, %s6
  %s8 = sld [smem:[#allocation0]]
  $region65: #{metrics_pallas.2} parent=0
    _
  %s10 = ssub.s32 1, %s8
  %s11 = scalar_select 0, %s10, %s8
  %v12 = vstv %s1
  %v13 = vstv %s1
  %v14 = vstv %s1
  loop: start=0, step=1, limit=4
  $region2: #{metrics_pallas.2} parent=0 // loop_pre_header
    _
  $region3: #{metrics_pallas.2} parent=0 // loop_header
    %s16 = sphi 0, %s20
    %p17 = scmp.ge.s32.totalorder %s16, 4
    %s23 = sphi 0, %s35
    %s24 = sphi 0, %s31
    %s25 = sphi 0, %s23
    %s26 = sphi 0, %s24
    %s27 = sphi 0, %s25
    %s28 = sphi 0, %s26
    %s40 = sphi 0, %s42
    %s43 = sphi 0, %s40
    %s44 = sphi 0, %s43
    %s60 = sphi 0, %s44
    %s68 = sphi 0, %s70
    %s71 = sphi 0, %s68
    %s72 = sphi 0, %s71
    %s88 = sphi 0, %s72
    %s96 = sphi 0, %s98
    %s99 = sphi 0, %s96
    %s100 = sphi 0, %s99
    %s116 = sphi 0, %s100
    %s122 = sphi 0, %s124
    %s125 = sphi 0, %s122
    %s126 = sphi 0, %s125
    %s142 = sphi 0, %s126
    %s148 = sphi 0, %s150
    %s151 = sphi 0, %s148
    %s152 = sphi 0, %s151
    %s168 = sphi 0, %s152
    %s174 = sphi 0, %s176
    %s177 = sphi 0, %s174
    %s178 = sphi 0, %s177
    %s194 = sphi 0, %s178
  $region4: #{metrics_pallas.2} parent=0 // loop_header_branch
    %19 = sbr.rel (%p17) target = $region8
  $region5: #{metrics_pallas.2} parent=0 // loop_body
    %s21 = ssub.s32 %s16, 1
    %s22 = ssub.s32 %s16, 2
    %s29 = sadd.s32 1, %s24
    %p30 = scmp.ge.s32.totalorder %s29, 1
    %s31 = scalar_select %p30, 0, %s29
    %s32 = sadd.s32 1, %s23
    %s33 = scalar_select %p30, %s32, %s23
    %p34 = scmp.ge.s32.totalorder %s33, 2
    %s35 = scalar_select %p34, 0, %s33
    %s36 = sadd.s32 %s23, %s24
    %s37 = sadd.s32 %s35, %s31
    %s38 = ssub.s32 %s36, %s37
    %p39 = scmp.eq.s32.totalorder %s38, 0
    %s41 = sadd.s32 %s40, 1
    %s42 = scalar_select %p39, %s40, %s41
    %p45 = pneg %p39
    %p46 = scmp.eq.s32.totalorder %s16, 1
    %p47 = por %p45, %p46
    %p48 = scmp.ne.s32.totalorder %s40, %s43
    %p49 = scmp.eq.s32.totalorder %s16, 0
    %p50 = por %p48, %p49
    %p51 = scmp.ne.s32.totalorder %s40, %s43
    %p52 = scmp.eq.s32.totalorder %s21, 1
    %p53 = por %p51, %p52
    %p54 = scmp.ne.s32.totalorder %s43, %s44
    %p55 = scmp.eq.s32.totalorder %s21, 0
    %p56 = por %p54, %p55
    %p57 = scmp.ne.s32.totalorder %s43, %s44
    %p58 = scmp.eq.s32.totalorder %s22, 1
    %p59 = por %p57, %p58
    %p61 = scmp.ne.s32.totalorder %s44, %s60
    %p62 = scmp.eq.s32.totalorder %s22, 0
    %p63 = por %p61, %p62
    %s64 = sadd.s32 %s23, %s24
    %s65 = sadd.s32 %s35, %s31
    %s66 = ssub.s32 %s64, %s65
    %p67 = scmp.eq.s32.totalorder %s66, 0
    %s69 = sadd.s32 %s68, 1
    %s70 = scalar_select %p67, %s68, %s69
    %p73 = pneg %p67
    %p74 = scmp.eq.s32.totalorder %s16, 1
    %p75 = por %p73, %p74
    %p76 = scmp.ne.s32.totalorder %s68, %s71
    %p77 = scmp.eq.s32.totalorder %s16, 0
    %p78 = por %p76, %p77
    %p79 = scmp.ne.s32.totalorder %s68, %s71
    %p80 = scmp.eq.s32.totalorder %s21, 1
    %p81 = por %p79, %p80
    %p82 = scmp.ne.s32.totalorder %s71, %s72
    %p83 = scmp.eq.s32.totalorder %s21, 0
    %p84 = por %p82, %p83
    %p85 = scmp.ne.s32.totalorder %s71, %s72
    %p86 = scmp.eq.s32.totalorder %s22, 1
    %p87 = por %p85, %p86
    %p89 = scmp.ne.s32.totalorder %s72, %s88
    %p90 = scmp.eq.s32.totalorder %s22, 0
    %p91 = por %p89, %p90
    %s92 = sadd.s32 %s23, %s24
    %s93 = sadd.s32 %s35, %s31
    %s94 = ssub.s32 %s92, %s93
    %p95 = scmp.eq.s32.totalorder %s94, 0
    %s97 = sadd.s32 %s96, 1
    %s98 = scalar_select %p95, %s96, %s97
    %p101 = pneg %p95
    %p102 = scmp.eq.s32.totalorder %s16, 1
    %p103 = por %p101, %p102
    %p104 = scmp.ne.s32.totalorder %s96, %s99
    %p105 = scmp.eq.s32.totalorder %s16, 0
    %p106 = por %p104, %p105
    %p107 = scmp.ne.s32.totalorder %s96, %s99
    %p108 = scmp.eq.s32.totalorder %s21, 1
    %p109 = por %p107, %p108
    %p110 = scmp.ne.s32.totalorder %s99, %s100
    %p111 = scmp.eq.s32.totalorder %s21, 0
    %p112 = por %p110, %p111
    %p113 = scmp.ne.s32.totalorder %s99, %s100
    %p114 = scmp.eq.s32.totalorder %s22, 1
    %p115 = por %p113, %p114
    %p117 = scmp.ne.s32.totalorder %s100, %s116
    %p118 = scmp.eq.s32.totalorder %s22, 0
    %p119 = por %p117, %p118
    %s120 = ssub.s32 %s23, %s35
    %p121 = scmp.eq.s32.totalorder %s120, 0
    %s123 = sadd.s32 %s122, 1
    %s124 = scalar_select %p121, %s122, %s123
    %p127 = pneg %p121
    %p128 = scmp.eq.s32.totalorder %s16, 1
    %p129 = por %p127, %p128
    %p130 = scmp.ne.s32.totalorder %s122, %s125
    %p131 = scmp.eq.s32.totalorder %s16, 0
    %p132 = por %p130, %p131
    %p133 = scmp.ne.s32.totalorder %s122, %s125
    %p134 = scmp.eq.s32.totalorder %s21, 1
    %p135 = por %p133, %p134
    %p136 = scmp.ne.s32.totalorder %s125, %s126
    %p137 = scmp.eq.s32.totalorder %s21, 0
    %p138 = por %p136, %p137
    %p139 = scmp.ne.s32.totalorder %s125, %s126
    %p140 = scmp.eq.s32.totalorder %s22, 1
    %p141 = por %p139, %p140
    %p143 = scmp.ne.s32.totalorder %s126, %s142
    %p144 = scmp.eq.s32.totalorder %s22, 0
    %p145 = por %p143, %p144
    %s146 = ssub.s32 %s23, %s35
    %p147 = scmp.eq.s32.totalorder %s146, 0
    %s149 = sadd.s32 %s148, 1
    %s150 = scalar_select %p147, %s148, %s149
    %p153 = pneg %p147
    %p154 = scmp.eq.s32.totalorder %s16, 1
    %p155 = por %p153, %p154
    %p156 = scmp.ne.s32.totalorder %s148, %s151
    %p157 = scmp.eq.s32.totalorder %s16, 0
    %p158 = por %p156, %p157
    %p159 = scmp.ne.s32.totalorder %s148, %s151
    %p160 = scmp.eq.s32.totalorder %s21, 1
    %p161 = por %p159, %p160
    %p162 = scmp.ne.s32.totalorder %s151, %s152
    %p163 = scmp.eq.s32.totalorder %s21, 0
    %p164 = por %p162, %p163
    %p165 = scmp.ne.s32.totalorder %s151, %s152
    %p166 = scmp.eq.s32.totalorder %s22, 1
    %p167 = por %p165, %p166
    %p169 = scmp.ne.s32.totalorder %s152, %s168
    %p170 = scmp.eq.s32.totalorder %s22, 0
    %p171 = por %p169, %p170
    %s172 = ssub.s32 %s23, %s35
    %p173 = scmp.eq.s32.totalorder %s172, 0
    %s175 = sadd.s32 %s174, 1
    %s176 = scalar_select %p173, %s174, %s175
    %p179 = pneg %p173
    %p180 = scmp.eq.s32.totalorder %s16, 1
    %p181 = por %p179, %p180
    %p182 = scmp.ne.s32.totalorder %s174, %s177
    %p183 = scmp.eq.s32.totalorder %s16, 0
    %p184 = por %p182, %p183
    %p185 = scmp.ne.s32.totalorder %s174, %s177
    %p186 = scmp.eq.s32.totalorder %s21, 1
    %p187 = por %p185, %p186
    %p188 = scmp.ne.s32.totalorder %s177, %s178
    %p189 = scmp.eq.s32.totalorder %s21, 0
    %p190 = por %p188, %p189
    %p191 = scmp.ne.s32.totalorder %s177, %s178
    %p192 = scmp.eq.s32.totalorder %s22, 1
    %p193 = por %p191, %p192
    %p195 = scmp.ne.s32.totalorder %s178, %s194
    %p196 = scmp.eq.s32.totalorder %s22, 0
    %p197 = por %p195, %p196
    %p198 = scmp.le.s32.totalorder 1, %s16
    %p199 = scmp.lt.s32.totalorder %s16, 3
    %p200 = pnand %p198, %p199
    %p201 = pneg %p200
    // Predicated region
    $region9: #{metrics_pallas.2} parent=5 // pred_check
      _
    $region10: #{metrics_pallas.2} parent=5 // pred_check_branch
      %203 = sbr.rel (%p200) target = $region12
    $region11: #{metrics_pallas.2} parent=5 // pred_region
      %s204 = ssub.s32 %s16, 1
    $region12: #{metrics_pallas.2} parent=5 // pred_fallthru
      _
    %p205 = scmp.lt.s32.totalorder %s16, 2
    // Predicated region
    $region13: #{metrics_pallas.2} parent=5 // pred_check
      %p206 = pneg %p205
    $region14: #{metrics_pallas.2} parent=5 // pred_check_branch
      %208 = sbr.rel (%p206) target = $region16
    $region15: #{metrics_pallas.2} parent=5 // pred_region
      // Predicated region
      $region17: #{metrics_pallas.2} parent=15 // pred_check
        %p209 = pneg %p50
      $region18: #{metrics_pallas.2} parent=15 // pred_check_branch
        %211 = sbr.rel (%p209) target = $region20
      $region19: #{metrics_pallas.2} parent=15 // pred_region
        %s212 = sadd.s32 %s23, %s24
        %s213 = ssub.s32 1, %s212
        %p214 = scmp.gt.s32.totalorder %s213, 0
        %s215 = scalar_select %p214, %s213, 0
        %s216 = smul.u32 5120, %s215
        %p217 = scmp.lt.s32.totalorder %s212, 0
        %s218 = scalar_select %p217, %s212, 0
        %s219 = smul.addr %s218, 8
        %s220 = scalar_lea.vmem %s0, %s219
        %s221 = sadd.s32 %s23, %s24
        %s222 = ssub.s32 1, %s221
        %p223 = scmp.gt.s32.totalorder %s222, 0
        %s224 = scalar_select %p223, %s222, 0
        %s225 = smul.u32 5120, %s224
      $region20: #{metrics_pallas.2} parent=15 // pred_fallthru
        _
      // Predicated region
      $region21: #{metrics_pallas.2} parent=15 // pred_check
        %p226 = pneg %p78
      $region22: #{metrics_pallas.2} parent=15 // pred_check_branch
        %228 = sbr.rel (%p226) target = $region24
      $region23: #{metrics_pallas.2} parent=15 // pred_region
        %s229 = sadd.s32 %s23, %s24
        %s230 = ssub.s32 1, %s229
        %p231 = scmp.gt.s32.totalorder %s230, 0
        %s232 = scalar_select %p231, %s230, 0
        %s233 = smul.u32 256, %s232
        %p234 = scmp.lt.s32.totalorder %s229, 0
        %s235 = scalar_select %p234, %s229, 0
        %s236 = smul.addr %s235, 2
        %s237 = scalar_lea.vmem %s2, %s236
        %s238 = sadd.s32 %s23, %s24
        %s239 = ssub.s32 1, %s238
        %p240 = scmp.gt.s32.totalorder %s239, 0
        %s241 = scalar_select %p240, %s239, 0
        %s242 = smul.u32 256, %s241
      $region24: #{metrics_pallas.2} parent=15 // pred_fallthru
        _
      // Predicated region
      $region25: #{metrics_pallas.2} parent=15 // pred_check
        %p243 = pneg %p106
      $region26: #{metrics_pallas.2} parent=15 // pred_check_branch
        %245 = sbr.rel (%p243) target = $region28
      $region27: #{metrics_pallas.2} parent=15 // pred_region
        %s246 = sadd.s32 %s23, %s24
        %s247 = ssub.s32 1, %s246
        %p248 = scmp.gt.s32.totalorder %s247, 0
        %s249 = scalar_select %p248, %s247, 0
        %s250 = smul.u32 128, %s249
        %p251 = scmp.lt.s32.totalorder %s246, 0
        %s252 = scalar_select %p251, %s246, 0
        %s253 = smul.addr %s252, 8
        %s254 = scalar_lea.vmem %s3, %s253
        %s255 = sadd.s32 %s23, %s24
        %s256 = ssub.s32 1, %s255
        %p257 = scmp.gt.s32.totalorder %s256, 0
        %s258 = scalar_select %p257, %s256, 0
        %s259 = smul.u32 128, %s258
      $region28: #{metrics_pallas.2} parent=15 // pred_fallthru
        _
    $region16: #{metrics_pallas.2} parent=5 // pred_fallthru
      _
    %p260 = scmp.le.s32.totalorder 1, %s16
    %p261 = scmp.lt.s32.totalorder %s16, 3
    %p262 = pnand %p260, %p261
    %p263 = pneg %p262
    // Predicated region
    $region29: #{metrics_pallas.2} parent=5 // pred_check
      _
    $region30: #{metrics_pallas.2} parent=5 // pred_check_branch
      %265 = sbr.rel (%p262) target = $region32
    $region31: #{metrics_pallas.2} parent=5 // pred_region
      #allocation17 [shape = 'u8[163840]{0}', space=vmem, size = 0x28000, dematerialized = true, scoped, tag = 'FusionAdapter Buffer %fusion.1 = f32[5,8,6,256]{3,2,1,0:T(8,128)} fusion(%param_0.10, %param_1.10), kind=kLoop, calls=%fused_computation.1.clone, metadata={op_name="jit(metrics_pallas)/jit(_pad)/pad" stack_frame_id=19}']
      #allocation18 [shape = 'u8[8192]{0}', space=vmem, size = 0x2000, dematerialized = true, scoped, tag = 'FusionAdapter Buffer %fusion.2 = f32[8,2,256]{2,1,0:T(2,128)} fusion(%param_2.8, %param_1.10), kind=kLoop, calls=%fused_computation.2.clone, metadata={op_name="jit(metrics_pallas)/jit(_pad)/pad" stack_frame_id=21}']
      #allocation19 [shape = 'u8[4096]{0}', space=vmem, size = 0x1000, dematerialized = true, scoped, tag = 'FusionAdapter Buffer %fusion.3 = f32[6,256]{1,0:T(8,128)} fusion(%param_3.6, %param_1.10), kind=kLoop, calls=%fused_computation.8.clone, metadata={op_name="jit(metrics_pallas)/jit(_pad)/pad" stack_frame_id=23}']
      %s266 = ssub.s32 %s16, 1
      %s267 = sadd.s32 %s25, %s26
      %s268 = ssub.s32 1, %s267
      %p269 = scmp.gt.s32.totalorder %s268, 0
      %s270 = scalar_select %p269, %s268, 0
      %s271 = smul.u32 5120, %s270
      %p272 = scmp.lt.s32.totalorder %s267, 0
      %s273 = scalar_select %p272, %s267, 0
      %s274 = smul.addr %s273, 8
      %s275 = scalar_lea.vmem %s0, %s274
      %p276 = pneg %p56
      %p277 = pneg %p53
      %s278 = sadd.s32 %s25, %s26
      %s279 = ssub.s32 1, %s278
      %p280 = scmp.gt.s32.totalorder %s279, 0
      %s281 = scalar_select %p280, %s279, 0
      %s282 = smul.u32 256, %s281
      %p283 = scmp.lt.s32.totalorder %s278, 0
      %s284 = scalar_select %p283, %s278, 0
      %s285 = smul.addr %s284, 2
      %s286 = scalar_lea.vmem %s2, %s285
      %p287 = pneg %p84
      %p288 = pneg %p81
      %s289 = sadd.s32 %s25, %s26
      %s290 = ssub.s32 1, %s289
      %p291 = scmp.gt.s32.totalorder %s290, 0
      %s292 = scalar_select %p291, %s290, 0
      %s293 = smul.u32 128, %s292
      %p294 = scmp.lt.s32.totalorder %s289, 0
      %s295 = scalar_select %p294, %s289, 0
      %s296 = smul.addr %s295, 8
      %s297 = scalar_lea.vmem %s3, %s296
      %p298 = pneg %p112
      %p299 = pneg %p109
      %p300 = pneg %p138
      %p301 = pneg %p135
      %p302 = scmp.lt.s32.totalorder %s25, 1
      %s303 = scalar_select %p302, %s25, 1
      %s304 = smul.addr %s303, 4
      %s305 = scalar_lea.vmem %s4, %s304
      %p306 = pneg %p164
      %p307 = pneg %p161
      %p308 = scmp.lt.s32.totalorder %s25, 1
      %s309 = scalar_select %p308, %s25, 1
      %s310 = smul.addr %s309, 8
      %s311 = scalar_lea.vmem %s5, %s310
      %p312 = pneg %p190
      %p313 = pneg %p187
      %p314 = scmp.lt.s32.totalorder %s25, 1
      %s315 = scalar_select %p314, %s25, 1
      %s316 = smul.addr %s315, 8
      %s317 = scalar_lea.vmem %s6, %s316
      %s318 = sadd.s32 %s25, %s26
      %s319 = ssub.s32 1, %s318
      %p320 = scmp.gt.s32.totalorder %s319, 0
      %s321 = scalar_select %p320, %s319, 0
      %s322 = smul.u32 5120, %s321
      %p323 = scmp.lt.s32.totalorder %s318, 0
      %s324 = scalar_select %p323, %s318, 0
      %s325 = smul.addr %s324, 8
      %s326 = scalar_lea.vmem %s0, %s325
      %s327 = sadd.s32 %s25, %s26
      %s328 = ssub.s32 1, %s327
      %p329 = scmp.gt.s32.totalorder %s328, 0
      %s330 = scalar_select %p329, %s328, 0
      %s331 = smul.u32 5120, %s330
      %s332 = sadd.s32 %s25, %s26
      %s333 = ssub.s32 1, %s332
      %p334 = scmp.gt.s32.totalorder %s333, 0
      %s335 = scalar_select %p334, %s333, 0
      %s336 = smul.u32 256, %s335
      %p337 = scmp.lt.s32.totalorder %s332, 0
      %s338 = scalar_select %p337, %s332, 0
      %s339 = smul.addr %s338, 2
      %s340 = scalar_lea.vmem %s2, %s339
      %s341 = sadd.s32 %s25, %s26
      %s342 = ssub.s32 1, %s341
      %p343 = scmp.gt.s32.totalorder %s342, 0
      %s344 = scalar_select %p343, %s342, 0
      %s345 = smul.u32 256, %s344
      %s346 = sadd.s32 %s25, %s26
      %s347 = ssub.s32 1, %s346
      %p348 = scmp.gt.s32.totalorder %s347, 0
      %s349 = scalar_select %p348, %s347, 0
      %s350 = smul.u32 128, %s349
      %p351 = scmp.lt.s32.totalorder %s346, 0
      %s352 = scalar_select %p351, %s346, 0
      %s353 = smul.addr %s352, 8
      %s354 = scalar_lea.vmem %s3, %s353
      %s355 = sadd.s32 %s25, %s26
      %s356 = ssub.s32 1, %s355
      %p357 = scmp.gt.s32.totalorder %s356, 0
      %s358 = scalar_select %p357, %s356, 0
      %s359 = smul.u32 128, %s358
      %p360 = scmp.lt.s32.totalorder %s25, 1
      %s361 = scalar_select %p360, %s25, 1
      %s362 = smul.addr %s361, 4
      %s363 = scalar_lea.vmem %s4, %s362
      %p364 = scmp.lt.s32.totalorder %s25, 1
      %s365 = scalar_select %p364, %s25, 1
      %s366 = smul.addr %s365, 8
      %s367 = scalar_lea.vmem %s5, %s366
      %p368 = scmp.lt.s32.totalorder %s25, 1
      %s369 = scalar_select %p368, %s25, 1
      %s370 = smul.addr %s369, 8
      %s371 = scalar_lea.vmem %s6, %s370
      %s372 = ssub.s32 0, %s327
      %p373 = scmp.lt.s32.totalorder %s372, 0
      %s374 = scalar_select %p373, 0, 255
      %s375 = sand.u32 63, %s374
      %v376 = vld [vmem:[%s326] sm:%s375]
      %s377 = ssub.s32 0, %s327
      %v378 = vstv %s377
      %vm379 = vcmp.lt.s32.totalorder %v378, 0
      %v380 = vsel %vm379, %v12, %v376
      %v381 = vlaneseq
      %v382 = vshrl.u32 %v381, 7
      %vm384 = vcmp.lt.s32.totalorder %v382, 6
      %v385 = vsel %vm384, %v380, %v12
      %s386 = smul.addr %s327, 128
      %v387 = vlaneseq
      %v388 = vand.u32 %v387, 127
      %v389 = vstv %s386
      %v390 = vadd.s32 %v388, %v389
      %vm391 = vcmp.lt.s32.totalorder %v390, 2
      %v392 = vsel %vm391, %v385, %v12
      %s394 = ssub.s32 256, 1
      %395 = vst [vmem:[#allocation17] sm:%s394] %v392
      %s396 = scalar_lea.vmem %s326, 8
      %s397 = ssub.s32 0, %s327
      %p398 = scmp.lt.s32.totalorder %s397, 0
      %s399 = scalar_select %p398, 0, 255
      %s400 = sand.u32 63, %s399
      %v401 = vld [vmem:[%s396] sm:%s400]
      %s402 = ssub.s32 0, %s327
      %v403 = vstv %s402
      %vm404 = vcmp.lt.s32.totalorder %v403, 0
      %v405 = vsel %vm404, %v12, %v401
      %v406 = vlaneseq
      %v407 = vshrl.u32 %v406, 7
      %vm409 = vcmp.lt.s32.totalorder %v407, 6
      %v410 = vsel %vm409, %v405, %v12
      %s411 = smul.addr %s327, 128
      %v412 = vlaneseq
      %v413 = vand.u32 %v412, 127
      %v414 = vstv %s411
      %v415 = vadd.s32 %v413, %v414
      %vm416 = vcmp.lt.s32.totalorder %v415, 2
      %v417 = vsel %vm416, %v410, %v12
      %s418 = scalar_lea.vmem [#allocation17], 8
      %s420 = ssub.s32 256, 1
      %421 = vst [vmem:[%s418] sm:%s420] %v417
      %s422 = scalar_lea.vmem %s326, 16
      %s423 = ssub.s32 0, %s327
      %p424 = scmp.lt.s32.totalorder %s423, 0
      %s425 = scalar_select %p424, 0, 255
      %s426 = sand.u32 63, %s425
      %v427 = vld [vmem:[%s422] sm:%s426]
      %s428 = ssub.s32 0, %s327
      %v429 = vstv %s428
      %vm430 = vcmp.lt.s32.totalorder %v429, 0
      %v431 = vsel %vm430, %v12, %v427
      %v432 = vlaneseq
      %v433 = vshrl.u32 %v432, 7
      %vm435 = vcmp.lt.s32.totalorder %v433, 6
      %v436 = vsel %vm435, %v431, %v12
      %s437 = smul.addr %s327, 128
      %v438 = vlaneseq
      %v439 = vand.u32 %v438, 127
      %v440 = vstv %s437
      %v441 = vadd.s32 %v439, %v440
      %vm442 = vcmp.lt.s32.totalorder %v441, 2
      %v443 = vsel %vm442, %v436, %v12
      %s444 = scalar_lea.vmem [#allocation17], 16
      %s446 = ssub.s32 256, 1
      %447 = vst [vmem:[%s444] sm:%s446] %v443
      %s448 = scalar_lea.vmem %s326, 24
      %s449 = ssub.s32 0, %s327
      %p450 = scmp.lt.s32.totalorder %s449, 0
      %s451 = scalar_select %p450, 0, 255
      %s452 = sand.u32 63, %s451
      %v453 = vld [vmem:[%s448] sm:%s452]
      %s454 = ssub.s32 0, %s327
      %v455 = vstv %s454
      %vm456 = vcmp.lt.s32.totalorder %v455, 0
      %v457 = vsel %vm456, %v12, %v453
      %v458 = vlaneseq
      %v459 = vshrl.u32 %v458, 7
      %vm461 = vcmp.lt.s32.totalorder %v459, 6
      %v462 = vsel %vm461, %v457, %v12
      %s463 = smul.addr %s327, 128
      %v464 = vlaneseq
      %v465 = vand.u32 %v464, 127
      %v466 = vstv %s463
      %v467 = vadd.s32 %v465, %v466
      %vm468 = vcmp.lt.s32.totalorder %v467, 2
      %v469 = vsel %vm468, %v462, %v12
      %s470 = scalar_lea.vmem [#allocation17], 24
      %s472 = ssub.s32 256, 1
      %473 = vst [vmem:[%s470] sm:%s472] %v469
      %s474 = scalar_lea.vmem %s326, 32
      %s475 = ssub.s32 0, %s327
      %p476 = scmp.lt.s32.totalorder %s475, 0
      %s477 = scalar_select %p476, 0, 255
      %s478 = sand.u32 63, %s477
      %v479 = vld [vmem:[%s474] sm:%s478]
      %s480 = ssub.s32 0, %s327
      %v481 = vstv %s480
      %vm482 = vcmp.lt.s32.totalorder %v481, 0
      %v483 = vsel %vm482, %v12, %v479
      %v484 = vlaneseq
      %v485 = vshrl.u32 %v484, 7
      %vm487 = vcmp.lt.s32.totalorder %v485, 6
      %v488 = vsel %vm487, %v483, %v12
      %s489 = smul.addr %s327, 128
      %v490 = vlaneseq
      %v491 = vand.u32 %v490, 127
      %v492 = vstv %s489
      %v493 = vadd.s32 %v491, %v492
      %vm494 = vcmp.lt.s32.totalorder %v493, 2
      %v495 = vsel %vm494, %v488, %v12
      %s496 = scalar_lea.vmem [#allocation17], 32
      %s498 = ssub.s32 256, 1
      %499 = vst [vmem:[%s496] sm:%s498] %v495
      %s500 = scalar_lea.vmem %s326, 40
      %s501 = ssub.s32 0, %s327
      %p502 = scmp.lt.s32.totalorder %s501, 0
      %s503 = scalar_select %p502, 0, 255
      %s504 = sand.u32 63, %s503
      %v505 = vld [vmem:[%s500] sm:%s504]
      %s506 = ssub.s32 0, %s327
      %v507 = vstv %s506
      %vm508 = vcmp.lt.s32.totalorder %v507, 0
      %v509 = vsel %vm508, %v12, %v505
      %v510 = vlaneseq
      %v511 = vshrl.u32 %v510, 7
      %vm513 = vcmp.lt.s32.totalorder %v511, 6
      %v514 = vsel %vm513, %v509, %v12
      %s515 = smul.addr %s327, 128
      %v516 = vlaneseq
      %v517 = vand.u32 %v516, 127
      %v518 = vstv %s515
      %v519 = vadd.s32 %v517, %v518
      %vm520 = vcmp.lt.s32.totalorder %v519, 2
      %v521 = vsel %vm520, %v514, %v12
      %s522 = scalar_lea.vmem [#allocation17], 40
      %s524 = ssub.s32 256, 1
      %525 = vst [vmem:[%s522] sm:%s524] %v521
      %s526 = scalar_lea.vmem %s326, 48
      %s527 = ssub.s32 0, %s327
      %p528 = scmp.lt.s32.totalorder %s527, 0
      %s529 = scalar_select %p528, 0, 255
      %s530 = sand.u32 63, %s529
      %v531 = vld [vmem:[%s526] sm:%s530]
      %s532 = ssub.s32 0, %s327
      %v533 = vstv %s532
      %vm534 = vcmp.lt.s32.totalorder %v533, 0
      %v535 = vsel %vm534, %v12, %v531
      %v536 = vlaneseq
      %v537 = vshrl.u32 %v536, 7
      %vm539 = vcmp.lt.s32.totalorder %v537, 6
      %v540 = vsel %vm539, %v535, %v12
      %s541 = smul.addr %s327, 128
      %v542 = vlaneseq
      %v543 = vand.u32 %v542, 127
      %v544 = vstv %s541
      %v545 = vadd.s32 %v543, %v544
      %vm546 = vcmp.lt.s32.totalorder %v545, 2
      %v547 = vsel %vm546, %v540, %v12
      %s548 = scalar_lea.vmem [#allocation17], 48
      %s550 = ssub.s32 256, 1
      %551 = vst [vmem:[%s548] sm:%s550] %v547
      %s552 = scalar_lea.vmem %s326, 56
      %s553 = ssub.s32 0, %s327
      %p554 = scmp.lt.s32.totalorder %s553, 0
      %s555 = scalar_select %p554, 0, 255
      %s556 = sand.u32 63, %s555
      %v557 = vld [vmem:[%s552] sm:%s556]
      %s558 = ssub.s32 0, %s327
      %v559 = vstv %s558
      %vm560 = vcmp.lt.s32.totalorder %v559, 0
      %v561 = vsel %vm560, %v12, %v557
      %v562 = vlaneseq
      %v563 = vshrl.u32 %v562, 7
      %vm565 = vcmp.lt.s32.totalorder %v563, 6
      %v566 = vsel %vm565, %v561, %v12
      %s567 = smul.addr %s327, 128
      %v568 = vlaneseq
      %v569 = vand.u32 %v568, 127
      %v570 = vstv %s567
      %v571 = vadd.s32 %v569, %v570
      %vm572 = vcmp.lt.s32.totalorder %v571, 2
      %v573 = vsel %vm572, %v566, %v12
      %s574 = scalar_lea.vmem [#allocation17], 56
      %s576 = ssub.s32 256, 1
      %577 = vst [vmem:[%s574] sm:%s576] %v573
      %s578 = scalar_lea.vmem %s326, 64
      %s579 = ssub.s32 0, %s327
      %p580 = scmp.lt.s32.totalorder %s579, 0
      %s581 = scalar_select %p580, 0, 255
      %s582 = sand.u32 63, %s581
      %v583 = vld [vmem:[%s578] sm:%s582]
      %s584 = ssub.s32 0, %s327
      %v585 = vstv %s584
      %vm586 = vcmp.lt.s32.totalorder %v585, 0
      %v587 = vsel %vm586, %v12, %v583
      %v588 = vlaneseq
      %v589 = vshrl.u32 %v588, 7
      %vm591 = vcmp.lt.s32.totalorder %v589, 6
      %v592 = vsel %vm591, %v587, %v12
      %s593 = smul.addr %s327, 128
      %v594 = vlaneseq
      %v595 = vand.u32 %v594, 127
      %v596 = vstv %s593
      %v597 = vadd.s32 %v595, %v596
      %vm598 = vcmp.lt.s32.totalorder %v597, 2
      %v599 = vsel %vm598, %v592, %v12
      %s600 = scalar_lea.vmem [#allocation17], 64
      %s602 = ssub.s32 256, 1
      %603 = vst [vmem:[%s600] sm:%s602] %v599
      %s604 = scalar_lea.vmem %s326, 72
      %s605 = ssub.s32 0, %s327
      %p606 = scmp.lt.s32.totalorder %s605, 0
      %s607 = scalar_select %p606, 0, 255
      %s608 = sand.u32 63, %s607
      %v609 = vld [vmem:[%s604] sm:%s608]
      %s610 = ssub.s32 0, %s327
      %v611 = vstv %s610
      %vm612 = vcmp.lt.s32.totalorder %v611, 0
      %v613 = vsel %vm612, %v12, %v609
      %v614 = vlaneseq
      %v615 = vshrl.u32 %v614, 7
      %vm617 = vcmp.lt.s32.totalorder %v615, 6
      %v618 = vsel %vm617, %v613, %v12
      %s619 = smul.addr %s327, 128
      %v620 = vlaneseq
      %v621 = vand.u32 %v620, 127
      %v622 = vstv %s619
      %v623 = vadd.s32 %v621, %v622
      %vm624 = vcmp.lt.s32.totalorder %v623, 2
      %v625 = vsel %vm624, %v618, %v12
      %s626 = scalar_lea.vmem [#allocation17], 72
      %s628 = ssub.s32 256, 1
      %629 = vst [vmem:[%s626] sm:%s628] %v625
      %s630 = scalar_lea.vmem %s326, 80
      %s631 = ssub.s32 0, %s327
      %p632 = scmp.lt.s32.totalorder %s631, 0
      %s633 = scalar_select %p632, 0, 255
      %s634 = sand.u32 63, %s633
      %v635 = vld [vmem:[%s630] sm:%s634]
      %s636 = ssub.s32 0, %s327
      %v637 = vstv %s636
      %vm638 = vcmp.lt.s32.totalorder %v637, 0
      %v639 = vsel %vm638, %v12, %v635
      %v640 = vlaneseq
      %v641 = vshrl.u32 %v640, 7
      %vm643 = vcmp.lt.s32.totalorder %v641, 6
      %v644 = vsel %vm643, %v639, %v12
      %s645 = smul.addr %s327, 128
      %v646 = vlaneseq
      %v647 = vand.u32 %v646, 127
      %v648 = vstv %s645
      %v649 = vadd.s32 %v647, %v648
      %vm650 = vcmp.lt.s32.totalorder %v649, 2
      %v651 = vsel %vm650, %v644, %v12
      %s652 = scalar_lea.vmem [#allocation17], 80
      %s654 = ssub.s32 256, 1
      %655 = vst [vmem:[%s652] sm:%s654] %v651
      %s656 = scalar_lea.vmem %s326, 88
      %s657 = ssub.s32 0, %s327
      %p658 = scmp.lt.s32.totalorder %s657, 0
      %s659 = scalar_select %p658, 0, 255
      %s660 = sand.u32 63, %s659
      %v661 = vld [vmem:[%s656] sm:%s660]
      %s662 = ssub.s32 0, %s327
      %v663 = vstv %s662
      %vm664 = vcmp.lt.s32.totalorder %v663, 0
      %v665 = vsel %vm664, %v12, %v661
      %v666 = vlaneseq
      %v667 = vshrl.u32 %v666, 7
      %vm669 = vcmp.lt.s32.totalorder %v667, 6
      %v670 = vsel %vm669, %v665, %v12
      %s671 = smul.addr %s327, 128
      %v672 = vlaneseq
      %v673 = vand.u32 %v672, 127
      %v674 = vstv %s671
      %v675 = vadd.s32 %v673, %v674
      %vm676 = vcmp.lt.s32.totalorder %v675, 2
      %v677 = vsel %vm676, %v670, %v12
      %s678 = scalar_lea.vmem [#allocation17], 88
      %s680 = ssub.s32 256, 1
      %681 = vst [vmem:[%s678] sm:%s680] %v677
      %s682 = scalar_lea.vmem %s326, 96
      %s683 = ssub.s32 0, %s327
      %p684 = scmp.lt.s32.totalorder %s683, 0
      %s685 = scalar_select %p684, 0, 255
      %s686 = sand.u32 63, %s685
      %v687 = vld [vmem:[%s682] sm:%s686]
      %s688 = ssub.s32 0, %s327
      %v689 = vstv %s688
      %vm690 = vcmp.lt.s32.totalorder %v689, 0
      %v691 = vsel %vm690, %v12, %v687
      %v692 = vlaneseq
      %v693 = vshrl.u32 %v692, 7
      %vm695 = vcmp.lt.s32.totalorder %v693, 6
      %v696 = vsel %vm695, %v691, %v12
      %s697 = smul.addr %s327, 128
      %v698 = vlaneseq
      %v699 = vand.u32 %v698, 127
      %v700 = vstv %s697
      %v701 = vadd.s32 %v699, %v700
      %vm702 = vcmp.lt.s32.totalorder %v701, 2
      %v703 = vsel %vm702, %v696, %v12
      %s704 = scalar_lea.vmem [#allocation17], 96
      %s706 = ssub.s32 256, 1
      %707 = vst [vmem:[%s704] sm:%s706] %v703
      %s708 = scalar_lea.vmem %s326, 104
      %s709 = ssub.s32 0, %s327
      %p710 = scmp.lt.s32.totalorder %s709, 0
      %s711 = scalar_select %p710, 0, 255
      %s712 = sand.u32 63, %s711
      %v713 = vld [vmem:[%s708] sm:%s712]
      %s714 = ssub.s32 0, %s327
      %v715 = vstv %s714
      %vm716 = vcmp.lt.s32.totalorder %v715, 0
      %v717 = vsel %vm716, %v12, %v713
      %v718 = vlaneseq
      %v719 = vshrl.u32 %v718, 7
      %vm721 = vcmp.lt.s32.totalorder %v719, 6
      %v722 = vsel %vm721, %v717, %v12
      %s723 = smul.addr %s327, 128
      %v724 = vlaneseq
      %v725 = vand.u32 %v724, 127
      %v726 = vstv %s723
      %v727 = vadd.s32 %v725, %v726
      %vm728 = vcmp.lt.s32.totalorder %v727, 2
      %v729 = vsel %vm728, %v722, %v12
      %s730 = scalar_lea.vmem [#allocation17], 104
      %s732 = ssub.s32 256, 1
      %733 = vst [vmem:[%s730] sm:%s732] %v729
      %s734 = scalar_lea.vmem %s326, 112
      %s735 = ssub.s32 0, %s327
      %p736 = scmp.lt.s32.totalorder %s735, 0
      %s737 = scalar_select %p736, 0, 255
      %s738 = sand.u32 63, %s737
      %v739 = vld [vmem:[%s734] sm:%s738]
      %s740 = ssub.s32 0, %s327
      %v741 = vstv %s740
      %vm742 = vcmp.lt.s32.totalorder %v741, 0
      %v743 = vsel %vm742, %v12, %v739
      %v744 = vlaneseq
      %v745 = vshrl.u32 %v744, 7
      %vm747 = vcmp.lt.s32.totalorder %v745, 6
      %v748 = vsel %vm747, %v743, %v12
      %s749 = smul.addr %s327, 128
      %v750 = vlaneseq
      %v751 = vand.u32 %v750, 127
      %v752 = vstv %s749
      %v753 = vadd.s32 %v751, %v752
      %vm754 = vcmp.lt.s32.totalorder %v753, 2
      %v755 = vsel %vm754, %v748, %v12
      %s756 = scalar_lea.vmem [#allocation17], 112
      %s758 = ssub.s32 256, 1
      %759 = vst [vmem:[%s756] sm:%s758] %v755
      %s760 = scalar_lea.vmem %s326, 120
      %s761 = ssub.s32 0, %s327
      %p762 = scmp.lt.s32.totalorder %s761, 0
      %s763 = scalar_select %p762, 0, 255
      %s764 = sand.u32 63, %s763
      %v765 = vld [vmem:[%s760] sm:%s764]
      %s766 = ssub.s32 0, %s327
      %v767 = vstv %s766
      %vm768 = vcmp.lt.s32.totalorder %v767, 0
      %v769 = vsel %vm768, %v12, %v765
      %v770 = vlaneseq
      %v771 = vshrl.u32 %v770, 7
      %vm773 = vcmp.lt.s32.totalorder %v771, 6
      %v774 = vsel %vm773, %v769, %v12
      %s775 = smul.addr %s327, 128
      %v776 = vlaneseq
      %v777 = vand.u32 %v776, 127
      %v778 = vstv %s775
      %v779 = vadd.s32 %v777, %v778
      %vm780 = vcmp.lt.s32.totalorder %v779, 2
      %v781 = vsel %vm780, %v774, %v12
      %s782 = scalar_lea.vmem [#allocation17], 120
      %s784 = ssub.s32 256, 1
      %785 = vst [vmem:[%s782] sm:%s784] %v781
      %s786 = scalar_lea.vmem %s326, 128
      %s787 = ssub.s32 0, %s327
      %p788 = scmp.lt.s32.totalorder %s787, 0
      %s789 = scalar_select %p788, 0, 255
      %s790 = sand.u32 63, %s789
      %v791 = vld [vmem:[%s786] sm:%s790]
      %s792 = ssub.s32 0, %s327
      %v793 = vstv %s792
      %vm794 = vcmp.lt.s32.totalorder %v793, 0
      %v795 = vsel %vm794, %v12, %v791
      %v796 = vlaneseq
      %v797 = vshrl.u32 %v796, 7
      %vm799 = vcmp.lt.s32.totalorder %v797, 6
      %v800 = vsel %vm799, %v795, %v12
      %s801 = smul.addr %s327, 128
      %v802 = vlaneseq
      %v803 = vand.u32 %v802, 127
      %v804 = vstv %s801
      %v805 = vadd.s32 %v803, %v804
      %vm806 = vcmp.lt.s32.totalorder %v805, 2
      %v807 = vsel %vm806, %v800, %v12
      %s808 = scalar_lea.vmem [#allocation17], 128
      %s810 = ssub.s32 256, 1
      %811 = vst [vmem:[%s808] sm:%s810] %v807
      %s812 = scalar_lea.vmem %s326, 136
      %s813 = ssub.s32 0, %s327
      %p814 = scmp.lt.s32.totalorder %s813, 0
      %s815 = scalar_select %p814, 0, 255
      %s816 = sand.u32 63, %s815
      %v817 = vld [vmem:[%s812] sm:%s816]
      %s818 = ssub.s32 0, %s327
      %v819 = vstv %s818
      %vm820 = vcmp.lt.s32.totalorder %v819, 0
      %v821 = vsel %vm820, %v12, %v817
      %v822 = vlaneseq
      %v823 = vshrl.u32 %v822, 7
      %vm825 = vcmp.lt.s32.totalorder %v823, 6
      %v826 = vsel %vm825, %v821, %v12
      %s827 = smul.addr %s327, 128
      %v828 = vlaneseq
      %v829 = vand.u32 %v828, 127
      %v830 = vstv %s827
      %v831 = vadd.s32 %v829, %v830
      %vm832 = vcmp.lt.s32.totalorder %v831, 2
      %v833 = vsel %vm832, %v826, %v12
      %s834 = scalar_lea.vmem [#allocation17], 136
      %s836 = ssub.s32 256, 1
      %837 = vst [vmem:[%s834] sm:%s836] %v833
      %s838 = scalar_lea.vmem %s326, 144
      %s839 = ssub.s32 0, %s327
      %p840 = scmp.lt.s32.totalorder %s839, 0
      %s841 = scalar_select %p840, 0, 255
      %s842 = sand.u32 63, %s841
      %v843 = vld [vmem:[%s838] sm:%s842]
      %s844 = ssub.s32 0, %s327
      %v845 = vstv %s844
      %vm846 = vcmp.lt.s32.totalorder %v845, 0
      %v847 = vsel %vm846, %v12, %v843
      %v848 = vlaneseq
      %v849 = vshrl.u32 %v848, 7
      %vm851 = vcmp.lt.s32.totalorder %v849, 6
      %v852 = vsel %vm851, %v847, %v12
      %s853 = smul.addr %s327, 128
      %v854 = vlaneseq
      %v855 = vand.u32 %v854, 127
      %v856 = vstv %s853
      %v857 = vadd.s32 %v855, %v856
      %vm858 = vcmp.lt.s32.totalorder %v857, 2
      %v859 = vsel %vm858, %v852, %v12
      %s860 = scalar_lea.vmem [#allocation17], 144
      %s862 = ssub.s32 256, 1
      %863 = vst [vmem:[%s860] sm:%s862] %v859
      %s864 = scalar_lea.vmem %s326, 152
      %s865 = ssub.s32 0, %s327
      %p866 = scmp.lt.s32.totalorder %s865, 0
      %s867 = scalar_select %p866, 0, 255
      %s868 = sand.u32 63, %s867
      %v869 = vld [vmem:[%s864] sm:%s868]
      %s870 = ssub.s32 0, %s327
      %v871 = vstv %s870
      %vm872 = vcmp.lt.s32.totalorder %v871, 0
      %v873 = vsel %vm872, %v12, %v869
      %v874 = vlaneseq
      %v875 = vshrl.u32 %v874, 7
      %vm877 = vcmp.lt.s32.totalorder %v875, 6
      %v878 = vsel %vm877, %v873, %v12
      %s879 = smul.addr %s327, 128
      %v880 = vlaneseq
      %v881 = vand.u32 %v880, 127
      %v882 = vstv %s879
      %v883 = vadd.s32 %v881, %v882
      %vm884 = vcmp.lt.s32.totalorder %v883, 2
      %v885 = vsel %vm884, %v878, %v12
      %s886 = scalar_lea.vmem [#allocation17], 152
      %s888 = ssub.s32 256, 1
      %889 = vst [vmem:[%s886] sm:%s888] %v885
      %s890 = scalar_lea.vmem %s326, 160
      %s891 = ssub.s32 0, %s327
      %p892 = scmp.lt.s32.totalorder %s891, 0
      %s893 = scalar_select %p892, 0, 255
      %s894 = sand.u32 63, %s893
      %v895 = vld [vmem:[%s890] sm:%s894]
      %s896 = ssub.s32 0, %s327
      %v897 = vstv %s896
      %vm898 = vcmp.lt.s32.totalorder %v897, 0
      %v899 = vsel %vm898, %v12, %v895
      %v900 = vlaneseq
      %v901 = vshrl.u32 %v900, 7
      %vm903 = vcmp.lt.s32.totalorder %v901, 6
      %v904 = vsel %vm903, %v899, %v12
      %s905 = smul.addr %s327, 128
      %v906 = vlaneseq
      %v907 = vand.u32 %v906, 127
      %v908 = vstv %s905
      %v909 = vadd.s32 %v907, %v908
      %vm910 = vcmp.lt.s32.totalorder %v909, 2
      %v911 = vsel %vm910, %v904, %v12
      %s912 = scalar_lea.vmem [#allocation17], 160
      %s914 = ssub.s32 256, 1
      %915 = vst [vmem:[%s912] sm:%s914] %v911
      %s916 = scalar_lea.vmem %s326, 168
      %s917 = ssub.s32 0, %s327
      %p918 = scmp.lt.s32.totalorder %s917, 0
      %s919 = scalar_select %p918, 0, 255
      %s920 = sand.u32 63, %s919
      %v921 = vld [vmem:[%s916] sm:%s920]
      %s922 = ssub.s32 0, %s327
      %v923 = vstv %s922
      %vm924 = vcmp.lt.s32.totalorder %v923, 0
      %v925 = vsel %vm924, %v12, %v921
      %v926 = vlaneseq
      %v927 = vshrl.u32 %v926, 7
      %vm929 = vcmp.lt.s32.totalorder %v927, 6
      %v930 = vsel %vm929, %v925, %v12
      %s931 = smul.addr %s327, 128
      %v932 = vlaneseq
      %v933 = vand.u32 %v932, 127
      %v934 = vstv %s931
      %v935 = vadd.s32 %v933, %v934
      %vm936 = vcmp.lt.s32.totalorder %v935, 2
      %v937 = vsel %vm936, %v930, %v12
      %s938 = scalar_lea.vmem [#allocation17], 168
      %s940 = ssub.s32 256, 1
      %941 = vst [vmem:[%s938] sm:%s940] %v937
      %s942 = scalar_lea.vmem %s326, 176
      %s943 = ssub.s32 0, %s327
      %p944 = scmp.lt.s32.totalorder %s943, 0
      %s945 = scalar_select %p944, 0, 255
      %s946 = sand.u32 63, %s945
      %v947 = vld [vmem:[%s942] sm:%s946]
      %s948 = ssub.s32 0, %s327
      %v949 = vstv %s948
      %vm950 = vcmp.lt.s32.totalorder %v949, 0
      %v951 = vsel %vm950, %v12, %v947
      %v952 = vlaneseq
      %v953 = vshrl.u32 %v952, 7
      %vm955 = vcmp.lt.s32.totalorder %v953, 6
      %v956 = vsel %vm955, %v951, %v12
      %s957 = smul.addr %s327, 128
      %v958 = vlaneseq
      %v959 = vand.u32 %v958, 127
      %v960 = vstv %s957
      %v961 = vadd.s32 %v959, %v960
      %vm962 = vcmp.lt.s32.totalorder %v961, 2
      %v963 = vsel %vm962, %v956, %v12
      %s964 = scalar_lea.vmem [#allocation17], 176
      %s966 = ssub.s32 256, 1
      %967 = vst [vmem:[%s964] sm:%s966] %v963
      %s968 = scalar_lea.vmem %s326, 184
      %s969 = ssub.s32 0, %s327
      %p970 = scmp.lt.s32.totalorder %s969, 0
      %s971 = scalar_select %p970, 0, 255
      %s972 = sand.u32 63, %s971
      %v973 = vld [vmem:[%s968] sm:%s972]
      %s974 = ssub.s32 0, %s327
      %v975 = vstv %s974
      %vm976 = vcmp.lt.s32.totalorder %v975, 0
      %v977 = vsel %vm976, %v12, %v973
      %v978 = vlaneseq
      %v979 = vshrl.u32 %v978, 7
      %vm981 = vcmp.lt.s32.totalorder %v979, 6
      %v982 = vsel %vm981, %v977, %v12
      %s983 = smul.addr %s327, 128
      %v984 = vlaneseq
      %v985 = vand.u32 %v984, 127
      %v986 = vstv %s983
      %v987 = vadd.s32 %v985, %v986
      %vm988 = vcmp.lt.s32.totalorder %v987, 2
      %v989 = vsel %vm988, %v982, %v12
      %s990 = scalar_lea.vmem [#allocation17], 184
      %s992 = ssub.s32 256, 1
      %993 = vst [vmem:[%s990] sm:%s992] %v989
      %s994 = scalar_lea.vmem %s326, 192
      %s995 = ssub.s32 0, %s327
      %p996 = scmp.lt.s32.totalorder %s995, 0
      %s997 = scalar_select %p996, 0, 255
      %s998 = sand.u32 63, %s997
      %v999 = vld [vmem:[%s994] sm:%s998]
      %s1000 = ssub.s32 0, %s327
      %v1001 = vstv %s1000
      %vm1002 = vcmp.lt.s32.totalorder %v1001, 0
      %v1003 = vsel %vm1002, %v12, %v999
      %v1004 = vlaneseq
      %v1005 = vshrl.u32 %v1004, 7
      %vm1007 = vcmp.lt.s32.totalorder %v1005, 6
      %v1008 = vsel %vm1007, %v1003, %v12
      %s1009 = smul.addr %s327, 128
      %v1010 = vlaneseq
      %v1011 = vand.u32 %v1010, 127
      %v1012 = vstv %s1009
      %v1013 = vadd.s32 %v1011, %v1012
      %vm1014 = vcmp.lt.s32.totalorder %v1013, 2
      %v1015 = vsel %vm1014, %v1008, %v12
      %s1016 = scalar_lea.vmem [#allocation17], 192
      %s1018 = ssub.s32 256, 1
      %1019 = vst [vmem:[%s1016] sm:%s1018] %v1015
      %s1020 = scalar_lea.vmem %s326, 200
      %s1021 = ssub.s32 0, %s327
      %p1022 = scmp.lt.s32.totalorder %s1021, 0
      %s1023 = scalar_select %p1022, 0, 255
      %s1024 = sand.u32 63, %s1023
      %v1025 = vld [vmem:[%s1020] sm:%s1024]
      %s1026 = ssub.s32 0, %s327
      %v1027 = vstv %s1026
      %vm1028 = vcmp.lt.s32.totalorder %v1027, 0
      %v1029 = vsel %vm1028, %v12, %v1025
      %v1030 = vlaneseq
      %v1031 = vshrl.u32 %v1030, 7
      %vm1033 = vcmp.lt.s32.totalorder %v1031, 6
      %v1034 = vsel %vm1033, %v1029, %v12
      %s1035 = smul.addr %s327, 128
      %v1036 = vlaneseq
      %v1037 = vand.u32 %v1036, 127
      %v1038 = vstv %s1035
      %v1039 = vadd.s32 %v1037, %v1038
      %vm1040 = vcmp.lt.s32.totalorder %v1039, 2
      %v1041 = vsel %vm1040, %v1034, %v12
      %s1042 = scalar_lea.vmem [#allocation17], 200
      %s1044 = ssub.s32 256, 1
      %1045 = vst [vmem:[%s1042] sm:%s1044] %v1041
      %s1046 = scalar_lea.vmem %s326, 208
      %s1047 = ssub.s32 0, %s327
      %p1048 = scmp.lt.s32.totalorder %s1047, 0
      %s1049 = scalar_select %p1048, 0, 255
      %s1050 = sand.u32 63, %s1049
      %v1051 = vld [vmem:[%s1046] sm:%s1050]
      %s1052 = ssub.s32 0, %s327
      %v1053 = vstv %s1052
      %vm1054 = vcmp.lt.s32.totalorder %v1053, 0
      %v1055 = vsel %vm1054, %v12, %v1051
      %v1056 = vlaneseq
      %v1057 = vshrl.u32 %v1056, 7
      %vm1059 = vcmp.lt.s32.totalorder %v1057, 6
      %v1060 = vsel %vm1059, %v1055, %v12
      %s1061 = smul.addr %s327, 128
      %v1062 = vlaneseq
      %v1063 = vand.u32 %v1062, 127
      %v1064 = vstv %s1061
      %v1065 = vadd.s32 %v1063, %v1064
      %vm1066 = vcmp.lt.s32.totalorder %v1065, 2
      %v1067 = vsel %vm1066, %v1060, %v12
      %s1068 = scalar_lea.vmem [#allocation17], 208
      %s1070 = ssub.s32 256, 1
      %1071 = vst [vmem:[%s1068] sm:%s1070] %v1067
      %s1072 = scalar_lea.vmem %s326, 216
      %s1073 = ssub.s32 0, %s327
      %p1074 = scmp.lt.s32.totalorder %s1073, 0
      %s1075 = scalar_select %p1074, 0, 255
      %s1076 = sand.u32 63, %s1075
      %v1077 = vld [vmem:[%s1072] sm:%s1076]
      %s1078 = ssub.s32 0, %s327
      %v1079 = vstv %s1078
      %vm1080 = vcmp.lt.s32.totalorder %v1079, 0
      %v1081 = vsel %vm1080, %v12, %v1077
      %v1082 = vlaneseq
      %v1083 = vshrl.u32 %v1082, 7
      %vm1085 = vcmp.lt.s32.totalorder %v1083, 6
      %v1086 = vsel %vm1085, %v1081, %v12
      %s1087 = smul.addr %s327, 128
      %v1088 = vlaneseq
      %v1089 = vand.u32 %v1088, 127
      %v1090 = vstv %s1087
      %v1091 = vadd.s32 %v1089, %v1090
      %vm1092 = vcmp.lt.s32.totalorder %v1091, 2
      %v1093 = vsel %vm1092, %v1086, %v12
      %s1094 = scalar_lea.vmem [#allocation17], 216
      %s1096 = ssub.s32 256, 1
      %1097 = vst [vmem:[%s1094] sm:%s1096] %v1093
      %s1098 = scalar_lea.vmem %s326, 224
      %s1099 = ssub.s32 0, %s327
      %p1100 = scmp.lt.s32.totalorder %s1099, 0
      %s1101 = scalar_select %p1100, 0, 255
      %s1102 = sand.u32 63, %s1101
      %v1103 = vld [vmem:[%s1098] sm:%s1102]
      %s1104 = ssub.s32 0, %s327
      %v1105 = vstv %s1104
      %vm1106 = vcmp.lt.s32.totalorder %v1105, 0
      %v1107 = vsel %vm1106, %v12, %v1103
      %v1108 = vlaneseq
      %v1109 = vshrl.u32 %v1108, 7
      %vm1111 = vcmp.lt.s32.totalorder %v1109, 6
      %v1112 = vsel %vm1111, %v1107, %v12
      %s1113 = smul.addr %s327, 128
      %v1114 = vlaneseq
      %v1115 = vand.u32 %v1114, 127
      %v1116 = vstv %s1113
      %v1117 = vadd.s32 %v1115, %v1116
      %vm1118 = vcmp.lt.s32.totalorder %v1117, 2
      %v1119 = vsel %vm1118, %v1112, %v12
      %s1120 = scalar_lea.vmem [#allocation17], 224
      %s1122 = ssub.s32 256, 1
      %1123 = vst [vmem:[%s1120] sm:%s1122] %v1119
      %s1124 = scalar_lea.vmem %s326, 232
      %s1125 = ssub.s32 0, %s327
      %p1126 = scmp.lt.s32.totalorder %s1125, 0
      %s1127 = scalar_select %p1126, 0, 255
      %s1128 = sand.u32 63, %s1127
      %v1129 = vld [vmem:[%s1124] sm:%s1128]
      %s1130 = ssub.s32 0, %s327
      %v1131 = vstv %s1130
      %vm1132 = vcmp.lt.s32.totalorder %v1131, 0
      %v1133 = vsel %vm1132, %v12, %v1129
      %v1134 = vlaneseq
      %v1135 = vshrl.u32 %v1134, 7
      %vm1137 = vcmp.lt.s32.totalorder %v1135, 6
      %v1138 = vsel %vm1137, %v1133, %v12
      %s1139 = smul.addr %s327, 128
      %v1140 = vlaneseq
      %v1141 = vand.u32 %v1140, 127
      %v1142 = vstv %s1139
      %v1143 = vadd.s32 %v1141, %v1142
      %vm1144 = vcmp.lt.s32.totalorder %v1143, 2
      %v1145 = vsel %vm1144, %v1138, %v12
      %s1146 = scalar_lea.vmem [#allocation17], 232
      %s1148 = ssub.s32 256, 1
      %1149 = vst [vmem:[%s1146] sm:%s1148] %v1145
      %s1150 = scalar_lea.vmem %s326, 240
      %s1151 = ssub.s32 0, %s327
      %p1152 = scmp.lt.s32.totalorder %s1151, 0
      %s1153 = scalar_select %p1152, 0, 255
      %s1154 = sand.u32 63, %s1153
      %v1155 = vld [vmem:[%s1150] sm:%s1154]
      %s1156 = ssub.s32 0, %s327
      %v1157 = vstv %s1156
      %vm1158 = vcmp.lt.s32.totalorder %v1157, 0
      %v1159 = vsel %vm1158, %v12, %v1155
      %v1160 = vlaneseq
      %v1161 = vshrl.u32 %v1160, 7
      %vm1163 = vcmp.lt.s32.totalorder %v1161, 6
      %v1164 = vsel %vm1163, %v1159, %v12
      %s1165 = smul.addr %s327, 128
      %v1166 = vlaneseq
      %v1167 = vand.u32 %v1166, 127
      %v1168 = vstv %s1165
      %v1169 = vadd.s32 %v1167, %v1168
      %vm1170 = vcmp.lt.s32.totalorder %v1169, 2
      %v1171 = vsel %vm1170, %v1164, %v12
      %s1172 = scalar_lea.vmem [#allocation17], 240
      %s1174 = ssub.s32 256, 1
      %1175 = vst [vmem:[%s1172] sm:%s1174] %v1171
      %s1176 = scalar_lea.vmem %s326, 248
      %s1177 = ssub.s32 0, %s327
      %p1178 = scmp.lt.s32.totalorder %s1177, 0
      %s1179 = scalar_select %p1178, 0, 255
      %s1180 = sand.u32 63, %s1179
      %v1181 = vld [vmem:[%s1176] sm:%s1180]
      %s1182 = ssub.s32 0, %s327
      %v1183 = vstv %s1182
      %vm1184 = vcmp.lt.s32.totalorder %v1183, 0
      %v1185 = vsel %vm1184, %v12, %v1181
      %v1186 = vlaneseq
      %v1187 = vshrl.u32 %v1186, 7
      %vm1189 = vcmp.lt.s32.totalorder %v1187, 6
      %v1190 = vsel %vm1189, %v1185, %v12
      %s1191 = smul.addr %s327, 128
      %v1192 = vlaneseq
      %v1193 = vand.u32 %v1192, 127
      %v1194 = vstv %s1191
      %v1195 = vadd.s32 %v1193, %v1194
      %vm1196 = vcmp.lt.s32.totalorder %v1195, 2
      %v1197 = vsel %vm1196, %v1190, %v12
      %s1198 = scalar_lea.vmem [#allocation17], 248
      %s1200 = ssub.s32 256, 1
      %1201 = vst [vmem:[%s1198] sm:%s1200] %v1197
      %s1202 = scalar_lea.vmem %s326, 256
      %s1203 = ssub.s32 0, %s327
      %p1204 = scmp.lt.s32.totalorder %s1203, 0
      %s1205 = scalar_select %p1204, 0, 255
      %s1206 = sand.u32 63, %s1205
      %v1207 = vld [vmem:[%s1202] sm:%s1206]
      %s1208 = ssub.s32 0, %s327
      %v1209 = vstv %s1208
      %vm1210 = vcmp.lt.s32.totalorder %v1209, 0
      %v1211 = vsel %vm1210, %v12, %v1207
      %v1212 = vlaneseq
      %v1213 = vshrl.u32 %v1212, 7
      %vm1215 = vcmp.lt.s32.totalorder %v1213, 6
      %v1216 = vsel %vm1215, %v1211, %v12
      %s1217 = smul.addr %s327, 128
      %v1218 = vlaneseq
      %v1219 = vand.u32 %v1218, 127
      %v1220 = vstv %s1217
      %v1221 = vadd.s32 %v1219, %v1220
      %vm1222 = vcmp.lt.s32.totalorder %v1221, 2
      %v1223 = vsel %vm1222, %v1216, %v12
      %s1224 = scalar_lea.vmem [#allocation17], 256
      %s1226 = ssub.s32 256, 1
      %1227 = vst [vmem:[%s1224] sm:%s1226] %v1223
      %s1228 = scalar_lea.vmem %s326, 264
      %s1229 = ssub.s32 0, %s327
      %p1230 = scmp.lt.s32.totalorder %s1229, 0
      %s1231 = scalar_select %p1230, 0, 255
      %s1232 = sand.u32 63, %s1231
      %v1233 = vld [vmem:[%s1228] sm:%s1232]
      %s1234 = ssub.s32 0, %s327
      %v1235 = vstv %s1234
      %vm1236 = vcmp.lt.s32.totalorder %v1235, 0
      %v1237 = vsel %vm1236, %v12, %v1233
      %v1238 = vlaneseq
      %v1239 = vshrl.u32 %v1238, 7
      %vm1241 = vcmp.lt.s32.totalorder %v1239, 6
      %v1242 = vsel %vm1241, %v1237, %v12
      %s1243 = smul.addr %s327, 128
      %v1244 = vlaneseq
      %v1245 = vand.u32 %v1244, 127
      %v1246 = vstv %s1243
      %v1247 = vadd.s32 %v1245, %v1246
      %vm1248 = vcmp.lt.s32.totalorder %v1247, 2
      %v1249 = vsel %vm1248, %v1242, %v12
      %s1250 = scalar_lea.vmem [#allocation17], 264
      %s1252 = ssub.s32 256, 1
      %1253 = vst [vmem:[%s1250] sm:%s1252] %v1249
      %s1254 = scalar_lea.vmem %s326, 272
      %s1255 = ssub.s32 0, %s327
      %p1256 = scmp.lt.s32.totalorder %s1255, 0
      %s1257 = scalar_select %p1256, 0, 255
      %s1258 = sand.u32 63, %s1257
      %v1259 = vld [vmem:[%s1254] sm:%s1258]
      %s1260 = ssub.s32 0, %s327
      %v1261 = vstv %s1260
      %vm1262 = vcmp.lt.s32.totalorder %v1261, 0
      %v1263 = vsel %vm1262, %v12, %v1259
      %v1264 = vlaneseq
      %v1265 = vshrl.u32 %v1264, 7
      %vm1267 = vcmp.lt.s32.totalorder %v1265, 6
      %v1268 = vsel %vm1267, %v1263, %v12
      %s1269 = smul.addr %s327, 128
      %v1270 = vlaneseq
      %v1271 = vand.u32 %v1270, 127
      %v1272 = vstv %s1269
      %v1273 = vadd.s32 %v1271, %v1272
      %vm1274 = vcmp.lt.s32.totalorder %v1273, 2
      %v1275 = vsel %vm1274, %v1268, %v12
      %s1276 = scalar_lea.vmem [#allocation17], 272
      %s1278 = ssub.s32 256, 1
      %1279 = vst [vmem:[%s1276] sm:%s1278] %v1275
      %s1280 = scalar_lea.vmem %s326, 280
      %s1281 = ssub.s32 0, %s327
      %p1282 = scmp.lt.s32.totalorder %s1281, 0
      %s1283 = scalar_select %p1282, 0, 255
      %s1284 = sand.u32 63, %s1283
      %v1285 = vld [vmem:[%s1280] sm:%s1284]
      %s1286 = ssub.s32 0, %s327
      %v1287 = vstv %s1286
      %vm1288 = vcmp.lt.s32.totalorder %v1287, 0
      %v1289 = vsel %vm1288, %v12, %v1285
      %v1290 = vlaneseq
      %v1291 = vshrl.u32 %v1290, 7
      %vm1293 = vcmp.lt.s32.totalorder %v1291, 6
      %v1294 = vsel %vm1293, %v1289, %v12
      %s1295 = smul.addr %s327, 128
      %v1296 = vlaneseq
      %v1297 = vand.u32 %v1296, 127
      %v1298 = vstv %s1295
      %v1299 = vadd.s32 %v1297, %v1298
      %vm1300 = vcmp.lt.s32.totalorder %v1299, 2
      %v1301 = vsel %vm1300, %v1294, %v12
      %s1302 = scalar_lea.vmem [#allocation17], 280
      %s1304 = ssub.s32 256, 1
      %1305 = vst [vmem:[%s1302] sm:%s1304] %v1301
      %s1306 = scalar_lea.vmem %s326, 288
      %s1307 = ssub.s32 0, %s327
      %p1308 = scmp.lt.s32.totalorder %s1307, 0
      %s1309 = scalar_select %p1308, 0, 255
      %s1310 = sand.u32 63, %s1309
      %v1311 = vld [vmem:[%s1306] sm:%s1310]
      %s1312 = ssub.s32 0, %s327
      %v1313 = vstv %s1312
      %vm1314 = vcmp.lt.s32.totalorder %v1313, 0
      %v1315 = vsel %vm1314, %v12, %v1311
      %v1316 = vlaneseq
      %v1317 = vshrl.u32 %v1316, 7
      %vm1319 = vcmp.lt.s32.totalorder %v1317, 6
      %v1320 = vsel %vm1319, %v1315, %v12
      %s1321 = smul.addr %s327, 128
      %v1322 = vlaneseq
      %v1323 = vand.u32 %v1322, 127
      %v1324 = vstv %s1321
      %v1325 = vadd.s32 %v1323, %v1324
      %vm1326 = vcmp.lt.s32.totalorder %v1325, 2
      %v1327 = vsel %vm1326, %v1320, %v12
      %s1328 = scalar_lea.vmem [#allocation17], 288
      %s1330 = ssub.s32 256, 1
      %1331 = vst [vmem:[%s1328] sm:%s1330] %v1327
      %s1332 = scalar_lea.vmem %s326, 296
      %s1333 = ssub.s32 0, %s327
      %p1334 = scmp.lt.s32.totalorder %s1333, 0
      %s1335 = scalar_select %p1334, 0, 255
      %s1336 = sand.u32 63, %s1335
      %v1337 = vld [vmem:[%s1332] sm:%s1336]
      %s1338 = ssub.s32 0, %s327
      %v1339 = vstv %s1338
      %vm1340 = vcmp.lt.s32.totalorder %v1339, 0
      %v1341 = vsel %vm1340, %v12, %v1337
      %v1342 = vlaneseq
      %v1343 = vshrl.u32 %v1342, 7
      %vm1345 = vcmp.lt.s32.totalorder %v1343, 6
      %v1346 = vsel %vm1345, %v1341, %v12
      %s1347 = smul.addr %s327, 128
      %v1348 = vlaneseq
      %v1349 = vand.u32 %v1348, 127
      %v1350 = vstv %s1347
      %v1351 = vadd.s32 %v1349, %v1350
      %vm1352 = vcmp.lt.s32.totalorder %v1351, 2
      %v1353 = vsel %vm1352, %v1346, %v12
      %s1354 = scalar_lea.vmem [#allocation17], 296
      %s1356 = ssub.s32 256, 1
      %1357 = vst [vmem:[%s1354] sm:%s1356] %v1353
      %s1358 = scalar_lea.vmem %s326, 304
      %s1359 = ssub.s32 0, %s327
      %p1360 = scmp.lt.s32.totalorder %s1359, 0
      %s1361 = scalar_select %p1360, 0, 255
      %s1362 = sand.u32 63, %s1361
      %v1363 = vld [vmem:[%s1358] sm:%s1362]
      %s1364 = ssub.s32 0, %s327
      %v1365 = vstv %s1364
      %vm1366 = vcmp.lt.s32.totalorder %v1365, 0
      %v1367 = vsel %vm1366, %v12, %v1363
      %v1368 = vlaneseq
      %v1369 = vshrl.u32 %v1368, 7
      %vm1371 = vcmp.lt.s32.totalorder %v1369, 6
      %v1372 = vsel %vm1371, %v1367, %v12
      %s1373 = smul.addr %s327, 128
      %v1374 = vlaneseq
      %v1375 = vand.u32 %v1374, 127
      %v1376 = vstv %s1373
      %v1377 = vadd.s32 %v1375, %v1376
      %vm1378 = vcmp.lt.s32.totalorder %v1377, 2
      %v1379 = vsel %vm1378, %v1372, %v12
      %s1380 = scalar_lea.vmem [#allocation17], 304
      %s1382 = ssub.s32 256, 1
      %1383 = vst [vmem:[%s1380] sm:%s1382] %v1379
      %s1384 = scalar_lea.vmem %s326, 312
      %s1385 = ssub.s32 0, %s327
      %p1386 = scmp.lt.s32.totalorder %s1385, 0
      %s1387 = scalar_select %p1386, 0, 255
      %s1388 = sand.u32 63, %s1387
      %v1389 = vld [vmem:[%s1384] sm:%s1388]
      %s1390 = ssub.s32 0, %s327
      %v1391 = vstv %s1390
      %vm1392 = vcmp.lt.s32.totalorder %v1391, 0
      %v1393 = vsel %vm1392, %v12, %v1389
      %v1394 = vlaneseq
      %v1395 = vshrl.u32 %v1394, 7
      %vm1397 = vcmp.lt.s32.totalorder %v1395, 6
      %v1398 = vsel %vm1397, %v1393, %v12
      %s1399 = smul.addr %s327, 128
      %v1400 = vlaneseq
      %v1401 = vand.u32 %v1400, 127
      %v1402 = vstv %s1399
      %v1403 = vadd.s32 %v1401, %v1402
      %vm1404 = vcmp.lt.s32.totalorder %v1403, 2
      %v1405 = vsel %vm1404, %v1398, %v12
      %s1406 = scalar_lea.vmem [#allocation17], 312
      %s1408 = ssub.s32 256, 1
      %1409 = vst [vmem:[%s1406] sm:%s1408] %v1405
      %s1410 = ssub.s32 0, %s341
      %p1411 = scmp.lt.s32.totalorder %s1410, 0
      %s1412 = scalar_select %p1411, 0, 255
      %s1413 = sand.u32 3, %s1412
      %s1414 = sand.u32 3, %s1413
      %v1415 = vld [vmem:[%s340] sm:%s1414]
      %s1416 = ssub.s32 0, %s341
      %v1417 = vstv %s1416
      %vm1418 = vcmp.lt.s32.totalorder %v1417, 0
      %v1419 = vsel %vm1418, %v13, %v1415
      %v1420 = vlaneseq
      %v1421 = vshrl.u32 %v1420, 7
      %vm1423 = vcmp.lt.s32.totalorder %v1421, 2
      %v1424 = vsel %vm1423, %v1419, %v13
      %s1425 = smul.addr %s341, 128
      %v1426 = vlaneseq
      %v1427 = vand.u32 %v1426, 127
      %v1428 = vstv %s1425
      %v1429 = vadd.s32 %v1427, %v1428
      %vm1430 = vcmp.lt.s32.totalorder %v1429, 2
      %v1431 = vsel %vm1430, %v1424, %v13
      %s1433 = ssub.s32 4, 1
      %1434 = vst [vmem:[#allocation18] sm:%s1433] %v1431
      %s1435 = scalar_lea.vmem %s340, 2
      %s1436 = ssub.s32 0, %s341
      %p1437 = scmp.lt.s32.totalorder %s1436, 0
      %s1438 = scalar_select %p1437, 0, 255
      %s1439 = sand.u32 3, %s1438
      %s1440 = sand.u32 3, %s1439
      %v1441 = vld [vmem:[%s1435] sm:%s1440]
      %s1442 = ssub.s32 0, %s341
      %v1443 = vstv %s1442
      %vm1444 = vcmp.lt.s32.totalorder %v1443, 0
      %v1445 = vsel %vm1444, %v13, %v1441
      %v1446 = vlaneseq
      %v1447 = vshrl.u32 %v1446, 7
      %vm1449 = vcmp.lt.s32.totalorder %v1447, 2
      %v1450 = vsel %vm1449, %v1445, %v13
      %s1451 = smul.addr %s341, 128
      %v1452 = vlaneseq
      %v1453 = vand.u32 %v1452, 127
      %v1454 = vstv %s1451
      %v1455 = vadd.s32 %v1453, %v1454
      %vm1456 = vcmp.lt.s32.totalorder %v1455, 2
      %v1457 = vsel %vm1456, %v1450, %v13
      %s1458 = scalar_lea.vmem [#allocation18], 2
      %s1460 = ssub.s32 4, 1
      %1461 = vst [vmem:[%s1458] sm:%s1460] %v1457
      %s1462 = scalar_lea.vmem %s340, 4
      %s1463 = ssub.s32 0, %s341
      %p1464 = scmp.lt.s32.totalorder %s1463, 0
      %s1465 = scalar_select %p1464, 0, 255
      %s1466 = sand.u32 3, %s1465
      %s1467 = sand.u32 3, %s1466
      %v1468 = vld [vmem:[%s1462] sm:%s1467]
      %s1469 = ssub.s32 0, %s341
      %v1470 = vstv %s1469
      %vm1471 = vcmp.lt.s32.totalorder %v1470, 0
      %v1472 = vsel %vm1471, %v13, %v1468
      %v1473 = vlaneseq
      %v1474 = vshrl.u32 %v1473, 7
      %vm1476 = vcmp.lt.s32.totalorder %v1474, 2
      %v1477 = vsel %vm1476, %v1472, %v13
      %s1478 = smul.addr %s341, 128
      %v1479 = vlaneseq
      %v1480 = vand.u32 %v1479, 127
      %v1481 = vstv %s1478
      %v1482 = vadd.s32 %v1480, %v1481
      %vm1483 = vcmp.lt.s32.totalorder %v1482, 2
      %v1484 = vsel %vm1483, %v1477, %v13
      %s1485 = scalar_lea.vmem [#allocation18], 4
      %s1487 = ssub.s32 4, 1
      %1488 = vst [vmem:[%s1485] sm:%s1487] %v1484
      %s1489 = scalar_lea.vmem %s340, 6
      %s1490 = ssub.s32 0, %s341
      %p1491 = scmp.lt.s32.totalorder %s1490, 0
      %s1492 = scalar_select %p1491, 0, 255
      %s1493 = sand.u32 3, %s1492
      %s1494 = sand.u32 3, %s1493
      %v1495 = vld [vmem:[%s1489] sm:%s1494]
      %s1496 = ssub.s32 0, %s341
      %v1497 = vstv %s1496
      %vm1498 = vcmp.lt.s32.totalorder %v1497, 0
      %v1499 = vsel %vm1498, %v13, %v1495
      %v1500 = vlaneseq
      %v1501 = vshrl.u32 %v1500, 7
      %vm1503 = vcmp.lt.s32.totalorder %v1501, 2
      %v1504 = vsel %vm1503, %v1499, %v13
      %s1505 = smul.addr %s341, 128
      %v1506 = vlaneseq
      %v1507 = vand.u32 %v1506, 127
      %v1508 = vstv %s1505
      %v1509 = vadd.s32 %v1507, %v1508
      %vm1510 = vcmp.lt.s32.totalorder %v1509, 2
      %v1511 = vsel %vm1510, %v1504, %v13
      %s1512 = scalar_lea.vmem [#allocation18], 6
      %s1514 = ssub.s32 4, 1
      %1515 = vst [vmem:[%s1512] sm:%s1514] %v1511
      %s1516 = scalar_lea.vmem %s340, 8
      %s1517 = ssub.s32 0, %s341
      %p1518 = scmp.lt.s32.totalorder %s1517, 0
      %s1519 = scalar_select %p1518, 0, 255
      %s1520 = sand.u32 3, %s1519
      %s1521 = sand.u32 3, %s1520
      %v1522 = vld [vmem:[%s1516] sm:%s1521]
      %s1523 = ssub.s32 0, %s341
      %v1524 = vstv %s1523
      %vm1525 = vcmp.lt.s32.totalorder %v1524, 0
      %v1526 = vsel %vm1525, %v13, %v1522
      %v1527 = vlaneseq
      %v1528 = vshrl.u32 %v1527, 7
      %vm1530 = vcmp.lt.s32.totalorder %v1528, 2
      %v1531 = vsel %vm1530, %v1526, %v13
      %s1532 = smul.addr %s341, 128
      %v1533 = vlaneseq
      %v1534 = vand.u32 %v1533, 127
      %v1535 = vstv %s1532
      %v1536 = vadd.s32 %v1534, %v1535
      %vm1537 = vcmp.lt.s32.totalorder %v1536, 2
      %v1538 = vsel %vm1537, %v1531, %v13
      %s1539 = scalar_lea.vmem [#allocation18], 8
      %s1541 = ssub.s32 4, 1
      %1542 = vst [vmem:[%s1539] sm:%s1541] %v1538
      %s1543 = scalar_lea.vmem %s340, 10
      %s1544 = ssub.s32 0, %s341
      %p1545 = scmp.lt.s32.totalorder %s1544, 0
      %s1546 = scalar_select %p1545, 0, 255
      %s1547 = sand.u32 3, %s1546
      %s1548 = sand.u32 3, %s1547
      %v1549 = vld [vmem:[%s1543] sm:%s1548]
      %s1550 = ssub.s32 0, %s341
      %v1551 = vstv %s1550
      %vm1552 = vcmp.lt.s32.totalorder %v1551, 0
      %v1553 = vsel %vm1552, %v13, %v1549
      %v1554 = vlaneseq
      %v1555 = vshrl.u32 %v1554, 7
      %vm1557 = vcmp.lt.s32.totalorder %v1555, 2
      %v1558 = vsel %vm1557, %v1553, %v13
      %s1559 = smul.addr %s341, 128
      %v1560 = vlaneseq
      %v1561 = vand.u32 %v1560, 127
      %v1562 = vstv %s1559
      %v1563 = vadd.s32 %v1561, %v1562
      %vm1564 = vcmp.lt.s32.totalorder %v1563, 2
      %v1565 = vsel %vm1564, %v1558, %v13
      %s1566 = scalar_lea.vmem [#allocation18], 10
      %s1568 = ssub.s32 4, 1
      %1569 = vst [vmem:[%s1566] sm:%s1568] %v1565
      %s1570 = scalar_lea.vmem %s340, 12
      %s1571 = ssub.s32 0, %s341
      %p1572 = scmp.lt.s32.totalorder %s1571, 0
      %s1573 = scalar_select %p1572, 0, 255
      %s1574 = sand.u32 3, %s1573
      %s1575 = sand.u32 3, %s1574
      %v1576 = vld [vmem:[%s1570] sm:%s1575]
      %s1577 = ssub.s32 0, %s341
      %v1578 = vstv %s1577
      %vm1579 = vcmp.lt.s32.totalorder %v1578, 0
      %v1580 = vsel %vm1579, %v13, %v1576
      %v1581 = vlaneseq
      %v1582 = vshrl.u32 %v1581, 7
      %vm1584 = vcmp.lt.s32.totalorder %v1582, 2
      %v1585 = vsel %vm1584, %v1580, %v13
      %s1586 = smul.addr %s341, 128
      %v1587 = vlaneseq
      %v1588 = vand.u32 %v1587, 127
      %v1589 = vstv %s1586
      %v1590 = vadd.s32 %v1588, %v1589
      %vm1591 = vcmp.lt.s32.totalorder %v1590, 2
      %v1592 = vsel %vm1591, %v1585, %v13
      %s1593 = scalar_lea.vmem [#allocation18], 12
      %s1595 = ssub.s32 4, 1
      %1596 = vst [vmem:[%s1593] sm:%s1595] %v1592
      %s1597 = scalar_lea.vmem %s340, 14
      %s1598 = ssub.s32 0, %s341
      %p1599 = scmp.lt.s32.totalorder %s1598, 0
      %s1600 = scalar_select %p1599, 0, 255
      %s1601 = sand.u32 3, %s1600
      %s1602 = sand.u32 3, %s1601
      %v1603 = vld [vmem:[%s1597] sm:%s1602]
      %s1604 = ssub.s32 0, %s341
      %v1605 = vstv %s1604
      %vm1606 = vcmp.lt.s32.totalorder %v1605, 0
      %v1607 = vsel %vm1606, %v13, %v1603
      %v1608 = vlaneseq
      %v1609 = vshrl.u32 %v1608, 7
      %vm1611 = vcmp.lt.s32.totalorder %v1609, 2
      %v1612 = vsel %vm1611, %v1607, %v13
      %s1613 = smul.addr %s341, 128
      %v1614 = vlaneseq
      %v1615 = vand.u32 %v1614, 127
      %v1616 = vstv %s1613
      %v1617 = vadd.s32 %v1615, %v1616
      %vm1618 = vcmp.lt.s32.totalorder %v1617, 2
      %v1619 = vsel %vm1618, %v1612, %v13
      %s1620 = scalar_lea.vmem [#allocation18], 14
      %s1622 = ssub.s32 4, 1
      %1623 = vst [vmem:[%s1620] sm:%s1622] %v1619
      %s1624 = ssub.s32 0, %s355
      %p1625 = scmp.lt.s32.totalorder %s1624, 0
      %s1626 = scalar_select %p1625, 0, 255
      %s1627 = sand.u32 63, %s1626
      %v1628 = vld [vmem:[%s354] sm:%s1627]
      %s1629 = ssub.s32 0, %s355
      %v1630 = vstv %s1629
      %vm1631 = vcmp.lt.s32.totalorder %v1630, 0
      %v1632 = vsel %vm1631, %v14, %v1628
      %v1633 = vlaneseq
      %v1634 = vshrl.u32 %v1633, 7
      %vm1636 = vcmp.lt.s32.totalorder %v1634, 6
      %v1637 = vsel %vm1636, %v1632, %v14
      %s1638 = smul.addr %s355, 128
      %v1639 = vlaneseq
      %v1640 = vand.u32 %v1639, 127
      %v1641 = vstv %s1638
      %v1642 = vadd.s32 %v1640, %v1641
      %vm1643 = vcmp.lt.s32.totalorder %v1642, 2
      %v1644 = vsel %vm1643, %v1637, %v14
      %s1646 = ssub.s32 256, 1
      %1647 = vst [vmem:[#allocation19] sm:%s1646] %v1644
      %p1648 = scmp.eq.s32.totalorder %s26, 0
      // Predicated region
      $region33: #{metrics_pallas.2} parent=31 // pred_check
        %p1649 = pneg %p1648
      $region34: #{metrics_pallas.2} parent=31 // pred_check_branch
        %1651 = sbr.rel (%p1649) target = $region36
      $region35: #{metrics_pallas.2} parent=31 // pred_region
        %1652 = vst [vmem:[%s363] sm:$0xf] 0.0
        %1653 = vst [vmem:[%s367] sm:$0x3f] 0.0
        %1654 = vst [vmem:[%s371] sm:$0x3f] 0.0
      $region36: #{metrics_pallas.2} parent=31 // pred_fallthru
        _
      %s1655 = sadd.s32 %s25, %s26
      %v1656 = vlaneseq
      %v1657 = vand.u32 %v1656, 127
      %s1658 = smul.u32 %s1655, 128
      %v1659 = vstv %s1658
      %v1660 = vadd.s32 %v1659, %v1657
      %vm1661 = vcmp.lt.s32.totalorder %v1660, 2
      %v1662 = vld [vmem:[#allocation17] sm:$0x3f]
      %s1663 = scalar_lea.vmem [#allocation17], 64
      %v1664 = vld [vmem:[%s1663] sm:$0x3f]
      %v1665 = vld [vmem:[#allocation18] sm:$0x3]
      %v1666 = vlaneseq
      %v1667 = vshrl.u32 %v1666, 7
      %v1668 = vsub.s32 0, %v1667
      %v1669 = vrot.slane %v1665, %v1668
      %v1670 = vsub.f32 %v1662, %v1669
      %v1671 = vlaneseq
      %v1672 = vshrl.u32 %v1671, 7
      %v1673 = vsub.s32 1, %v1672
      %v1674 = vrot.slane %v1665, %v1673
      %v1675 = vsub.f32 %v1664, %v1674
      %v1676 = vmul.f32 %v1670, %v1670
      %v1677 = vmul.f32 %v1675, %v1675
      %v1678 = vadd.f32 %v1676, %v1677
      %v1679 = vrsqrt.pop %v1678
      %v1680 = vmul.f32 %v1678, %v1679
      %vm1681 = vcmp.eq.f32.partialorder %v1678, inf
      %v1682 = vsel %vm1681, %v1678, %v1680
      %vm1683 = vcmp.eq.f32.partialorder %v1678, 0.0
      %v1684 = vand.u32 %v1678, 2147483648
      %v1685 = vsel %vm1683, %v1684, %v1682
      %s1686 = scalar_lea.vmem [#allocation17], 128
      %v1687 = vld [vmem:[%s1686] sm:$0x3f]
      %v1688 = vadd.f32 %v1687, 0.2
      %s1689 = scalar_lea.vmem [#allocation17], 256
      %v1690 = vld [vmem:[%s1689] sm:$0x3f]
      %v1691 = vadd.f32 %v1690, 0.2
      %v1692 = vrsqrt.pop %v1688
      %s1693 = scalar_lea.vmem [#allocation17], 192
      %v1694 = vld [vmem:[%s1693] sm:$0x3f]
      %v1695 = vmul.f32 %v1694, %v1692
      %v1696 = vmul.f32 %v1695, %v1695
      %v1697 = vsub.f32 %v1691, %v1696
      %v1698 = vmax.f32 %v1697, 1e-12
      %v1699 = vrsqrt.pop %v1698
      %v1700 = vsub.f32 0.0, %v1670
      %v1701 = vmul.f32 %v1700, %v1692
      %v1702 = vsub.f32 0.0, %v1675
      %v1703 = vmul.f32 %v1695, %v1701
      %v1704 = vsub.f32 %v1702, %v1703
      %v1705 = vmul.f32 %v1704, %v1699
      %v1706 = vmul.f32 %v1701, %v1701
      %v1707 = vmul.f32 %v1705, %v1705
      %v1708 = vadd.f32 %v1706, %v1707
      %v1709 = vmul.f32 %v1708, 0.5
      %v1710 = vmul.f32 %v1688, %v1698
      %v1711 = vlog2.pop %v1710
      %v1712 = vmul.f32 %v1711, 0.6931472
      %v1713 = vmul.f32 %v1712, 0.5
      %v1714 = vadd.f32 %v1709, %v1713
      %v1715 = vadd.f32 %v1714, 1.837877
      %v1716 = vadd.f32 %v1685, 0.0
      %v1717 = vadd.f32 %v1715, 0.0
      %s1718 = scalar_lea.vmem [#allocation17], 8
      %v1719 = vld [vmem:[%s1718] sm:$0x3f]
      %s1720 = scalar_lea.vmem %s1663, 8 [#allocation17]
      %v1721 = vld [vmem:[%s1720] sm:$0x3f]
      %s1722 = scalar_lea.vmem [#allocation18], 2
      %v1723 = vld [vmem:[%s1722] sm:$0x3]
      %v1724 = vlaneseq
      %v1725 = vshrl.u32 %v1724, 7
      %v1726 = vsub.s32 0, %v1725
      %v1727 = vrot.slane %v1723, %v1726
      %v1728 = vsub.f32 %v1719, %v1727
      %v1729 = vlaneseq
      %v1730 = vshrl.u32 %v1729, 7
      %v1731 = vsub.s32 1, %v1730
      %v1732 = vrot.slane %v1723, %v1731
      %v1733 = vsub.f32 %v1721, %v1732
      %v1734 = vmul.f32 %v1728, %v1728
      %v1735 = vmul.f32 %v1733, %v1733
      %v1736 = vadd.f32 %v1734, %v1735
      %v1737 = vrsqrt.pop %v1736
      %v1738 = vmul.f32 %v1736, %v1737
      %vm1739 = vcmp.eq.f32.partialorder %v1736, inf
      %v1740 = vsel %vm1739, %v1736, %v1738
      %vm1741 = vcmp.eq.f32.partialorder %v1736, 0.0
      %v1742 = vand.u32 %v1736, 2147483648
      %v1743 = vsel %vm1741, %v1742, %v1740
      %s1744 = scalar_lea.vmem %s1686, 8 [#allocation17]
      %v1745 = vld [vmem:[%s1744] sm:$0x3f]
      %v1746 = vadd.f32 %v1745, 0.2
      %s1747 = scalar_lea.vmem %s1689, 8 [#allocation17]
      %v1748 = vld [vmem:[%s1747] sm:$0x3f]
      %v1749 = vadd.f32 %v1748, 0.2
      %v1750 = vrsqrt.pop %v1746
      %s1751 = scalar_lea.vmem %s1693, 8 [#allocation17]
      %v1752 = vld [vmem:[%s1751] sm:$0x3f]
      %v1753 = vmul.f32 %v1752, %v1750
      %v1754 = vmul.f32 %v1753, %v1753
      %v1755 = vsub.f32 %v1749, %v1754
      %v1756 = vmax.f32 %v1755, 1e-12
      %v1757 = vrsqrt.pop %v1756
      %v1758 = vsub.f32 0.0, %v1728
      %v1759 = vmul.f32 %v1758, %v1750
      %v1760 = vsub.f32 0.0, %v1733
      %v1761 = vmul.f32 %v1753, %v1759
      %v1762 = vsub.f32 %v1760, %v1761
      %v1763 = vmul.f32 %v1762, %v1757
      %v1764 = vmul.f32 %v1759, %v1759
      %v1765 = vmul.f32 %v1763, %v1763
      %v1766 = vadd.f32 %v1764, %v1765
      %v1767 = vmul.f32 %v1766, 0.5
      %v1768 = vmul.f32 %v1746, %v1756
      %v1769 = vlog2.pop %v1768
      %v1770 = vmul.f32 %v1769, 0.6931472
      %v1771 = vmul.f32 %v1770, 0.5
      %v1772 = vadd.f32 %v1767, %v1771
      %v1773 = vadd.f32 %v1772, 1.837877
      %v1774 = vadd.f32 %v1716, %v1743
      %v1775 = vadd.f32 %v1717, %v1773
      %s1776 = scalar_lea.vmem [#allocation17], 16
      %v1777 = vld [vmem:[%s1776] sm:$0x3f]
      %s1778 = scalar_lea.vmem %s1663, 16 [#allocation17]
      %v1779 = vld [vmem:[%s1778] sm:$0x3f]
      %s1780 = scalar_lea.vmem [#allocation18], 4
      %v1781 = vld [vmem:[%s1780] sm:$0x3]
      %v1782 = vlaneseq
      %v1783 = vshrl.u32 %v1782, 7
      %v1784 = vsub.s32 0, %v1783
      %v1785 = vrot.slane %v1781, %v1784
      %v1786 = vsub.f32 %v1777, %v1785
      %v1787 = vlaneseq
      %v1788 = vshrl.u32 %v1787, 7
      %v1789 = vsub.s32 1, %v1788
      %v1790 = vrot.slane %v1781, %v1789
      %v1791 = vsub.f32 %v1779, %v1790
      %v1792 = vmul.f32 %v1786, %v1786
      %v1793 = vmul.f32 %v1791, %v1791
      %v1794 = vadd.f32 %v1792, %v1793
      %v1795 = vrsqrt.pop %v1794
      %v1796 = vmul.f32 %v1794, %v1795
      %vm1797 = vcmp.eq.f32.partialorder %v1794, inf
      %v1798 = vsel %vm1797, %v1794, %v1796
      %vm1799 = vcmp.eq.f32.partialorder %v1794, 0.0
      %v1800 = vand.u32 %v1794, 2147483648
      %v1801 = vsel %vm1799, %v1800, %v1798
      %s1802 = scalar_lea.vmem %s1686, 16 [#allocation17]
      %v1803 = vld [vmem:[%s1802] sm:$0x3f]
      %v1804 = vadd.f32 %v1803, 0.2
      %s1805 = scalar_lea.vmem %s1689, 16 [#allocation17]
      %v1806 = vld [vmem:[%s1805] sm:$0x3f]
      %v1807 = vadd.f32 %v1806, 0.2
      %v1808 = vrsqrt.pop %v1804
      %s1809 = scalar_lea.vmem %s1693, 16 [#allocation17]
      %v1810 = vld [vmem:[%s1809] sm:$0x3f]
      %v1811 = vmul.f32 %v1810, %v1808
      %v1812 = vmul.f32 %v1811, %v1811
      %v1813 = vsub.f32 %v1807, %v1812
      %v1814 = vmax.f32 %v1813, 1e-12
      %v1815 = vrsqrt.pop %v1814
      %v1816 = vsub.f32 0.0, %v1786
      %v1817 = vmul.f32 %v1816, %v1808
      %v1818 = vsub.f32 0.0, %v1791
      %v1819 = vmul.f32 %v1811, %v1817
      %v1820 = vsub.f32 %v1818, %v1819
      %v1821 = vmul.f32 %v1820, %v1815
      %v1822 = vmul.f32 %v1817, %v1817
      %v1823 = vmul.f32 %v1821, %v1821
      %v1824 = vadd.f32 %v1822, %v1823
      %v1825 = vmul.f32 %v1824, 0.5
      %v1826 = vmul.f32 %v1804, %v1814
      %v1827 = vlog2.pop %v1826
      %v1828 = vmul.f32 %v1827, 0.6931472
      %v1829 = vmul.f32 %v1828, 0.5
      %v1830 = vadd.f32 %v1825, %v1829
      %v1831 = vadd.f32 %v1830, 1.837877
      %v1832 = vadd.f32 %v1774, %v1801
      %v1833 = vadd.f32 %v1775, %v1831
      %s1834 = scalar_lea.vmem [#allocation17], 24
      %v1835 = vld [vmem:[%s1834] sm:$0x3f]
      %s1836 = scalar_lea.vmem %s1663, 24 [#allocation17]
      %v1837 = vld [vmem:[%s1836] sm:$0x3f]
      %s1838 = scalar_lea.vmem [#allocation18], 6
      %v1839 = vld [vmem:[%s1838] sm:$0x3]
      %v1840 = vlaneseq
      %v1841 = vshrl.u32 %v1840, 7
      %v1842 = vsub.s32 0, %v1841
      %v1843 = vrot.slane %v1839, %v1842
      %v1844 = vsub.f32 %v1835, %v1843
      %v1845 = vlaneseq
      %v1846 = vshrl.u32 %v1845, 7
      %v1847 = vsub.s32 1, %v1846
      %v1848 = vrot.slane %v1839, %v1847
      %v1849 = vsub.f32 %v1837, %v1848
      %v1850 = vmul.f32 %v1844, %v1844
      %v1851 = vmul.f32 %v1849, %v1849
      %v1852 = vadd.f32 %v1850, %v1851
      %v1853 = vrsqrt.pop %v1852
      %v1854 = vmul.f32 %v1852, %v1853
      %vm1855 = vcmp.eq.f32.partialorder %v1852, inf
      %v1856 = vsel %vm1855, %v1852, %v1854
      %vm1857 = vcmp.eq.f32.partialorder %v1852, 0.0
      %v1858 = vand.u32 %v1852, 2147483648
      %v1859 = vsel %vm1857, %v1858, %v1856
      %s1860 = scalar_lea.vmem %s1686, 24 [#allocation17]
      %v1861 = vld [vmem:[%s1860] sm:$0x3f]
      %v1862 = vadd.f32 %v1861, 0.2
      %s1863 = scalar_lea.vmem %s1689, 24 [#allocation17]
      %v1864 = vld [vmem:[%s1863] sm:$0x3f]
      %v1865 = vadd.f32 %v1864, 0.2
      %v1866 = vrsqrt.pop %v1862
      %s1867 = scalar_lea.vmem %s1693, 24 [#allocation17]
      %v1868 = vld [vmem:[%s1867] sm:$0x3f]
      %v1869 = vmul.f32 %v1868, %v1866
      %v1870 = vmul.f32 %v1869, %v1869
      %v1871 = vsub.f32 %v1865, %v1870
      %v1872 = vmax.f32 %v1871, 1e-12
      %v1873 = vrsqrt.pop %v1872
      %v1874 = vsub.f32 0.0, %v1844
      %v1875 = vmul.f32 %v1874, %v1866
      %v1876 = vsub.f32 0.0, %v1849
      %v1877 = vmul.f32 %v1869, %v1875
      %v1878 = vsub.f32 %v1876, %v1877
      %v1879 = vmul.f32 %v1878, %v1873
      %v1880 = vmul.f32 %v1875, %v1875
      %v1881 = vmul.f32 %v1879, %v1879
      %v1882 = vadd.f32 %v1880, %v1881
      %v1883 = vmul.f32 %v1882, 0.5
      %v1884 = vmul.f32 %v1862, %v1872
      %v1885 = vlog2.pop %v1884
      %v1886 = vmul.f32 %v1885, 0.6931472
      %v1887 = vmul.f32 %v1886, 0.5
      %v1888 = vadd.f32 %v1883, %v1887
      %v1889 = vadd.f32 %v1888, 1.837877
      %v1890 = vadd.f32 %v1832, %v1859
      %v1891 = vadd.f32 %v1833, %v1889
      %s1892 = scalar_lea.vmem [#allocation17], 32
      %v1893 = vld [vmem:[%s1892] sm:$0x3f]
      %s1894 = scalar_lea.vmem %s1663, 32 [#allocation17]
      %v1895 = vld [vmem:[%s1894] sm:$0x3f]
      %s1896 = scalar_lea.vmem [#allocation18], 8
      %v1897 = vld [vmem:[%s1896] sm:$0x3]
      %v1898 = vlaneseq
      %v1899 = vshrl.u32 %v1898, 7
      %v1900 = vsub.s32 0, %v1899
      %v1901 = vrot.slane %v1897, %v1900
      %v1902 = vsub.f32 %v1893, %v1901
      %v1903 = vlaneseq
      %v1904 = vshrl.u32 %v1903, 7
      %v1905 = vsub.s32 1, %v1904
      %v1906 = vrot.slane %v1897, %v1905
      %v1907 = vsub.f32 %v1895, %v1906
      %v1908 = vmul.f32 %v1902, %v1902
      %v1909 = vmul.f32 %v1907, %v1907
      %v1910 = vadd.f32 %v1908, %v1909
      %v1911 = vrsqrt.pop %v1910
      %v1912 = vmul.f32 %v1910, %v1911
      %vm1913 = vcmp.eq.f32.partialorder %v1910, inf
      %v1914 = vsel %vm1913, %v1910, %v1912
      %vm1915 = vcmp.eq.f32.partialorder %v1910, 0.0
      %v1916 = vand.u32 %v1910, 2147483648
      %v1917 = vsel %vm1915, %v1916, %v1914
      %s1918 = scalar_lea.vmem %s1686, 32 [#allocation17]
      %v1919 = vld [vmem:[%s1918] sm:$0x3f]
      %v1920 = vadd.f32 %v1919, 0.2
      %s1921 = scalar_lea.vmem %s1689, 32 [#allocation17]
      %v1922 = vld [vmem:[%s1921] sm:$0x3f]
      %v1923 = vadd.f32 %v1922, 0.2
      %v1924 = vrsqrt.pop %v1920
      %s1925 = scalar_lea.vmem %s1693, 32 [#allocation17]
      %v1926 = vld [vmem:[%s1925] sm:$0x3f]
      %v1927 = vmul.f32 %v1926, %v1924
      %v1928 = vmul.f32 %v1927, %v1927
      %v1929 = vsub.f32 %v1923, %v1928
      %v1930 = vmax.f32 %v1929, 1e-12
      %v1931 = vrsqrt.pop %v1930
      %v1932 = vsub.f32 0.0, %v1902
      %v1933 = vmul.f32 %v1932, %v1924
      %v1934 = vsub.f32 0.0, %v1907
      %v1935 = vmul.f32 %v1927, %v1933
      %v1936 = vsub.f32 %v1934, %v1935
      %v1937 = vmul.f32 %v1936, %v1931
      %v1938 = vmul.f32 %v1933, %v1933
      %v1939 = vmul.f32 %v1937, %v1937
      %v1940 = vadd.f32 %v1938, %v1939
      %v1941 = vmul.f32 %v1940, 0.5
      %v1942 = vmul.f32 %v1920, %v1930
      %v1943 = vlog2.pop %v1942
      %v1944 = vmul.f32 %v1943, 0.6931472
      %v1945 = vmul.f32 %v1944, 0.5
      %v1946 = vadd.f32 %v1941, %v1945
      %v1947 = vadd.f32 %v1946, 1.837877
      %v1948 = vadd.f32 %v1890, %v1917
      %v1949 = vadd.f32 %v1891, %v1947
      %s1950 = scalar_lea.vmem [#allocation17], 40
      %v1951 = vld [vmem:[%s1950] sm:$0x3f]
      %s1952 = scalar_lea.vmem %s1663, 40 [#allocation17]
      %v1953 = vld [vmem:[%s1952] sm:$0x3f]
      %s1954 = scalar_lea.vmem [#allocation18], 10
      %v1955 = vld [vmem:[%s1954] sm:$0x3]
      %v1956 = vlaneseq
      %v1957 = vshrl.u32 %v1956, 7
      %v1958 = vsub.s32 0, %v1957
      %v1959 = vrot.slane %v1955, %v1958
      %v1960 = vsub.f32 %v1951, %v1959
      %v1961 = vlaneseq
      %v1962 = vshrl.u32 %v1961, 7
      %v1963 = vsub.s32 1, %v1962
      %v1964 = vrot.slane %v1955, %v1963
      %v1965 = vsub.f32 %v1953, %v1964
      %v1966 = vmul.f32 %v1960, %v1960
      %v1967 = vmul.f32 %v1965, %v1965
      %v1968 = vadd.f32 %v1966, %v1967
      %v1969 = vrsqrt.pop %v1968
      %v1970 = vmul.f32 %v1968, %v1969
      %vm1971 = vcmp.eq.f32.partialorder %v1968, inf
      %v1972 = vsel %vm1971, %v1968, %v1970
      %vm1973 = vcmp.eq.f32.partialorder %v1968, 0.0
      %v1974 = vand.u32 %v1968, 2147483648
      %v1975 = vsel %vm1973, %v1974, %v1972
      %s1976 = scalar_lea.vmem %s1686, 40 [#allocation17]
      %v1977 = vld [vmem:[%s1976] sm:$0x3f]
      %v1978 = vadd.f32 %v1977, 0.2
      %s1979 = scalar_lea.vmem %s1689, 40 [#allocation17]
      %v1980 = vld [vmem:[%s1979] sm:$0x3f]
      %v1981 = vadd.f32 %v1980, 0.2
      %v1982 = vrsqrt.pop %v1978
      %s1983 = scalar_lea.vmem %s1693, 40 [#allocation17]
      %v1984 = vld [vmem:[%s1983] sm:$0x3f]
      %v1985 = vmul.f32 %v1984, %v1982
      %v1986 = vmul.f32 %v1985, %v1985
      %v1987 = vsub.f32 %v1981, %v1986
      %v1988 = vmax.f32 %v1987, 1e-12
      %v1989 = vrsqrt.pop %v1988
      %v1990 = vsub.f32 0.0, %v1960
      %v1991 = vmul.f32 %v1990, %v1982
      %v1992 = vsub.f32 0.0, %v1965
      %v1993 = vmul.f32 %v1985, %v1991
      %v1994 = vsub.f32 %v1992, %v1993
      %v1995 = vmul.f32 %v1994, %v1989
      %v1996 = vmul.f32 %v1991, %v1991
      %v1997 = vmul.f32 %v1995, %v1995
      %v1998 = vadd.f32 %v1996, %v1997
      %v1999 = vmul.f32 %v1998, 0.5
      %v2000 = vmul.f32 %v1978, %v1988
      %v2001 = vlog2.pop %v2000
      %v2002 = vmul.f32 %v2001, 0.6931472
      %v2003 = vmul.f32 %v2002, 0.5
      %v2004 = vadd.f32 %v1999, %v2003
      %v2005 = vadd.f32 %v2004, 1.837877
      %v2006 = vadd.f32 %v1948, %v1975
      %v2007 = vadd.f32 %v1949, %v2005
      %s2008 = scalar_lea.vmem [#allocation17], 48
      %v2009 = vld [vmem:[%s2008] sm:$0x3f]
      %s2010 = scalar_lea.vmem %s1663, 48 [#allocation17]
      %v2011 = vld [vmem:[%s2010] sm:$0x3f]
      %s2012 = scalar_lea.vmem [#allocation18], 12
      %v2013 = vld [vmem:[%s2012] sm:$0x3]
      %v2014 = vlaneseq
      %v2015 = vshrl.u32 %v2014, 7
      %v2016 = vsub.s32 0, %v2015
      %v2017 = vrot.slane %v2013, %v2016
      %v2018 = vsub.f32 %v2009, %v2017
      %v2019 = vlaneseq
      %v2020 = vshrl.u32 %v2019, 7
      %v2021 = vsub.s32 1, %v2020
      %v2022 = vrot.slane %v2013, %v2021
      %v2023 = vsub.f32 %v2011, %v2022
      %v2024 = vmul.f32 %v2018, %v2018
      %v2025 = vmul.f32 %v2023, %v2023
      %v2026 = vadd.f32 %v2024, %v2025
      %v2027 = vrsqrt.pop %v2026
      %v2028 = vmul.f32 %v2026, %v2027
      %vm2029 = vcmp.eq.f32.partialorder %v2026, inf
      %v2030 = vsel %vm2029, %v2026, %v2028
      %vm2031 = vcmp.eq.f32.partialorder %v2026, 0.0
      %v2032 = vand.u32 %v2026, 2147483648
      %v2033 = vsel %vm2031, %v2032, %v2030
      %s2034 = scalar_lea.vmem %s1686, 48 [#allocation17]
      %v2035 = vld [vmem:[%s2034] sm:$0x3f]
      %v2036 = vadd.f32 %v2035, 0.2
      %s2037 = scalar_lea.vmem %s1689, 48 [#allocation17]
      %v2038 = vld [vmem:[%s2037] sm:$0x3f]
      %v2039 = vadd.f32 %v2038, 0.2
      %v2040 = vrsqrt.pop %v2036
      %s2041 = scalar_lea.vmem %s1693, 48 [#allocation17]
      %v2042 = vld [vmem:[%s2041] sm:$0x3f]
      %v2043 = vmul.f32 %v2042, %v2040
      %v2044 = vmul.f32 %v2043, %v2043
      %v2045 = vsub.f32 %v2039, %v2044
      %v2046 = vmax.f32 %v2045, 1e-12
      %v2047 = vrsqrt.pop %v2046
      %v2048 = vsub.f32 0.0, %v2018
      %v2049 = vmul.f32 %v2048, %v2040
      %v2050 = vsub.f32 0.0, %v2023
      %v2051 = vmul.f32 %v2043, %v2049
      %v2052 = vsub.f32 %v2050, %v2051
      %v2053 = vmul.f32 %v2052, %v2047
      %v2054 = vmul.f32 %v2049, %v2049
      %v2055 = vmul.f32 %v2053, %v2053
      %v2056 = vadd.f32 %v2054, %v2055
      %v2057 = vmul.f32 %v2056, 0.5
      %v2058 = vmul.f32 %v2036, %v2046
      %v2059 = vlog2.pop %v2058
      %v2060 = vmul.f32 %v2059, 0.6931472
      %v2061 = vmul.f32 %v2060, 0.5
      %v2062 = vadd.f32 %v2057, %v2061
      %v2063 = vadd.f32 %v2062, 1.837877
      %v2064 = vadd.f32 %v2006, %v2033
      %v2065 = vadd.f32 %v2007, %v2063
      %s2066 = scalar_lea.vmem [#allocation17], 56
      %v2067 = vld [vmem:[%s2066] sm:$0x3f]
      %s2068 = scalar_lea.vmem %s1663, 56 [#allocation17]
      %v2069 = vld [vmem:[%s2068] sm:$0x3f]
      %s2070 = scalar_lea.vmem [#allocation18], 14
      %v2071 = vld [vmem:[%s2070] sm:$0x3]
      %v2072 = vlaneseq
      %v2073 = vshrl.u32 %v2072, 7
      %v2074 = vsub.s32 0, %v2073
      %v2075 = vrot.slane %v2071, %v2074
      %v2076 = vsub.f32 %v2067, %v2075
      %v2077 = vlaneseq
      %v2078 = vshrl.u32 %v2077, 7
      %v2079 = vsub.s32 1, %v2078
      %v2080 = vrot.slane %v2071, %v2079
      %v2081 = vsub.f32 %v2069, %v2080
      %v2082 = vmul.f32 %v2076, %v2076
      %v2083 = vmul.f32 %v2081, %v2081
      %v2084 = vadd.f32 %v2082, %v2083
      %v2085 = vrsqrt.pop %v2084
      %v2086 = vmul.f32 %v2084, %v2085
      %vm2087 = vcmp.eq.f32.partialorder %v2084, inf
      %v2088 = vsel %vm2087, %v2084, %v2086
      %vm2089 = vcmp.eq.f32.partialorder %v2084, 0.0
      %v2090 = vand.u32 %v2084, 2147483648
      %v2091 = vsel %vm2089, %v2090, %v2088
      %s2092 = scalar_lea.vmem %s1686, 56 [#allocation17]
      %v2093 = vld [vmem:[%s2092] sm:$0x3f]
      %v2094 = vadd.f32 %v2093, 0.2
      %s2095 = scalar_lea.vmem %s1689, 56 [#allocation17]
      %v2096 = vld [vmem:[%s2095] sm:$0x3f]
      %v2097 = vadd.f32 %v2096, 0.2
      %v2098 = vrsqrt.pop %v2094
      %s2099 = scalar_lea.vmem %s1693, 56 [#allocation17]
      %v2100 = vld [vmem:[%s2099] sm:$0x3f]
      %v2101 = vmul.f32 %v2100, %v2098
      %v2102 = vmul.f32 %v2101, %v2101
      %v2103 = vsub.f32 %v2097, %v2102
      %v2104 = vmax.f32 %v2103, 1e-12
      %v2105 = vrsqrt.pop %v2104
      %v2106 = vsub.f32 0.0, %v2076
      %v2107 = vmul.f32 %v2106, %v2098
      %v2108 = vsub.f32 0.0, %v2081
      %v2109 = vmul.f32 %v2101, %v2107
      %v2110 = vsub.f32 %v2108, %v2109
      %v2111 = vmul.f32 %v2110, %v2105
      %v2112 = vmul.f32 %v2107, %v2107
      %v2113 = vmul.f32 %v2111, %v2111
      %v2114 = vadd.f32 %v2112, %v2113
      %v2115 = vmul.f32 %v2114, 0.5
      %v2116 = vmul.f32 %v2094, %v2104
      %v2117 = vlog2.pop %v2116
      %v2118 = vmul.f32 %v2117, 0.6931472
      %v2119 = vmul.f32 %v2118, 0.5
      %v2120 = vadd.f32 %v2115, %v2119
      %v2121 = vadd.f32 %v2120, 1.837877
      %v2122 = vadd.f32 %v2064, %v2091
      %v2123 = vadd.f32 %v2065, %v2121
      %v2124 = vmul.f32 %v2122, 0.125
      %v2125 = vld [vmem:[#allocation19] sm:$0x3f]
      %vm2126 = vcmask 1045504
      %v2127 = vsel %vm2126, %v2125, -inf
      %v2128 = vrot.slane %v2127, 4
      %v2129 = vmax.f32 %v2127, %v2128
      %v2130 = vrot.slane %v2129, 2
      %v2131 = vmax.f32 %v2129, %v2130
      %v2132 = vrot.slane %v2131, 1
      %v2133 = vmax.f32 %v2131, %v2132
      %v2134 = vsub.f32 %v2125, %v2133
      %v2135 = vmul.f32 %v2134, 1.442695
      %v2136 = vpow.pop %v2135
      %v2137 = vsel %vm2126, %v2136, 0.0
      %v2138 = vrot.slane %v2137, 4
      %v2139 = vadd.f32 %v2137, %v2138
      %v2140 = vrot.slane %v2139, 2
      %v2141 = vadd.f32 %v2139, %v2140
      %v2142 = vrot.slane %v2141, 1
      %v2143 = vadd.f32 %v2141, %v2142
      %v2144 = vrcp.pop %v2143
      %v2145 = vmul.f32 %v2136, %v2144
      %v2146 = vsub.f32 1.0, %v2145
      %v2147 = vmul.f32 %v2146, %v2146
      %v2148 = vadd.f32 %v2091, %v2147
      %v2149 = vsel %vm2126, %v2091, inf
      %v2150 = vrot.slane %v2149, 4
      %v2151 = vmin.f32 %v2149, %v2150
      %v2152 = vrot.slane %v2151, 2
      %v2153 = vmin.f32 %v2151, %v2152
      %v2154 = vrot.slane %v2153, 1
      %v2155 = vmin.f32 %v2153, %v2154
      %v2156 = vsel %vm2126, %v2124, inf
      %v2157 = vrot.slane %v2156, 4
      %v2158 = vmin.f32 %v2156, %v2157
      %v2159 = vrot.slane %v2158, 2
      %v2160 = vmin.f32 %v2158, %v2159
      %v2161 = vrot.slane %v2160, 1
      %v2162 = vmin.f32 %v2160, %v2161
      %v2163 = vsel %vm2126, %v2148, inf
      %v2164 = vrot.slane %v2163, 4
      %v2165 = vmin.f32 %v2163, %v2164
      %v2166 = vrot.slane %v2165, 2
      %v2167 = vmin.f32 %v2165, %v2166
      %v2168 = vrot.slane %v2167, 1
      %v2169 = vmin.f32 %v2167, %v2168
      %vm2170 = vcmp.gt.f32.partialorder %v2155, 2.0
      %v2171 = vsel %vm2170, 1.0, 0.0
      %vm2172 = vcmask 1040384
      %v2173 = vsel %vm2172, %v2155, %v2162
      %vm2174 = vcmask 1041408
      %v2175 = vsel %vm2174, %v2173, %v2171
      %vm2176 = vcmask 1042432
      %v2177 = vsel %vm2176, %v2175, %v2169
      %v2178 = vld [vmem:[%s363] sm:$0xf]
      %v2179 = vsel %vm1661, 1, 0
      %vm2180 = vcmp.eq.s32.totalorder %v2179, 1
      %v2181 = vsel %vm2180, %v2177, 0.0
      %v2182 = vadd.f32 %v2178, %v2181
      %2183 = vst [vmem:[%s363] sm:$0xf] %v2182
      %v2185 = vcombine.high %v2125, %v2125
      %v2187 = vunpack.c.l.s4 1966171168
      %v2188 = vunpack.c.0.s8 %v2187
      %v2189 = vlaneseq
      %v2190 = vshrl.u32 %v2189, 7
      %v2191 = vsub.s32 %v2188, %v2190
      %v2192 = vrot.slane %v2125, %v2191
      %v2194 = vunpack.c.l.s4 1966171168
      %v2195 = vunpack.c.0.s8 %v2194
      %v2196 = vlaneseq
      %v2197 = vshrl.u32 %v2196, 7
      %v2198 = vsub.s32 %v2195, %v2197
      %v2199 = vrot.slane %v2185, %v2198
      %v2200 = vcombine.high %v2192, %v2192
      %v2201 = vcombine.high %v2199, %v2199
      %v2203 = vunpack.c.l.s4 1966171168
      %v2204 = vunpack.c.0.s8 %v2203
      %v2205 = vlaneseq
      %v2206 = vshrl.u32 %v2205, 7
      %v2207 = vsub.s32 %v2204, %v2206
      %v2208 = vrot.slane %v2192, %v2207
      %v2210 = vunpack.c.l.s4 1966171168
      %v2211 = vunpack.c.0.s8 %v2210
      %v2212 = vlaneseq
      %v2213 = vshrl.u32 %v2212, 7
      %v2214 = vsub.s32 %v2211, %v2213
      %v2215 = vrot.slane %v2199, %v2214
      %v2217 = vunpack.c.l.s4 1966171168
      %v2218 = vunpack.c.0.s8 %v2217
      %v2219 = vlaneseq
      %v2220 = vshrl.u32 %v2219, 7
      %v2221 = vsub.s32 %v2218, %v2220
      %v2222 = vrot.slane %v2200, %v2221
      %v2224 = vunpack.c.l.s4 1966171168
      %v2225 = vunpack.c.0.s8 %v2224
      %v2226 = vlaneseq
      %v2227 = vshrl.u32 %v2226, 7
      %v2228 = vsub.s32 %v2225, %v2227
      %v2229 = vrot.slane %v2201, %v2228
      %v2230 = vcombine.high %v2208, %v2208
      %v2231 = vcombine.high %v2222, %v2222
      %v2232 = vlaneseq
      %v2233 = vshrl.u32 %v2232, 7
      %v2234 = vlaneseq
      %v2235 = vshrl.u32 %v2234, 7
      %v2236 = vsub.s32 0, %v2235
      %v2237 = vrot.slane %v2208, %v2236
      %v2238 = vlaneseq
      %v2239 = vshrl.u32 %v2238, 7
      %v2240 = vsub.s32 0, %v2239
      %v2241 = vrot.slane %v2222, %v2240
      %v2242 = vlaneseq
      %v2243 = vshrl.u32 %v2242, 7
      %v2244 = vsub.s32 0, %v2243
      %v2245 = vrot.slane %v2230, %v2244
      %v2246 = vlaneseq
      %v2247 = vshrl.u32 %v2246, 7
      %v2248 = vsub.s32 0, %v2247
      %v2249 = vrot.slane %v2231, %v2248
      %v2250 = vlaneseq
      %v2251 = vshrl.u32 %v2250, 7
      %v2252 = vsub.s32 0, %v2251
      %v2253 = vrot.slane %v2215, %v2252
      %v2254 = vlaneseq
      %v2255 = vshrl.u32 %v2254, 7
      %v2256 = vsub.s32 0, %v2255
      %v2257 = vrot.slane %v2229, %v2256
      %vm2264 = vcmp.gt.f32.partialorder %v2125, %v2237
      %vm2265 = vcmp.gt.f32.partialorder %v2125, %v2241
      %vm2266 = vcmp.gt.f32.partialorder %v2125, %v2245
      %vm2267 = vcmp.gt.f32.partialorder %v2125, %v2249
      %vm2268 = vcmp.gt.f32.partialorder %v2125, %v2253
      %vm2269 = vcmp.gt.f32.partialorder %v2125, %v2257
      %vm2270 = vcmp.eq.f32.partialorder %v2125, %v2237
      %vm2271 = vcmp.eq.f32.partialorder %v2125, %v2241
      %vm2272 = vcmp.eq.f32.partialorder %v2125, %v2245
      %vm2273 = vcmp.eq.f32.partialorder %v2125, %v2249
      %vm2274 = vcmp.eq.f32.partialorder %v2125, %v2253
      %vm2275 = vcmp.eq.f32.partialorder %v2125, %v2257
      %vm2276 = vcmp.lt.s32.totalorder %v2233, 0
      %vm2277 = vcmp.lt.s32.totalorder %v2233, 1
      %vm2278 = vcmp.lt.s32.totalorder %v2233, 2
      %vm2279 = vcmp.lt.s32.totalorder %v2233, 3
      %vm2280 = vcmp.lt.s32.totalorder %v2233, 4
      %vm2281 = vcmp.lt.s32.totalorder %v2233, 5
      %vm2282 = vmand %vm2270, %vm2276
      %vm2283 = vmand %vm2271, %vm2277
      %vm2284 = vmand %vm2272, %vm2278
      %vm2285 = vmand %vm2273, %vm2279
      %vm2286 = vmand %vm2274, %vm2280
      %vm2287 = vmand %vm2275, %vm2281
      %vm2288 = vmor %vm2264, %vm2282
      %vm2289 = vmor %vm2265, %vm2283
      %vm2290 = vmor %vm2266, %vm2284
      %vm2291 = vmor %vm2267, %vm2285
      %vm2292 = vmor %vm2268, %vm2286
      %vm2293 = vmor %vm2269, %vm2287
      %v2294 = vsel %vm2288, 1.0, 0.0
      %v2295 = vsel %vm2289, 1.0, 0.0
      %v2296 = vsel %vm2290, 1.0, 0.0
      %v2297 = vsel %vm2291, 1.0, 0.0
      %v2298 = vsel %vm2292, 1.0, 0.0
      %v2299 = vsel %vm2293, 1.0, 0.0
      %v2300 = vsel %vm2126, %v2294, 0.0
      %v2301 = vrot.slane %v2300, 4
      %v2302 = vadd.f32 %v2300, %v2301
      %v2303 = vrot.slane %v2302, 2
      %v2304 = vadd.f32 %v2302, %v2303
      %v2305 = vrot.slane %v2304, 1
      %v2306 = vadd.f32 %v2304, %v2305
      %v2307 = vsel %vm2126, %v2295, 0.0
      %v2308 = vrot.slane %v2307, 4
      %v2309 = vadd.f32 %v2307, %v2308
      %v2310 = vrot.slane %v2309, 2
      %v2311 = vadd.f32 %v2309, %v2310
      %v2312 = vrot.slane %v2311, 1
      %v2313 = vadd.f32 %v2311, %v2312
      %v2314 = vsel %vm2126, %v2296, 0.0
      %v2315 = vrot.slane %v2314, 4
      %v2316 = vadd.f32 %v2314, %v2315
      %v2317 = vrot.slane %v2316, 2
      %v2318 = vadd.f32 %v2316, %v2317
      %v2319 = vrot.slane %v2318, 1
      %v2320 = vadd.f32 %v2318, %v2319
      %v2321 = vsel %vm2126, %v2297, 0.0
      %v2322 = vrot.slane %v2321, 4
      %v2323 = vadd.f32 %v2321, %v2322
      %v2324 = vrot.slane %v2323, 2
      %v2325 = vadd.f32 %v2323, %v2324
      %v2326 = vrot.slane %v2325, 1
      %v2327 = vadd.f32 %v2325, %v2326
      %v2328 = vsel %vm2126, %v2298, 0.0
      %v2329 = vrot.slane %v2328, 4
      %v2330 = vadd.f32 %v2328, %v2329
      %v2331 = vrot.slane %v2330, 2
      %v2332 = vadd.f32 %v2330, %v2331
      %v2333 = vrot.slane %v2332, 1
      %v2334 = vadd.f32 %v2332, %v2333
      %v2335 = vsel %vm2126, %v2299, 0.0
      %v2336 = vrot.slane %v2335, 4
      %v2337 = vadd.f32 %v2335, %v2336
      %v2338 = vrot.slane %v2337, 2
      %v2339 = vadd.f32 %v2337, %v2338
      %v2340 = vrot.slane %v2339, 1
      %v2341 = vadd.f32 %v2339, %v2340
      %v2342 = vsel %vm2180, %v2121, 0.0
      %v2343 = vsel %vm2180, %v2123, 0.0
      %vm2344 = vcmp.eq.f32.partialorder %v2306, 0.0
      %vm2345 = vcmp.eq.f32.partialorder %v2313, 0.0
      %vm2346 = vcmp.eq.f32.partialorder %v2320, 0.0
      %vm2347 = vcmp.eq.f32.partialorder %v2327, 0.0
      %vm2348 = vcmp.eq.f32.partialorder %v2334, 0.0
      %vm2349 = vcmp.eq.f32.partialorder %v2341, 0.0
      %v2351 = vrot.slane %v2342, 1
      %v2352 = vrot.slane %v2342, 2
      %v2353 = vrot.slane %v2342, 3
      %v2354 = vrot.slane %v2342, 4
      %v2355 = vrot.slane %v2342, 5
      %v2362 = vsel %vm2344, %v2342, 0.0
      %v2363 = vsel %vm2345, %v2351, 0.0
      %v2364 = vsel %vm2346, %v2352, 0.0
      %v2365 = vsel %vm2347, %v2353, 0.0
      %v2366 = vsel %vm2348, %v2354, 0.0
      %v2367 = vsel %vm2349, %v2355, 0.0
      %v2374 = vrot.slane %v2363, 7
      %vm2375 = vcmask 1041409
      %v2376 = vsel %vm2375, %v2374, %v2362
      %v2377 = vrot.slane %v2364, 6
      %vm2378 = vcmask 1042434
      %v2379 = vsel %vm2378, %v2377, %v2376
      %v2380 = vrot.slane %v2365, 5
      %vm2381 = vcmask 1043459
      %v2382 = vsel %vm2381, %v2380, %v2379
      %v2383 = vrot.slane %v2366, 4
      %vm2384 = vcmask 1044484
      %v2385 = vsel %vm2384, %v2383, %v2382
      %v2386 = vrot.slane %v2367, 3
      %vm2387 = vcmask 1045509
      %v2388 = vsel %vm2387, %v2386, %v2385
      %v2390 = vsel %vm2126, %v2388, 0.0
      %v2391 = vrot.slane %v2390, 4
      %v2392 = vadd.f32 %v2390, %v2391
      %v2393 = vrot.slane %v2392, 2
      %v2394 = vadd.f32 %v2392, %v2393
      %v2395 = vrot.slane %v2394, 1
      %v2396 = vadd.f32 %v2394, %v2395
      %v2398 = vrot.slane %v2343, 1
      %v2399 = vrot.slane %v2343, 2
      %v2400 = vrot.slane %v2343, 3
      %v2401 = vrot.slane %v2343, 4
      %v2402 = vrot.slane %v2343, 5
      %v2409 = vsel %vm2344, %v2343, 0.0
      %v2410 = vsel %vm2345, %v2398, 0.0
      %v2411 = vsel %vm2346, %v2399, 0.0
      %v2412 = vsel %vm2347, %v2400, 0.0
      %v2413 = vsel %vm2348, %v2401, 0.0
      %v2414 = vsel %vm2349, %v2402, 0.0
      %v2421 = vrot.slane %v2410, 7
      %v2422 = vsel %vm2375, %v2421, %v2409
      %v2423 = vrot.slane %v2411, 6
      %v2424 = vsel %vm2378, %v2423, %v2422
      %v2425 = vrot.slane %v2412, 5
      %v2426 = vsel %vm2381, %v2425, %v2424
      %v2427 = vrot.slane %v2413, 4
      %v2428 = vsel %vm2384, %v2427, %v2426
      %v2429 = vrot.slane %v2414, 3
      %v2430 = vsel %vm2387, %v2429, %v2428
      %v2432 = vsel %vm2126, %v2430, 0.0
      %v2433 = vrot.slane %v2432, 4
      %v2434 = vadd.f32 %v2432, %v2433
      %v2435 = vrot.slane %v2434, 2
      %v2436 = vadd.f32 %v2434, %v2435
      %v2437 = vrot.slane %v2436, 1
      %v2438 = vadd.f32 %v2436, %v2437
      %vm2439 = vcmp.eq.f32.partialorder %v2306, 1.0
      %vm2440 = vcmp.eq.f32.partialorder %v2313, 1.0
      %vm2441 = vcmp.eq.f32.partialorder %v2320, 1.0
      %vm2442 = vcmp.eq.f32.partialorder %v2327, 1.0
      %vm2443 = vcmp.eq.f32.partialorder %v2334, 1.0
      %vm2444 = vcmp.eq.f32.partialorder %v2341, 1.0
      %v2445 = vsel %vm2439, %v2342, 0.0
      %v2446 = vsel %vm2440, %v2351, 0.0
      %v2447 = vsel %vm2441, %v2352, 0.0
      %v2448 = vsel %vm2442, %v2353, 0.0
      %v2449 = vsel %vm2443, %v2354, 0.0
      %v2450 = vsel %vm2444, %v2355, 0.0
      %v2457 = vrot.slane %v2446, 7
      %v2458 = vsel %vm2375, %v2457, %v2445
      %v2459 = vrot.slane %v2447, 6
      %v2460 = vsel %vm2378, %v2459, %v2458
      %v2461 = vrot.slane %v2448, 5
      %v2462 = vsel %vm2381, %v2461, %v2460
      %v2463 = vrot.slane %v2449, 4
      %v2464 = vsel %vm2384, %v2463, %v2462
      %v2465 = vrot.slane %v2450, 3
      %v2466 = vsel %vm2387, %v2465, %v2464
      %v2468 = vsel %vm2126, %v2466, 0.0
      %v2469 = vrot.slane %v2468, 4
      %v2470 = vadd.f32 %v2468, %v2469
      %v2471 = vrot.slane %v2470, 2
      %v2472 = vadd.f32 %v2470, %v2471
      %v2473 = vrot.slane %v2472, 1
      %v2474 = vadd.f32 %v2472, %v2473
      %v2475 = vsel %vm2439, %v2343, 0.0
      %v2476 = vsel %vm2440, %v2398, 0.0
      %v2477 = vsel %vm2441, %v2399, 0.0
      %v2478 = vsel %vm2442, %v2400, 0.0
      %v2479 = vsel %vm2443, %v2401, 0.0
      %v2480 = vsel %vm2444, %v2402, 0.0
      %v2487 = vrot.slane %v2476, 7
      %v2488 = vsel %vm2375, %v2487, %v2475
      %v2489 = vrot.slane %v2477, 6
      %v2490 = vsel %vm2378, %v2489, %v2488
      %v2491 = vrot.slane %v2478, 5
      %v2492 = vsel %vm2381, %v2491, %v2490
      %v2493 = vrot.slane %v2479, 4
      %v2494 = vsel %vm2384, %v2493, %v2492
      %v2495 = vrot.slane %v2480, 3
      %v2496 = vsel %vm2387, %v2495, %v2494
      %v2498 = vsel %vm2126, %v2496, 0.0
      %v2499 = vrot.slane %v2498, 4
      %v2500 = vadd.f32 %v2498, %v2499
      %v2501 = vrot.slane %v2500, 2
      %v2502 = vadd.f32 %v2500, %v2501
      %v2503 = vrot.slane %v2502, 1
      %v2504 = vadd.f32 %v2502, %v2503
      %vm2505 = vcmp.eq.f32.partialorder %v2306, 2.0
      %vm2506 = vcmp.eq.f32.partialorder %v2313, 2.0
      %vm2507 = vcmp.eq.f32.partialorder %v2320, 2.0
      %vm2508 = vcmp.eq.f32.partialorder %v2327, 2.0
      %vm2509 = vcmp.eq.f32.partialorder %v2334, 2.0
      %vm2510 = vcmp.eq.f32.partialorder %v2341, 2.0
      %v2511 = vsel %vm2505, %v2342, 0.0
      %v2512 = vsel %vm2506, %v2351, 0.0
      %v2513 = vsel %vm2507, %v2352, 0.0
      %v2514 = vsel %vm2508, %v2353, 0.0
      %v2515 = vsel %vm2509, %v2354, 0.0
      %v2516 = vsel %vm2510, %v2355, 0.0
      %v2523 = vrot.slane %v2512, 7
      %v2524 = vsel %vm2375, %v2523, %v2511
      %v2525 = vrot.slane %v2513, 6
      %v2526 = vsel %vm2378, %v2525, %v2524
      %v2527 = vrot.slane %v2514, 5
      %v2528 = vsel %vm2381, %v2527, %v2526
      %v2529 = vrot.slane %v2515, 4
      %v2530 = vsel %vm2384, %v2529, %v2528
      %v2531 = vrot.slane %v2516, 3
      %v2532 = vsel %vm2387, %v2531, %v2530
      %v2534 = vsel %vm2126, %v2532, 0.0
      %v2535 = vrot.slane %v2534, 4
      %v2536 = vadd.f32 %v2534, %v2535
      %v2537 = vrot.slane %v2536, 2
      %v2538 = vadd.f32 %v2536, %v2537
      %v2539 = vrot.slane %v2538, 1
      %v2540 = vadd.f32 %v2538, %v2539
      %v2541 = vsel %vm2505, %v2343, 0.0
      %v2542 = vsel %vm2506, %v2398, 0.0
      %v2543 = vsel %vm2507, %v2399, 0.0
      %v2544 = vsel %vm2508, %v2400, 0.0
      %v2545 = vsel %vm2509, %v2401, 0.0
      %v2546 = vsel %vm2510, %v2402, 0.0
      %v2553 = vrot.slane %v2542, 7
      %v2554 = vsel %vm2375, %v2553, %v2541
      %v2555 = vrot.slane %v2543, 6
      %v2556 = vsel %vm2378, %v2555, %v2554
      %v2557 = vrot.slane %v2544, 5
      %v2558 = vsel %vm2381, %v2557, %v2556
      %v2559 = vrot.slane %v2545, 4
      %v2560 = vsel %vm2384, %v2559, %v2558
      %v2561 = vrot.slane %v2546, 3
      %v2562 = vsel %vm2387, %v2561, %v2560
      %v2564 = vsel %vm2126, %v2562, 0.0
      %v2565 = vrot.slane %v2564, 4
      %v2566 = vadd.f32 %v2564, %v2565
      %v2567 = vrot.slane %v2566, 2
      %v2568 = vadd.f32 %v2566, %v2567
      %v2569 = vrot.slane %v2568, 1
      %v2570 = vadd.f32 %v2568, %v2569
      %vm2571 = vcmp.eq.f32.partialorder %v2306, 3.0
      %vm2572 = vcmp.eq.f32.partialorder %v2313, 3.0
      %vm2573 = vcmp.eq.f32.partialorder %v2320, 3.0
      %vm2574 = vcmp.eq.f32.partialorder %v2327, 3.0
      %vm2575 = vcmp.eq.f32.partialorder %v2334, 3.0
      %vm2576 = vcmp.eq.f32.partialorder %v2341, 3.0
      %v2577 = vsel %vm2571, %v2342, 0.0
      %v2578 = vsel %vm2572, %v2351, 0.0
      %v2579 = vsel %vm2573, %v2352, 0.0
      %v2580 = vsel %vm2574, %v2353, 0.0
      %v2581 = vsel %vm2575, %v2354, 0.0
      %v2582 = vsel %vm2576, %v2355, 0.0
      %v2589 = vrot.slane %v2578, 7
      %v2590 = vsel %vm2375, %v2589, %v2577
      %v2591 = vrot.slane %v2579, 6
      %v2592 = vsel %vm2378, %v2591, %v2590
      %v2593 = vrot.slane %v2580, 5
      %v2594 = vsel %vm2381, %v2593, %v2592
      %v2595 = vrot.slane %v2581, 4
      %v2596 = vsel %vm2384, %v2595, %v2594
      %v2597 = vrot.slane %v2582, 3
      %v2598 = vsel %vm2387, %v2597, %v2596
      %v2600 = vsel %vm2126, %v2598, 0.0
      %v2601 = vrot.slane %v2600, 4
      %v2602 = vadd.f32 %v2600, %v2601
      %v2603 = vrot.slane %v2602, 2
      %v2604 = vadd.f32 %v2602, %v2603
      %v2605 = vrot.slane %v2604, 1
      %v2606 = vadd.f32 %v2604, %v2605
      %v2607 = vsel %vm2571, %v2343, 0.0
      %v2608 = vsel %vm2572, %v2398, 0.0
      %v2609 = vsel %vm2573, %v2399, 0.0
      %v2610 = vsel %vm2574, %v2400, 0.0
      %v2611 = vsel %vm2575, %v2401, 0.0
      %v2612 = vsel %vm2576, %v2402, 0.0
      %v2619 = vrot.slane %v2608, 7
      %v2620 = vsel %vm2375, %v2619, %v2607
      %v2621 = vrot.slane %v2609, 6
      %v2622 = vsel %vm2378, %v2621, %v2620
      %v2623 = vrot.slane %v2610, 5
      %v2624 = vsel %vm2381, %v2623, %v2622
      %v2625 = vrot.slane %v2611, 4
      %v2626 = vsel %vm2384, %v2625, %v2624
      %v2627 = vrot.slane %v2612, 3
      %v2628 = vsel %vm2387, %v2627, %v2626
      %v2630 = vsel %vm2126, %v2628, 0.0
      %v2631 = vrot.slane %v2630, 4
      %v2632 = vadd.f32 %v2630, %v2631
      %v2633 = vrot.slane %v2632, 2
      %v2634 = vadd.f32 %v2632, %v2633
      %v2635 = vrot.slane %v2634, 1
      %v2636 = vadd.f32 %v2634, %v2635
      %vm2637 = vcmp.eq.f32.partialorder %v2306, 4.0
      %vm2638 = vcmp.eq.f32.partialorder %v2313, 4.0
      %vm2639 = vcmp.eq.f32.partialorder %v2320, 4.0
      %vm2640 = vcmp.eq.f32.partialorder %v2327, 4.0
      %vm2641 = vcmp.eq.f32.partialorder %v2334, 4.0
      %vm2642 = vcmp.eq.f32.partialorder %v2341, 4.0
      %v2643 = vsel %vm2637, %v2342, 0.0
      %v2644 = vsel %vm2638, %v2351, 0.0
      %v2645 = vsel %vm2639, %v2352, 0.0
      %v2646 = vsel %vm2640, %v2353, 0.0
      %v2647 = vsel %vm2641, %v2354, 0.0
      %v2648 = vsel %vm2642, %v2355, 0.0
      %v2655 = vrot.slane %v2644, 7
      %v2656 = vsel %vm2375, %v2655, %v2643
      %v2657 = vrot.slane %v2645, 6
      %v2658 = vsel %vm2378, %v2657, %v2656
      %v2659 = vrot.slane %v2646, 5
      %v2660 = vsel %vm2381, %v2659, %v2658
      %v2661 = vrot.slane %v2647, 4
      %v2662 = vsel %vm2384, %v2661, %v2660
      %v2663 = vrot.slane %v2648, 3
      %v2664 = vsel %vm2387, %v2663, %v2662
      %v2666 = vsel %vm2126, %v2664, 0.0
      %v2667 = vrot.slane %v2666, 4
      %v2668 = vadd.f32 %v2666, %v2667
      %v2669 = vrot.slane %v2668, 2
      %v2670 = vadd.f32 %v2668, %v2669
      %v2671 = vrot.slane %v2670, 1
      %v2672 = vadd.f32 %v2670, %v2671
      %v2673 = vsel %vm2637, %v2343, 0.0
      %v2674 = vsel %vm2638, %v2398, 0.0
      %v2675 = vsel %vm2639, %v2399, 0.0
      %v2676 = vsel %vm2640, %v2400, 0.0
      %v2677 = vsel %vm2641, %v2401, 0.0
      %v2678 = vsel %vm2642, %v2402, 0.0
      %v2685 = vrot.slane %v2674, 7
      %v2686 = vsel %vm2375, %v2685, %v2673
      %v2687 = vrot.slane %v2675, 6
      %v2688 = vsel %vm2378, %v2687, %v2686
      %v2689 = vrot.slane %v2676, 5
      %v2690 = vsel %vm2381, %v2689, %v2688
      %v2691 = vrot.slane %v2677, 4
      %v2692 = vsel %vm2384, %v2691, %v2690
      %v2693 = vrot.slane %v2678, 3
      %v2694 = vsel %vm2387, %v2693, %v2692
      %v2696 = vsel %vm2126, %v2694, 0.0
      %v2697 = vrot.slane %v2696, 4
      %v2698 = vadd.f32 %v2696, %v2697
      %v2699 = vrot.slane %v2698, 2
      %v2700 = vadd.f32 %v2698, %v2699
      %v2701 = vrot.slane %v2700, 1
      %v2702 = vadd.f32 %v2700, %v2701
      %vm2703 = vcmp.eq.f32.partialorder %v2306, 5.0
      %vm2704 = vcmp.eq.f32.partialorder %v2313, 5.0
      %vm2705 = vcmp.eq.f32.partialorder %v2320, 5.0
      %vm2706 = vcmp.eq.f32.partialorder %v2327, 5.0
      %vm2707 = vcmp.eq.f32.partialorder %v2334, 5.0
      %vm2708 = vcmp.eq.f32.partialorder %v2341, 5.0
      %v2709 = vsel %vm2703, %v2342, 0.0
      %v2710 = vsel %vm2704, %v2351, 0.0
      %v2711 = vsel %vm2705, %v2352, 0.0
      %v2712 = vsel %vm2706, %v2353, 0.0
      %v2713 = vsel %vm2707, %v2354, 0.0
      %v2714 = vsel %vm2708, %v2355, 0.0
      %v2721 = vrot.slane %v2710, 7
      %v2722 = vsel %vm2375, %v2721, %v2709
      %v2723 = vrot.slane %v2711, 6
      %v2724 = vsel %vm2378, %v2723, %v2722
      %v2725 = vrot.slane %v2712, 5
      %v2726 = vsel %vm2381, %v2725, %v2724
      %v2727 = vrot.slane %v2713, 4
      %v2728 = vsel %vm2384, %v2727, %v2726
      %v2729 = vrot.slane %v2714, 3
      %v2730 = vsel %vm2387, %v2729, %v2728
      %v2732 = vsel %vm2126, %v2730, 0.0
      %v2733 = vrot.slane %v2732, 4
      %v2734 = vadd.f32 %v2732, %v2733
      %v2735 = vrot.slane %v2734, 2
      %v2736 = vadd.f32 %v2734, %v2735
      %v2737 = vrot.slane %v2736, 1
      %v2738 = vadd.f32 %v2736, %v2737
      %v2739 = vsel %vm2703, %v2343, 0.0
      %v2740 = vsel %vm2704, %v2398, 0.0
      %v2741 = vsel %vm2705, %v2399, 0.0
      %v2742 = vsel %vm2706, %v2400, 0.0
      %v2743 = vsel %vm2707, %v2401, 0.0
      %v2744 = vsel %vm2708, %v2402, 0.0
      %v2751 = vrot.slane %v2740, 7
      %v2752 = vsel %vm2375, %v2751, %v2739
      %v2753 = vrot.slane %v2741, 6
      %v2754 = vsel %vm2378, %v2753, %v2752
      %v2755 = vrot.slane %v2742, 5
      %v2756 = vsel %vm2381, %v2755, %v2754
      %v2757 = vrot.slane %v2743, 4
      %v2758 = vsel %vm2384, %v2757, %v2756
      %v2759 = vrot.slane %v2744, 3
      %v2760 = vsel %vm2387, %v2759, %v2758
      %v2762 = vsel %vm2126, %v2760, 0.0
      %v2763 = vrot.slane %v2762, 4
      %v2764 = vadd.f32 %v2762, %v2763
      %v2765 = vrot.slane %v2764, 2
      %v2766 = vadd.f32 %v2764, %v2765
      %v2767 = vrot.slane %v2766, 1
      %v2768 = vadd.f32 %v2766, %v2767
      %v2769 = vld [vmem:[%s367] sm:$0x3f]
      %v2771 = vrot.slane %v2474, 7
      %v2774 = vrot.slane %v2540, 6
      %v2777 = vrot.slane %v2606, 5
      %v2780 = vrot.slane %v2672, 4
      %v2783 = vrot.slane %v2738, 3
      %v2785 = vsel %vm2172, %v2396, %v2771
      %v2786 = vsel %vm2174, %v2785, %v2774
      %v2787 = vsel %vm2176, %v2786, %v2777
      %vm2788 = vcmask 1043456
      %v2789 = vsel %vm2788, %v2787, %v2780
      %vm2790 = vcmask 1044480
      %v2791 = vsel %vm2790, %v2789, %v2783
      %v2792 = vadd.f32 %v2769, %v2791
      %2793 = vst [vmem:[%s367] sm:$0x3f] %v2792
      %v2794 = vld [vmem:[%s371] sm:$0x3f]
      %v2796 = vrot.slane %v2504, 7
      %v2799 = vrot.slane %v2570, 6
      %v2802 = vrot.slane %v2636, 5
      %v2805 = vrot.slane %v2702, 4
      %v2808 = vrot.slane %v2768, 3
      %v2810 = vsel %vm2172, %v2438, %v2796
      %v2811 = vsel %vm2174, %v2810, %v2799
      %v2812 = vsel %vm2176, %v2811, %v2802
      %v2813 = vsel %vm2788, %v2812, %v2805
      %v2814 = vsel %vm2790, %v2813, %v2808
      %v2815 = vadd.f32 %v2794, %v2814
      %2816 = vst [vmem:[%s371] sm:$0x3f] %v2815
      %p2817 = scmp.lt.s32.totalorder %s25, 1
      %s2818 = scalar_select %p2817, %s25, 1
      %s2819 = smul.addr %s2818, 4
      %s2820 = scalar_lea.vmem %s4, %s2819
      %p2821 = scmp.lt.s32.totalorder %s25, 1
      %s2822 = scalar_select %p2821, %s25, 1
      %s2823 = smul.addr %s2822, 8
      %s2824 = scalar_lea.vmem %s5, %s2823
      %p2825 = scmp.lt.s32.totalorder %s25, 1
      %s2826 = scalar_select %p2825, %s25, 1
      %s2827 = smul.addr %s2826, 8
      %s2828 = scalar_lea.vmem %s6, %s2827
      // Predicated region
      $region37: #{metrics_pallas.2} parent=31 // pred_check
        %p2829 = pneg %p135
      $region38: #{metrics_pallas.2} parent=31 // pred_check_branch
        %2831 = sbr.rel (%p2829) target = $region40
      $region39: #{metrics_pallas.2} parent=31 // pred_region
        _
      $region40: #{metrics_pallas.2} parent=31 // pred_fallthru
        _
      // Predicated region
      $region41: #{metrics_pallas.2} parent=31 // pred_check
        %p2832 = pneg %p161
      $region42: #{metrics_pallas.2} parent=31 // pred_check_branch
        %2834 = sbr.rel (%p2832) target = $region44
      $region43: #{metrics_pallas.2} parent=31 // pred_region
        _
      $region44: #{metrics_pallas.2} parent=31 // pred_fallthru
        _
      // Predicated region
      $region45: #{metrics_pallas.2} parent=31 // pred_check
        %p2835 = pneg %p187
      $region46: #{metrics_pallas.2} parent=31 // pred_check_branch
        %2837 = sbr.rel (%p2835) target = $region48
      $region47: #{metrics_pallas.2} parent=31 // pred_region
        _
      $region48: #{metrics_pallas.2} parent=31 // pred_fallthru
        _
    $region32: #{metrics_pallas.2} parent=5 // pred_fallthru
      _
    %p2838 = scmp.le.s32.totalorder 2, %s16
    // Predicated region
    $region49: #{metrics_pallas.2} parent=5 // pred_check
      %p2839 = pneg %p2838
    $region50: #{metrics_pallas.2} parent=5 // pred_check_branch
      %2841 = sbr.rel (%p2839) target = $region52
    $region51: #{metrics_pallas.2} parent=5 // pred_region
      %s2842 = ssub.s32 %s16, 2
      // Predicated region
      $region53: #{metrics_pallas.2} parent=51 // pred_check
        %p2843 = pneg %p141
      $region54: #{metrics_pallas.2} parent=51 // pred_check_branch
        %2845 = sbr.rel (%p2843) target = $region56
      $region55: #{metrics_pallas.2} parent=51 // pred_region
        %p2846 = scmp.lt.s32.totalorder %s27, 1
        %s2847 = scalar_select %p2846, %s27, 1
        %s2848 = smul.addr %s2847, 4
        %s2849 = scalar_lea.vmem %s4, %s2848
      $region56: #{metrics_pallas.2} parent=51 // pred_fallthru
        _
      // Predicated region
      $region57: #{metrics_pallas.2} parent=51 // pred_check
        %p2850 = pneg %p167
      $region58: #{metrics_pallas.2} parent=51 // pred_check_branch
        %2852 = sbr.rel (%p2850) target = $region60
      $region59: #{metrics_pallas.2} parent=51 // pred_region
        %p2853 = scmp.lt.s32.totalorder %s27, 1
        %s2854 = scalar_select %p2853, %s27, 1
        %s2855 = smul.addr %s2854, 8
        %s2856 = scalar_lea.vmem %s5, %s2855
      $region60: #{metrics_pallas.2} parent=51 // pred_fallthru
        _
      // Predicated region
      $region61: #{metrics_pallas.2} parent=51 // pred_check
        %p2857 = pneg %p193
      $region62: #{metrics_pallas.2} parent=51 // pred_check_branch
        %2859 = sbr.rel (%p2857) target = $region64
      $region63: #{metrics_pallas.2} parent=51 // pred_region
        %p2860 = scmp.lt.s32.totalorder %s27, 1
        %s2861 = scalar_select %p2860, %s27, 1
        %s2862 = smul.addr %s2861, 8
        %s2863 = scalar_lea.vmem %s6, %s2862
      $region64: #{metrics_pallas.2} parent=51 // pred_fallthru
        _
    $region52: #{metrics_pallas.2} parent=5 // pred_fallthru
      _
  $region6: #{metrics_pallas.2} parent=0 // loop_footer
    %s20 = sadd.s32 1, %s16
  $region7: #{metrics_pallas.2} parent=0 // loop_footer_branch
    %15 = sbr.rel target = $region3
  $region8: #{metrics_pallas.2} parent=0 // loop_exit
    _

</llo_original>
